<compile_context>
chip_gen: v7x
topology: tpu7x:2x2x1
jax: 0.10.0
libtpu: 0.0.40
codegen_flags: <defaults>
</compile_context>

<pallas_src>
import jax
import jax.numpy as jnp
from jax import lax
from jax.experimental import pallas as pl
from jax.experimental.pallas import tpu as pltpu

MAX_PAD = 6  # halo needed for the largest (13x13) pooling window


def _pool5_valid(a):
    """Separable VALID 5x5 max pool via a log-depth max tree.

    a: (Ha, Wa, C) -> (Ha-4, Wa-4, C).

    H axis (leading dim, shifts are free vreg re-selections) is reduced first
    so the W axis (sublane dim, shifts cost copies/rotates) works on 4 fewer
    rows.  Tree: win2 = max(x, x>>1); win4 = max(win2, win2>>2);
    win5 = max(win4, x>>4)  -> 3 maxes per axis instead of 4.
    """
    Ha, Wa, _ = a.shape

    # --- H axis (cheap shifts) ---
    Ho = Ha - 4
    b = jnp.maximum(a[0:Ha - 1], a[1:Ha])          # window 2
    c = jnp.maximum(b[0:Ha - 3], b[2:Ha - 1])      # window 4
    h = jnp.maximum(c[0:Ho], a[4:Ha])              # window 5, shape (Ho, Wa, C)

    # --- W axis (sublane shifts, now on Ho rows) ---
    Wo = Wa - 4
    b2 = jnp.maximum(h[:, 0:Wa - 1, :], h[:, 1:Wa, :])
    c2 = jnp.maximum(b2[:, 0:Wa - 3, :], b2[:, 2:Wa - 1, :])
    v = jnp.maximum(c2[:, 0:Wo, :], h[:, 4:Wa, :])
    return v                                        # (Ho, Wo, C)


def _spp_kernel(x_ref, w_ref, b_ref, o_ref, xp_ref):
    """One batch image per grid step.
    x_ref : (1, H, W, C)        input tile (NHWC)
    w_ref : (4, C, C)           BN-folded 1x1 weight, branch-major [x,p5,p9,p13]
    b_ref : (1, C)              BN-folded bias
    o_ref : (1, H, W, C)        output tile
    xp_ref: (H+12, W+12, C)     VMEM scratch: -inf padded copy of the image."""
    _, H, W, C = x_ref.shape

    # Build the -inf halo in VMEM (PyTorch MaxPool2d padding semantics).
    xp_ref[...] = jnp.full(xp_ref.shape, -jnp.inf, dtype=xp_ref.dtype)
    xp_ref[MAX_PAD:MAX_PAD + H, MAX_PAD:MAX_PAD + W, :] = x_ref[0]
    xp = xp_ref[...]

    # SPPF cascade: stacked VALID 5x5 pools == "same" 5 / 9 / 13 pools.
    s1 = _pool5_valid(xp)         # (H+8, W+8, C): maxpool5, halo 4
    s2 = _pool5_valid(s1)         # (H+4, W+4, C): maxpool9, halo 2
    s3 = _pool5_valid(s2)         # (H,   W,   C): maxpool13

    x0 = x_ref[0]
    p5 = s1[4:4 + H, 4:4 + W, :]
    p9 = s2[2:2 + H, 2:2 + W, :]
    p13 = s3

    # 1x1 conv (+ folded BN) as four accumulated MXU matmuls — the (H,W,4C)
    # concat is never materialized.
    def mm(t, g):
        return jnp.dot(t.reshape(H * W, C), w_ref[g],
                       preferred_element_type=jnp.float32)

    y = mm(x0, 0) + mm(p5, 1) + mm(p9, 2) + mm(p13, 3)
    y = y + b_ref[...]
    y = jnp.where(y > 0, y, 0.2 * y)             # LeakyReLU(0.2)

    o_ref[0] = y.reshape(H, W, C).astype(o_ref.dtype)


def spp_forward(x_nchw, w, bias, gamma, beta, run_mean, run_var, eps=1e-5):
    """x_nchw: (B, C, H, W) f32.  w: (4C, C) (branch order [x,p5,p9,p13]),
    bias/gamma/beta/run_mean/run_var: (C,)."""
    x = jnp.transpose(x_nchw, (0, 2, 3, 1)).astype(jnp.float32)    # NHWC
    B, H, W, C = x.shape

    # Fold inference-mode BatchNorm into the 1x1 conv; split weight by branch.
    scale = gamma / jnp.sqrt(run_var + eps)                        # (C,)
    w_fold = (w * scale[None, :]).astype(jnp.float32)              # (4C, C)
    w4 = w_fold.reshape(4, C, C)                                   # [x,p5,p9,p13]
    b_fold = ((bias - run_mean) * scale + beta).reshape(1, C).astype(jnp.float32)

    grid_spec = pltpu.PrefetchScalarGridSpec(
        num_scalar_prefetch=0,
        grid=(B,),
        in_specs=[
            pl.BlockSpec((1, H, W, C), lambda b: (b, 0, 0, 0)),
            pl.BlockSpec((4, C, C), lambda b: (0, 0, 0)),   # resident across grid
            pl.BlockSpec((1, C), lambda b: (0, 0)),
        ],
        out_specs=pl.BlockSpec((1, H, W, C), lambda b: (b, 0, 0, 0)),
        scratch_shapes=[
            pltpu.VMEM((H + 2 * MAX_PAD, W + 2 * MAX_PAD, C), jnp.float32),
        ],
    )

    # Advisory cost hint for XLA's scheduler.
    matmul_flops = 2 * B * 4 * H * W * C * C
    pool_flops = B * 3 * 6 * (H + 12) * (W + 12) * C   # 3 stages x 6 maxes (upper bound)
    bytes_accessed = 4 * (2 * B * H * W * C + 4 * C * C + C)
    cost = pl.CostEstimate(flops=matmul_flops + pool_flops,
                           transcendentals=0,
                           bytes_accessed=bytes_accessed)

    out_nhwc = pl.pallas_call(
        _spp_kernel,
        out_shape=jax.ShapeDtypeStruct((B, H, W, C), jnp.float32),
        grid_spec=grid_spec,
        compiler_params=pltpu.CompilerParams(
            dimension_semantics=("parallel",),          # megacore on v7x
            vmem_limit_bytes=48 * 1024 * 1024,          # safe on v5e/v6e/v7x
        ),
        cost_estimate=cost,
    )(x, w4, b_fold)

    return jnp.transpose(out_nhwc, (0, 3, 1, 2))                   # back to NCHW


def _reference(x_nchw, w, bias, gamma, beta, run_mean, run_var, eps=1e-5):
    """Pure-JAX reference mirroring the PyTorch module (eval-mode BN)."""
    x = jnp.transpose(x_nchw, (0, 2, 3, 1)).astype(jnp.float32)    # NHWC

    def maxpool(v, k):
        p = k // 2
        return lax.reduce_window(v, -jnp.inf, lax.max,
                                 window_dimensions=(1, k, k, 1),
                                 window_strides=(1, 1, 1, 1),
                                 padding=((0, 0), (p, p), (p, p), (0, 0)))

    cat = jnp.concatenate([x, maxpool(x, 5), maxpool(x, 9), maxpool(x, 13)],
                          axis=-1)
    y = jnp.einsum('bhwk,kc->bhwc', cat, w) + bias
    y = (y - run_mean) / jnp.sqrt(run_var + eps) * gamma + beta
    y = jnp.where(y > 0, y, 0.2 * y)
    return jnp.transpose(y, (0, 3, 1, 2))


if __name__ == "__main__":
    B, C, H, W = 2, 4, 16, 16   # input_channel = 4
    key = jax.random.PRNGKey(0)
    k_x, k_w, k_b, k_g, k_be, k_m, k_v = jax.random.split(key, 7)

    x = jax.random.normal(k_x, (B, C, H, W), dtype=jnp.float32)

    # deterministic synthetic parameters
    w = 0.1 * jax.random.normal(k_w, (4 * C, C), dtype=jnp.float32)   # conv1 1x1 weight
    bias = 0.1 * jax.random.normal(k_b, (C,), dtype=jnp.float32)      # conv1 bias
    gamma = 1.0 + 0.1 * jax.random.normal(k_g, (C,), dtype=jnp.float32)
    beta = 0.1 * jax.random.normal(k_be, (C,), dtype=jnp.float32)
    run_mean = 0.05 * jax.random.normal(k_m, (C,), dtype=jnp.float32)
    run_var = 1.0 + 0.1 * jnp.abs(jax.random.normal(k_v, (C,), dtype=jnp.float32))

    out = jax.block_until_ready(
        spp_forward(x, w, bias, gamma, beta, run_mean, run_var))

    ref = _reference(x, w, bias, gamma, beta, run_mean, run_var)
    assert out.shape == (B, C, H, W)
    assert jnp.allclose(out, ref, atol=1e-4, rtol=1e-4), "mismatch vs reference"

    print("KERNEL_OK")
</pallas_src>

<mosaic_0001>
module attributes {stable_mosaic.version = 11 : i64} {
  func.func @_spp_kernel(%arg0: i32, %arg1: memref<1x16x16x4xf32, #tpu.memory_space<vmem>>, %arg2: memref<4x4x4xf32, #tpu.memory_space<vmem>>, %arg3: memref<1x4xf32, #tpu.memory_space<vmem>>, %arg4: memref<1x16x16x4xf32, #tpu.memory_space<vmem>>, %arg5: memref<28x28x4xf32, #tpu.memory_space<vmem>>) attributes {dimension_semantics = [#tpu.dimension_semantics<parallel>], iteration_bounds = array<i64: 2>, scalar_prefetch = 0 : i64, scratch_operands = 1 : i64, tpu.core_type = #tpu.core_type<tc>, window_params = [{transform_indices = @transform_0, window_bounds = array<i64: 1, 16, 16, 4>}, {pipeline_mode = #tpu.pipeline_mode<synchronous>, transform_indices = @transform_1, window_bounds = array<i64: 4, 4, 4>}, {pipeline_mode = #tpu.pipeline_mode<synchronous>, transform_indices = @transform_2, window_bounds = array<i64: 1, 4>}, {transform_indices = @transform_3, window_bounds = array<i64: 1, 16, 16, 4>}]} {
    %cst = arith.constant 0xFF800000 : f32
    %0 = vector.broadcast %cst : f32 to vector<28x28x4xf32>
    %c0 = arith.constant 0 : index
    %c0_0 = arith.constant 0 : index
    %c0_1 = arith.constant 0 : index
    %1 = vector.load %arg5[%c0, %c0_0, %c0_1] : memref<28x28x4xf32, #tpu.memory_space<vmem>>, vector<28x28x4xf32>
    tpu.vector_store %arg5[%c0, %c0_0, %c0_1], %0 {strides = array<i32>} : memref<28x28x4xf32, #tpu.memory_space<vmem>>, vector<28x28x4xf32>,
    %c0_2 = arith.constant 0 : index
    %c0_3 = arith.constant 0 : index
    %c0_4 = arith.constant 0 : index
    %c0_5 = arith.constant 0 : index
    %2 = vector.load %arg1[%c0_2, %c0_3, %c0_4, %c0_5] : memref<1x16x16x4xf32, #tpu.memory_space<vmem>>, vector<1x16x16x4xf32>
    %3 = vector.shape_cast %2 : vector<1x16x16x4xf32> to vector<16x16x4xf32>
    %c6 = arith.constant 6 : index
    %c6_6 = arith.constant 6 : index
    %c0_7 = arith.constant 0 : index
    %4 = vector.load %arg5[%c6, %c6_6, %c0_7] : memref<28x28x4xf32, #tpu.memory_space<vmem>>, vector<16x16x4xf32>
    tpu.vector_store %arg5[%c6, %c6_6, %c0_7], %3 {strides = array<i32>} : memref<28x28x4xf32, #tpu.memory_space<vmem>>, vector<16x16x4xf32>,
    %c0_8 = arith.constant 0 : index
    %c0_9 = arith.constant 0 : index
    %c0_10 = arith.constant 0 : index
    %5 = vector.load %arg5[%c0_8, %c0_9, %c0_10] : memref<28x28x4xf32, #tpu.memory_space<vmem>>, vector<28x28x4xf32>
    %6 = vector.extract_strided_slice %5 {offsets = [0, 0, 0], sizes = [27, 28, 4], strides = [1, 1, 1]} : vector<28x28x4xf32> to vector<27x28x4xf32>
    %7 = vector.extract_strided_slice %5 {offsets = [1, 0, 0], sizes = [27, 28, 4], strides = [1, 1, 1]} : vector<28x28x4xf32> to vector<27x28x4xf32>
    %8 = arith.maximumf %6, %7 : vector<27x28x4xf32>
    %9 = vector.extract_strided_slice %8 {offsets = [0, 0, 0], sizes = [25, 28, 4], strides = [1, 1, 1]} : vector<27x28x4xf32> to vector<25x28x4xf32>
    %10 = vector.extract_strided_slice %8 {offsets = [2, 0, 0], sizes = [25, 28, 4], strides = [1, 1, 1]} : vector<27x28x4xf32> to vector<25x28x4xf32>
    %11 = arith.maximumf %9, %10 : vector<25x28x4xf32>
    %12 = vector.extract_strided_slice %11 {offsets = [0, 0, 0], sizes = [24, 28, 4], strides = [1, 1, 1]} : vector<25x28x4xf32> to vector<24x28x4xf32>
    %13 = vector.extract_strided_slice %5 {offsets = [4, 0, 0], sizes = [24, 28, 4], strides = [1, 1, 1]} : vector<28x28x4xf32> to vector<24x28x4xf32>
    %14 = arith.maximumf %12, %13 : vector<24x28x4xf32>
    %15 = vector.extract_strided_slice %14 {offsets = [0, 0, 0], sizes = [24, 27, 4], strides = [1, 1, 1]} : vector<24x28x4xf32> to vector<24x27x4xf32>
    %16 = vector.extract_strided_slice %14 {offsets = [0, 1, 0], sizes = [24, 27, 4], strides = [1, 1, 1]} : vector<24x28x4xf32> to vector<24x27x4xf32>
    %17 = arith.maximumf %15, %16 : vector<24x27x4xf32>
    %18 = vector.extract_strided_slice %17 {offsets = [0, 0, 0], sizes = [24, 25, 4], strides = [1, 1, 1]} : vector<24x27x4xf32> to vector<24x25x4xf32>
    %19 = vector.extract_strided_slice %17 {offsets = [0, 2, 0], sizes = [24, 25, 4], strides = [1, 1, 1]} : vector<24x27x4xf32> to vector<24x25x4xf32>
    %20 = arith.maximumf %18, %19 : vector<24x25x4xf32>
    %21 = vector.extract_strided_slice %20 {offsets = [0, 0, 0], sizes = [24, 24, 4], strides = [1, 1, 1]} : vector<24x25x4xf32> to vector<24x24x4xf32>
    %22 = vector.extract_strided_slice %14 {offsets = [0, 4, 0], sizes = [24, 24, 4], strides = [1, 1, 1]} : vector<24x28x4xf32> to vector<24x24x4xf32>
    %23 = arith.maximumf %21, %22 : vector<24x24x4xf32>
    %24 = vector.extract_strided_slice %23 {offsets = [0, 0, 0], sizes = [23, 24, 4], strides = [1, 1, 1]} : vector<24x24x4xf32> to vector<23x24x4xf32>
    %25 = vector.extract_strided_slice %23 {offsets = [1, 0, 0], sizes = [23, 24, 4], strides = [1, 1, 1]} : vector<24x24x4xf32> to vector<23x24x4xf32>
    %26 = arith.maximumf %24, %25 : vector<23x24x4xf32>
    %27 = vector.extract_strided_slice %26 {offsets = [0, 0, 0], sizes = [21, 24, 4], strides = [1, 1, 1]} : vector<23x24x4xf32> to vector<21x24x4xf32>
    %28 = vector.extract_strided_slice %26 {offsets = [2, 0, 0], sizes = [21, 24, 4], strides = [1, 1, 1]} : vector<23x24x4xf32> to vector<21x24x4xf32>
    %29 = arith.maximumf %27, %28 : vector<21x24x4xf32>
    %30 = vector.extract_strided_slice %29 {offsets = [0, 0, 0], sizes = [20, 24, 4], strides = [1, 1, 1]} : vector<21x24x4xf32> to vector<20x24x4xf32>
    %31 = vector.extract_strided_slice %23 {offsets = [4, 0, 0], sizes = [20, 24, 4], strides = [1, 1, 1]} : vector<24x24x4xf32> to vector<20x24x4xf32>
    %32 = arith.maximumf %30, %31 : vector<20x24x4xf32>
    %33 = vector.extract_strided_slice %32 {offsets = [0, 0, 0], sizes = [20, 23, 4], strides = [1, 1, 1]} : vector<20x24x4xf32> to vector<20x23x4xf32>
    %34 = vector.extract_strided_slice %32 {offsets = [0, 1, 0], sizes = [20, 23, 4], strides = [1, 1, 1]} : vector<20x24x4xf32> to vector<20x23x4xf32>
    %35 = arith.maximumf %33, %34 : vector<20x23x4xf32>
    %36 = vector.extract_strided_slice %35 {offsets = [0, 0, 0], sizes = [20, 21, 4], strides = [1, 1, 1]} : vector<20x23x4xf32> to vector<20x21x4xf32>
    %37 = vector.extract_strided_slice %35 {offsets = [0, 2, 0], sizes = [20, 21, 4], strides = [1, 1, 1]} : vector<20x23x4xf32> to vector<20x21x4xf32>
    %38 = arith.maximumf %36, %37 : vector<20x21x4xf32>
    %39 = vector.extract_strided_slice %38 {offsets = [0, 0, 0], sizes = [20, 20, 4], strides = [1, 1, 1]} : vector<20x21x4xf32> to vector<20x20x4xf32>
    %40 = vector.extract_strided_slice %32 {offsets = [0, 4, 0], sizes = [20, 20, 4], strides = [1, 1, 1]} : vector<20x24x4xf32> to vector<20x20x4xf32>
    %41 = arith.maximumf %39, %40 : vector<20x20x4xf32>
    %42 = vector.extract_strided_slice %41 {offsets = [0, 0, 0], sizes = [19, 20, 4], strides = [1, 1, 1]} : vector<20x20x4xf32> to vector<19x20x4xf32>
    %43 = vector.extract_strided_slice %41 {offsets = [1, 0, 0], sizes = [19, 20, 4], strides = [1, 1, 1]} : vector<20x20x4xf32> to vector<19x20x4xf32>
    %44 = arith.maximumf %42, %43 : vector<19x20x4xf32>
    %45 = vector.extract_strided_slice %44 {offsets = [0, 0, 0], sizes = [17, 20, 4], strides = [1, 1, 1]} : vector<19x20x4xf32> to vector<17x20x4xf32>
    %46 = vector.extract_strided_slice %44 {offsets = [2, 0, 0], sizes = [17, 20, 4], strides = [1, 1, 1]} : vector<19x20x4xf32> to vector<17x20x4xf32>
    %47 = arith.maximumf %45, %46 : vector<17x20x4xf32>
    %48 = vector.extract_strided_slice %47 {offsets = [0, 0, 0], sizes = [16, 20, 4], strides = [1, 1, 1]} : vector<17x20x4xf32> to vector<16x20x4xf32>
    %49 = vector.extract_strided_slice %41 {offsets = [4, 0, 0], sizes = [16, 20, 4], strides = [1, 1, 1]} : vector<20x20x4xf32> to vector<16x20x4xf32>
    %50 = arith.maximumf %48, %49 : vector<16x20x4xf32>
    %51 = vector.extract_strided_slice %50 {offsets = [0, 0, 0], sizes = [16, 19, 4], strides = [1, 1, 1]} : vector<16x20x4xf32> to vector<16x19x4xf32>
    %52 = vector.extract_strided_slice %50 {offsets = [0, 1, 0], sizes = [16, 19, 4], strides = [1, 1, 1]} : vector<16x20x4xf32> to vector<16x19x4xf32>
    %53 = arith.maximumf %51, %52 : vector<16x19x4xf32>
    %54 = vector.extract_strided_slice %53 {offsets = [0, 0, 0], sizes = [16, 17, 4], strides = [1, 1, 1]} : vector<16x19x4xf32> to vector<16x17x4xf32>
    %55 = vector.extract_strided_slice %53 {offsets = [0, 2, 0], sizes = [16, 17, 4], strides = [1, 1, 1]} : vector<16x19x4xf32> to vector<16x17x4xf32>
    %56 = arith.maximumf %54, %55 : vector<16x17x4xf32>
    %57 = vector.extract_strided_slice %56 {offsets = [0, 0, 0], sizes = [16, 16, 4], strides = [1, 1, 1]} : vector<16x17x4xf32> to vector<16x16x4xf32>
    %58 = vector.extract_strided_slice %50 {offsets = [0, 4, 0], sizes = [16, 16, 4], strides = [1, 1, 1]} : vector<16x20x4xf32> to vector<16x16x4xf32>
    %59 = arith.maximumf %57, %58 : vector<16x16x4xf32>
    %c0_11 = arith.constant 0 : index
    %c0_12 = arith.constant 0 : index
    %c0_13 = arith.constant 0 : index
    %c0_14 = arith.constant 0 : index
    %60 = vector.load %arg1[%c0_11, %c0_12, %c0_13, %c0_14] : memref<1x16x16x4xf32, #tpu.memory_space<vmem>>, vector<1x16x16x4xf32>
    %61 = vector.shape_cast %60 : vector<1x16x16x4xf32> to vector<16x16x4xf32>
    %62 = vector.extract_strided_slice %23 {offsets = [4, 4, 0], sizes = [16, 16, 4], strides = [1, 1, 1]} : vector<24x24x4xf32> to vector<16x16x4xf32>
    %63 = vector.extract_strided_slice %41 {offsets = [2, 2, 0], sizes = [16, 16, 4], strides = [1, 1, 1]} : vector<20x20x4xf32> to vector<16x16x4xf32>
    %64 = vector.shape_cast %61 : vector<16x16x4xf32> to vector<256x4xf32>
    %c0_15 = arith.constant 0 : index
    %c0_16 = arith.constant 0 : index
    %c0_17 = arith.constant 0 : index
    %65 = vector.load %arg2[%c0_15, %c0_16, %c0_17] : memref<4x4x4xf32, #tpu.memory_space<vmem>>, vector<1x4x4xf32>
    %66 = vector.shape_cast %65 : vector<1x4x4xf32> to vector<4x4xf32>
    %cst_18 = arith.constant dense<0.000000e+00> : vector<256x4xf32>
    %67 = tpu.matmul %64, %66, %cst_18 {dimension_numbers = #tpu.dot_dimension_numbers<[1], [0], [0], [1], [0, 0, 1, 1], [], []>} : vector<256x4xf32>, vector<4x4xf32>, vector<256x4xf32> -> vector<256x4xf32>
    %68 = vector.shape_cast %62 : vector<16x16x4xf32> to vector<256x4xf32>
    %c1 = arith.constant 1 : index
    %c0_19 = arith.constant 0 : index
    %c0_20 = arith.constant 0 : index
    %69 = vector.load %arg2[%c1, %c0_19, %c0_20] : memref<4x4x4xf32, #tpu.memory_space<vmem>>, vector<1x4x4xf32>
    %70 = vector.shape_cast %69 : vector<1x4x4xf32> to vector<4x4xf32>
    %cst_21 = arith.constant dense<0.000000e+00> : vector<256x4xf32>
    %71 = tpu.matmul %68, %70, %cst_21 {dimension_numbers = #tpu.dot_dimension_numbers<[1], [0], [0], [1], [0, 0, 1, 1], [], []>} : vector<256x4xf32>, vector<4x4xf32>, vector<256x4xf32> -> vector<256x4xf32>
    %72 = arith.addf %67, %71 : vector<256x4xf32>
    %73 = vector.shape_cast %63 : vector<16x16x4xf32> to vector<256x4xf32>
    %c2 = arith.constant 2 : index
    %c0_22 = arith.constant 0 : index
    %c0_23 = arith.constant 0 : index
    %74 = vector.load %arg2[%c2, %c0_22, %c0_23] : memref<4x4x4xf32, #tpu.memory_space<vmem>>, vector<1x4x4xf32>
    %75 = vector.shape_cast %74 : vector<1x4x4xf32> to vector<4x4xf32>
    %cst_24 = arith.constant dense<0.000000e+00> : vector<256x4xf32>
    %76 = tpu.matmul %73, %75, %cst_24 {dimension_numbers = #tpu.dot_dimension_numbers<[1], [0], [0], [1], [0, 0, 1, 1], [], []>} : vector<256x4xf32>, vector<4x4xf32>, vector<256x4xf32> -> vector<256x4xf32>
    %77 = arith.addf %72, %76 : vector<256x4xf32>
    %78 = vector.shape_cast %59 : vector<16x16x4xf32> to vector<256x4xf32>
    %c3 = arith.constant 3 : index
    %c0_25 = arith.constant 0 : index
    %c0_26 = arith.constant 0 : index
    %79 = vector.load %arg2[%c3, %c0_25, %c0_26] : memref<4x4x4xf32, #tpu.memory_space<vmem>>, vector<1x4x4xf32>
    %80 = vector.shape_cast %79 : vector<1x4x4xf32> to vector<4x4xf32>
    %cst_27 = arith.constant dense<0.000000e+00> : vector<256x4xf32>
    %81 = tpu.matmul %78, %80, %cst_27 {dimension_numbers = #tpu.dot_dimension_numbers<[1], [0], [0], [1], [0, 0, 1, 1], [], []>} : vector<256x4xf32>, vector<4x4xf32>, vector<256x4xf32> -> vector<256x4xf32>
    %82 = arith.addf %77, %81 : vector<256x4xf32>
    %c0_28 = arith.constant 0 : index
    %c0_29 = arith.constant 0 : index
    %83 = vector.load %arg3[%c0_28, %c0_29] : memref<1x4xf32, #tpu.memory_space<vmem>>, vector<1x4xf32>
    %84 = vector.broadcast %83 : vector<1x4xf32> to vector<256x4xf32>
    %85 = arith.addf %82, %84 : vector<256x4xf32>
    %cst_30 = arith.constant 0.000000e+00 : f32
    %86 = vector.broadcast %cst_30 : f32 to vector<256x4xf32>
    %87 = arith.cmpf ogt, %85, %86 : vector<256x4xf32>
    %cst_31 = arith.constant 2.000000e-01 : f32
    %88 = vector.broadcast %cst_31 : f32 to vector<256x4xf32>
    %89 = arith.mulf %88, %85 : vector<256x4xf32>
    %90 = arith.select %87, %85, %89 : vector<256x4xi1>, vector<256x4xf32>
    %91 = vector.shape_cast %90 : vector<256x4xf32> to vector<16x16x4xf32>
    %c0_32 = arith.constant 0 : index
    %c0_33 = arith.constant 0 : index
    %c0_34 = arith.constant 0 : index
    %c0_35 = arith.constant 0 : index
    %92 = vector.load %arg4[%c0_32, %c0_33, %c0_34, %c0_35] : memref<1x16x16x4xf32, #tpu.memory_space<vmem>>, vector<1x16x16x4xf32>
    %93 = vector.shape_cast %92 : vector<1x16x16x4xf32> to vector<16x16x4xf32>
    %94 = vector.shape_cast %91 : vector<16x16x4xf32> to vector<1x16x16x4xf32>
    tpu.vector_store %arg4[%c0_32, %c0_33, %c0_34, %c0_35], %94 {strides = array<i32>} : memref<1x16x16x4xf32, #tpu.memory_space<vmem>>, vector<1x16x16x4xf32>,
    return
  }
  func.func @transform_0(%arg0: i32) -> (i32, i32, i32, i32) {
    %c0_i32 = arith.constant 0 : i32
    %c0_i32_0 = arith.constant 0 : i32
    %c0_i32_1 = arith.constant 0 : i32
    %c0_i32_2 = arith.constant 0 : i32
    return %arg0, %c0_i32, %c0_i32_0, %c0_i32_1 : i32, i32, i32, i32
  }
  func.func @transform_1(%arg0: i32) -> (i32, i32, i32) {
    %c0_i32 = arith.constant 0 : i32
    %c0_i32_0 = arith.constant 0 : i32
    %c0_i32_1 = arith.constant 0 : i32
    %c0_i32_2 = arith.constant 0 : i32
    return %c0_i32, %c0_i32_0, %c0_i32_1 : i32, i32, i32
  }
  func.func @transform_2(%arg0: i32) -> (i32, i32) {
    %c0_i32 = arith.constant 0 : i32
    %c0_i32_0 = arith.constant 0 : i32
    %c0_i32_1 = arith.constant 0 : i32
    return %c0_i32, %c0_i32_0 : i32, i32
  }
  func.func @transform_3(%arg0: i32) -> (i32, i32, i32, i32) {
    %c0_i32 = arith.constant 0 : i32
    %c0_i32_0 = arith.constant 0 : i32
    %c0_i32_1 = arith.constant 0 : i32
    %c0_i32_2 = arith.constant 0 : i32
    return %arg0, %c0_i32, %c0_i32_0, %c0_i32_1 : i32, i32, i32, i32
  }
}

</mosaic_0001>

<llo_original>
// kernel: tpu_custom_call.1
$region0: #{tpu_custom_call.1}
  #allocation0 [shape = 'u32[]', space=smem, size = 0x4, offset = 0x4, fixed_abs, tag = 'smem constant byte address 0x4 - core index']
  #allocation1 [shape = 'u32[144,128]{1,0:T(1,128)}', space=vmem, size = 0x12000, scoped, tag = 'internal scratch']
  #allocation2 [shape = 'f32[28,28,4]{2,1,0:T(8,128)}', space=vmem, size = 0x70000, scoped, tag = 'scratch operand']
  %s0 = inlined_call_operand.vmem [shape: f32[2,16,16,4], index: 0, kind: input, shape index: {}]
  %s1 = inlined_call_operand.vmem [shape: f32[4,4,4], index: 1, kind: input, shape index: {}]
  %s2 = inlined_call_operand.vmem [shape: f32[1,4], index: 2, kind: input, shape index: {}]
  %s3 = inlined_call_operand.vmem [shape: f32[2,16,16,4], index: 3, kind: output, shape index: {}]
  %s4 = sld [smem:[#allocation0]]
  $region45: #{tpu_custom_call.1} parent=0
    _
  %s6 = ssub.s32 1, %s4
  %s7 = scalar_select 0, %s6, %s4
  loop: start=0, step=1, limit=4
  $region2: #{tpu_custom_call.1} parent=0 // loop_pre_header
    _
  $region3: #{tpu_custom_call.1} parent=0 // loop_header
    %s9 = sphi 0, %s13
    %p10 = scmp.ge.s32.totalorder %s9, 4
    %s19 = sphi 0, %s21
    %s22 = sphi 0, %s19
    %s23 = sphi 0, %s22
    %s39 = sphi 0, %s23
    %s43 = sphi 0, %s43
    %s45 = sphi 0, %s43
    %s46 = sphi 0, %s45
    %s60 = sphi 0, %s46
    %s64 = sphi 0, %s64
    %s66 = sphi 0, %s64
    %s67 = sphi 0, %s66
    %s81 = sphi 0, %s67
    %s87 = sphi 0, %s89
    %s90 = sphi 0, %s87
    %s91 = sphi 0, %s90
    %s107 = sphi 0, %s91
  $region4: #{tpu_custom_call.1} parent=0 // loop_header_branch
    %12 = sbr.rel (%p10) target = $region8
  $region5: #{tpu_custom_call.1} parent=0 // loop_body
    %s14 = ssub.s32 %s9, 1
    %s15 = ssub.s32 %s9, 2
    %s16 = sadd.s32 %s9, 1
    %s17 = ssub.s32 %s9, %s16
    %p18 = scmp.eq.s32.totalorder %s17, 0
    %s20 = sadd.s32 %s19, 1
    %s21 = scalar_select %p18, %s19, %s20
    %p24 = pneg %p18
    %p25 = scmp.eq.s32.totalorder %s9, 1
    %p26 = por %p24, %p25
    %p27 = scmp.ne.s32.totalorder %s19, %s22
    %p28 = scmp.eq.s32.totalorder %s9, 0
    %p29 = por %p27, %p28
    %p30 = scmp.ne.s32.totalorder %s19, %s22
    %p31 = scmp.eq.s32.totalorder %s14, 1
    %p32 = por %p30, %p31
    %p33 = scmp.ne.s32.totalorder %s22, %s23
    %p34 = scmp.eq.s32.totalorder %s14, 0
    %p35 = por %p33, %p34
    %p36 = scmp.ne.s32.totalorder %s22, %s23
    %p37 = scmp.eq.s32.totalorder %s15, 1
    %p38 = por %p36, %p37
    %p40 = scmp.ne.s32.totalorder %s23, %s39
    %p41 = scmp.eq.s32.totalorder %s15, 0
    %p42 = por %p40, %p41
    %s44 = sadd.s32 %s43, 1
    %p47 = scmp.eq.s32.totalorder %s9, 1
    %p48 = scmp.ne.s32.totalorder %s43, %s45
    %p49 = scmp.eq.s32.totalorder %s9, 0
    %p50 = por %p48, %p49
    %p51 = scmp.ne.s32.totalorder %s43, %s45
    %p52 = scmp.eq.s32.totalorder %s14, 1
    %p53 = por %p51, %p52
    %p54 = scmp.ne.s32.totalorder %s45, %s46
    %p55 = scmp.eq.s32.totalorder %s14, 0
    %p56 = por %p54, %p55
    %p57 = scmp.ne.s32.totalorder %s45, %s46
    %p58 = scmp.eq.s32.totalorder %s15, 1
    %p59 = por %p57, %p58
    %p61 = scmp.ne.s32.totalorder %s46, %s60
    %p62 = scmp.eq.s32.totalorder %s15, 0
    %p63 = por %p61, %p62
    %s65 = sadd.s32 %s64, 1
    %p68 = scmp.eq.s32.totalorder %s9, 1
    %p69 = scmp.ne.s32.totalorder %s64, %s66
    %p70 = scmp.eq.s32.totalorder %s9, 0
    %p71 = por %p69, %p70
    %p72 = scmp.ne.s32.totalorder %s64, %s66
    %p73 = scmp.eq.s32.totalorder %s14, 1
    %p74 = por %p72, %p73
    %p75 = scmp.ne.s32.totalorder %s66, %s67
    %p76 = scmp.eq.s32.totalorder %s14, 0
    %p77 = por %p75, %p76
    %p78 = scmp.ne.s32.totalorder %s66, %s67
    %p79 = scmp.eq.s32.totalorder %s15, 1
    %p80 = por %p78, %p79
    %p82 = scmp.ne.s32.totalorder %s67, %s81
    %p83 = scmp.eq.s32.totalorder %s15, 0
    %p84 = por %p82, %p83
    %s85 = ssub.s32 %s9, %s16
    %p86 = scmp.eq.s32.totalorder %s85, 0
    %s88 = sadd.s32 %s87, 1
    %s89 = scalar_select %p86, %s87, %s88
    %p92 = pneg %p86
    %p93 = scmp.eq.s32.totalorder %s9, 1
    %p94 = por %p92, %p93
    %p95 = scmp.ne.s32.totalorder %s87, %s90
    %p96 = scmp.eq.s32.totalorder %s9, 0
    %p97 = por %p95, %p96
    %p98 = scmp.ne.s32.totalorder %s87, %s90
    %p99 = scmp.eq.s32.totalorder %s14, 1
    %p100 = por %p98, %p99
    %p101 = scmp.ne.s32.totalorder %s90, %s91
    %p102 = scmp.eq.s32.totalorder %s14, 0
    %p103 = por %p101, %p102
    %p104 = scmp.ne.s32.totalorder %s90, %s91
    %p105 = scmp.eq.s32.totalorder %s15, 1
    %p106 = por %p104, %p105
    %p108 = scmp.ne.s32.totalorder %s91, %s107
    %p109 = scmp.eq.s32.totalorder %s15, 0
    %p110 = por %p108, %p109
    %p111 = scmp.le.s32.totalorder 1, %s9
    %p112 = scmp.lt.s32.totalorder %s9, 3
    %p113 = pnand %p111, %p112
    %p114 = pneg %p113
    // Predicated region
    $region9: #{tpu_custom_call.1} parent=5 // pred_check
      _
    $region10: #{tpu_custom_call.1} parent=5 // pred_check_branch
      %116 = sbr.rel (%p113) target = $region12
    $region11: #{tpu_custom_call.1} parent=5 // pred_region
      %s117 = ssub.s32 %s9, 1
      // Predicated region
      $region13: #{tpu_custom_call.1} parent=11 // pred_check
        %p118 = pneg %p56
      $region14: #{tpu_custom_call.1} parent=11 // pred_check_branch
        %120 = sbr.rel (%p118) target = $region16
      $region15: #{tpu_custom_call.1} parent=11 // pred_region
        _
      $region16: #{tpu_custom_call.1} parent=11 // pred_fallthru
        _
      // Predicated region
      $region17: #{tpu_custom_call.1} parent=11 // pred_check
        %p121 = pneg %p77
      $region18: #{tpu_custom_call.1} parent=11 // pred_check_branch
        %123 = sbr.rel (%p121) target = $region20
      $region19: #{tpu_custom_call.1} parent=11 // pred_region
        _
      $region20: #{tpu_custom_call.1} parent=11 // pred_fallthru
        _
    $region12: #{tpu_custom_call.1} parent=5 // pred_fallthru
      _
    %p124 = scmp.lt.s32.totalorder %s9, 2
    // Predicated region
    $region21: #{tpu_custom_call.1} parent=5 // pred_check
      %p125 = pneg %p124
    $region22: #{tpu_custom_call.1} parent=5 // pred_check_branch
      %127 = sbr.rel (%p125) target = $region24
    $region23: #{tpu_custom_call.1} parent=5 // pred_region
      // Predicated region
      $region25: #{tpu_custom_call.1} parent=23 // pred_check
        %p128 = pneg %p29
      $region26: #{tpu_custom_call.1} parent=23 // pred_check_branch
        %130 = sbr.rel (%p128) target = $region28
      $region27: #{tpu_custom_call.1} parent=23 // pred_region
        %p131 = scmp.lt.s32.totalorder %s9, 1
        %s132 = scalar_select %p131, %s9, 1
        %s133 = smul.addr %s132, 32
        %s134 = smul.addr %s133, 8
        %s135 = scalar_lea.vmem %s0, %s134
      $region28: #{tpu_custom_call.1} parent=23 // pred_fallthru
        _
    $region24: #{tpu_custom_call.1} parent=5 // pred_fallthru
      _
    %p136 = scmp.le.s32.totalorder 1, %s9
    %p137 = scmp.lt.s32.totalorder %s9, 3
    %p138 = pnand %p136, %p137
    %p139 = pneg %p138
    // Predicated region
    $region29: #{tpu_custom_call.1} parent=5 // pred_check
      _
    $region30: #{tpu_custom_call.1} parent=5 // pred_check_branch
      %141 = sbr.rel (%p138) target = $region32
    $region31: #{tpu_custom_call.1} parent=5 // pred_region
      %s142 = ssub.s32 %s9, 1
      %p143 = scmp.lt.s32.totalorder %s14, 1
      %s144 = scalar_select %p143, %s14, 1
      %s145 = smul.addr %s144, 32
      %s146 = smul.addr %s145, 8
      %s147 = scalar_lea.vmem %s0, %s146
      %p148 = pneg %p35
      %p149 = pneg %p32
      %p150 = pneg %p56
      %p151 = pneg %p53
      %p152 = pneg %p77
      %p153 = pneg %p74
      %p154 = pneg %p103
      %p155 = pneg %p100
      %p156 = scmp.lt.s32.totalorder %s14, 1
      %s157 = scalar_select %p156, %s14, 1
      %s158 = smul.addr %s157, 32
      %s159 = smul.addr %s158, 8
      %s160 = scalar_lea.vmem %s3, %s159
      %p161 = scmp.lt.s32.totalorder %s14, 1
      %s162 = scalar_select %p161, %s14, 1
      %s163 = smul.addr %s162, 32
      %s164 = smul.addr %s163, 8
      %s165 = scalar_lea.vmem %s0, %s164
      %p166 = scmp.lt.s32.totalorder %s14, 1
      %s167 = scalar_select %p166, %s14, 1
      %s168 = smul.addr %s167, 32
      %s169 = smul.addr %s168, 8
      %s170 = scalar_lea.vmem %s3, %s169
      %vm171 = vcmask 31744
      %172 = vst.msk [vmem:[#allocation2] sm:$0xff] %vm171, -inf
      %173 = vst.msk [vmem:[#allocation2 + $0x8] sm:$0xff] %vm171, -inf
      %174 = vst.msk [vmem:[#allocation2 + $0x10] sm:$0xff] %vm171, -inf
      %vm175 = vcmask 27648
      %176 = vst.msk [vmem:[#allocation2 + $0x18] sm:$0xf] %vm175, -inf
      %177 = vst.msk [vmem:[#allocation2 + $0x20] sm:$0xff] %vm171, -inf
      %178 = vst.msk [vmem:[#allocation2 + $0x28] sm:$0xff] %vm171, -inf
      %179 = vst.msk [vmem:[#allocation2 + $0x30] sm:$0xff] %vm171, -inf
      %180 = vst.msk [vmem:[#allocation2 + $0x38] sm:$0xf] %vm175, -inf
      %181 = vst.msk [vmem:[#allocation2 + $0x40] sm:$0xff] %vm171, -inf
      %182 = vst.msk [vmem:[#allocation2 + $0x48] sm:$0xff] %vm171, -inf
      %183 = vst.msk [vmem:[#allocation2 + $0x50] sm:$0xff] %vm171, -inf
      %184 = vst.msk [vmem:[#allocation2 + $0x58] sm:$0xf] %vm175, -inf
      %185 = vst.msk [vmem:[#allocation2 + $0x60] sm:$0xff] %vm171, -inf
      %186 = vst.msk [vmem:[#allocation2 + $0x68] sm:$0xff] %vm171, -inf
      %187 = vst.msk [vmem:[#allocation2 + $0x70] sm:$0xff] %vm171, -inf
      %188 = vst.msk [vmem:[#allocation2 + $0x78] sm:$0xf] %vm175, -inf
      %189 = vst.msk [vmem:[#allocation2 + $0x80] sm:$0xff] %vm171, -inf
      %190 = vst.msk [vmem:[#allocation2 + $0x88] sm:$0xff] %vm171, -inf
      %191 = vst.msk [vmem:[#allocation2 + $0x90] sm:$0xff] %vm171, -inf
      %192 = vst.msk [vmem:[#allocation2 + $0x98] sm:$0xf] %vm175, -inf
      %193 = vst.msk [vmem:[#allocation2 + $0xa0] sm:$0xff] %vm171, -inf
      %194 = vst.msk [vmem:[#allocation2 + $0xa8] sm:$0xff] %vm171, -inf
      %195 = vst.msk [vmem:[#allocation2 + $0xb0] sm:$0xff] %vm171, -inf
      %196 = vst.msk [vmem:[#allocation2 + $0xb8] sm:$0xf] %vm175, -inf
      %197 = vst.msk [vmem:[#allocation2 + $0xc0] sm:$0xff] %vm171, -inf
      %198 = vst.msk [vmem:[#allocation2 + $0xc8] sm:$0xff] %vm171, -inf
      %199 = vst.msk [vmem:[#allocation2 + $0xd0] sm:$0xff] %vm171, -inf
      %200 = vst.msk [vmem:[#allocation2 + $0xd8] sm:$0xf] %vm175, -inf
      %201 = vst.msk [vmem:[#allocation2 + $0xe0] sm:$0xff] %vm171, -inf
      %202 = vst.msk [vmem:[#allocation2 + $0xe8] sm:$0xff] %vm171, -inf
      %203 = vst.msk [vmem:[#allocation2 + $0xf0] sm:$0xff] %vm171, -inf
      %204 = vst.msk [vmem:[#allocation2 + $0xf8] sm:$0xf] %vm175, -inf
      %205 = vst.msk [vmem:[#allocation2 + $0x100] sm:$0xff] %vm171, -inf
      %206 = vst.msk [vmem:[#allocation2 + $0x108] sm:$0xff] %vm171, -inf
      %207 = vst.msk [vmem:[#allocation2 + $0x110] sm:$0xff] %vm171, -inf
      %208 = vst.msk [vmem:[#allocation2 + $0x118] sm:$0xf] %vm175, -inf
      %209 = vst.msk [vmem:[#allocation2 + $0x120] sm:$0xff] %vm171, -inf
      %210 = vst.msk [vmem:[#allocation2 + $0x128] sm:$0xff] %vm171, -inf
      %211 = vst.msk [vmem:[#allocation2 + $0x130] sm:$0xff] %vm171, -inf
      %212 = vst.msk [vmem:[#allocation2 + $0x138] sm:$0xf] %vm175, -inf
      %213 = vst.msk [vmem:[#allocation2 + $0x140] sm:$0xff] %vm171, -inf
      %214 = vst.msk [vmem:[#allocation2 + $0x148] sm:$0xff] %vm171, -inf
      %215 = vst.msk [vmem:[#allocation2 + $0x150] sm:$0xff] %vm171, -inf
      %216 = vst.msk [vmem:[#allocation2 + $0x158] sm:$0xf] %vm175, -inf
      %217 = vst.msk [vmem:[#allocation2 + $0x160] sm:$0xff] %vm171, -inf
      %218 = vst.msk [vmem:[#allocation2 + $0x168] sm:$0xff] %vm171, -inf
      %219 = vst.msk [vmem:[#allocation2 + $0x170] sm:$0xff] %vm171, -inf
      %220 = vst.msk [vmem:[#allocation2 + $0x178] sm:$0xf] %vm175, -inf
      %221 = vst.msk [vmem:[#allocation2 + $0x180] sm:$0xff] %vm171, -inf
      %222 = vst.msk [vmem:[#allocation2 + $0x188] sm:$0xff] %vm171, -inf
      %223 = vst.msk [vmem:[#allocation2 + $0x190] sm:$0xff] %vm171, -inf
      %224 = vst.msk [vmem:[#allocation2 + $0x198] sm:$0xf] %vm175, -inf
      %225 = vst.msk [vmem:[#allocation2 + $0x1a0] sm:$0xff] %vm171, -inf
      %226 = vst.msk [vmem:[#allocation2 + $0x1a8] sm:$0xff] %vm171, -inf
      %227 = vst.msk [vmem:[#allocation2 + $0x1b0] sm:$0xff] %vm171, -inf
      %228 = vst.msk [vmem:[#allocation2 + $0x1b8] sm:$0xf] %vm175, -inf
      %229 = vst.msk [vmem:[#allocation2 + $0x1c0] sm:$0xff] %vm171, -inf
      %230 = vst.msk [vmem:[#allocation2 + $0x1c8] sm:$0xff] %vm171, -inf
      %231 = vst.msk [vmem:[#allocation2 + $0x1d0] sm:$0xff] %vm171, -inf
      %232 = vst.msk [vmem:[#allocation2 + $0x1d8] sm:$0xf] %vm175, -inf
      %233 = vst.msk [vmem:[#allocation2 + $0x1e0] sm:$0xff] %vm171, -inf
      %234 = vst.msk [vmem:[#allocation2 + $0x1e8] sm:$0xff] %vm171, -inf
      %235 = vst.msk [vmem:[#allocation2 + $0x1f0] sm:$0xff] %vm171, -inf
      %236 = vst.msk [vmem:[#allocation2 + $0x1f8] sm:$0xf] %vm175, -inf
      %237 = vst.msk [vmem:[#allocation2 + $0x200] sm:$0xff] %vm171, -inf
      %238 = vst.msk [vmem:[#allocation2 + $0x208] sm:$0xff] %vm171, -inf
      %239 = vst.msk [vmem:[#allocation2 + $0x210] sm:$0xff] %vm171, -inf
      %240 = vst.msk [vmem:[#allocation2 + $0x218] sm:$0xf] %vm175, -inf
      %241 = vst.msk [vmem:[#allocation2 + $0x220] sm:$0xff] %vm171, -inf
      %242 = vst.msk [vmem:[#allocation2 + $0x228] sm:$0xff] %vm171, -inf
      %243 = vst.msk [vmem:[#allocation2 + $0x230] sm:$0xff] %vm171, -inf
      %244 = vst.msk [vmem:[#allocation2 + $0x238] sm:$0xf] %vm175, -inf
      %245 = vst.msk [vmem:[#allocation2 + $0x240] sm:$0xff] %vm171, -inf
      %246 = vst.msk [vmem:[#allocation2 + $0x248] sm:$0xff] %vm171, -inf
      %247 = vst.msk [vmem:[#allocation2 + $0x250] sm:$0xff] %vm171, -inf
      %248 = vst.msk [vmem:[#allocation2 + $0x258] sm:$0xf] %vm175, -inf
      %249 = vst.msk [vmem:[#allocation2 + $0x260] sm:$0xff] %vm171, -inf
      %250 = vst.msk [vmem:[#allocation2 + $0x268] sm:$0xff] %vm171, -inf
      %251 = vst.msk [vmem:[#allocation2 + $0x270] sm:$0xff] %vm171, -inf
      %252 = vst.msk [vmem:[#allocation2 + $0x278] sm:$0xf] %vm175, -inf
      %253 = vst.msk [vmem:[#allocation2 + $0x280] sm:$0xff] %vm171, -inf
      %254 = vst.msk [vmem:[#allocation2 + $0x288] sm:$0xff] %vm171, -inf
      %255 = vst.msk [vmem:[#allocation2 + $0x290] sm:$0xff] %vm171, -inf
      %256 = vst.msk [vmem:[#allocation2 + $0x298] sm:$0xf] %vm175, -inf
      %257 = vst.msk [vmem:[#allocation2 + $0x2a0] sm:$0xff] %vm171, -inf
      %258 = vst.msk [vmem:[#allocation2 + $0x2a8] sm:$0xff] %vm171, -inf
      %259 = vst.msk [vmem:[#allocation2 + $0x2b0] sm:$0xff] %vm171, -inf
      %260 = vst.msk [vmem:[#allocation2 + $0x2b8] sm:$0xf] %vm175, -inf
      %261 = vst.msk [vmem:[#allocation2 + $0x2c0] sm:$0xff] %vm171, -inf
      %262 = vst.msk [vmem:[#allocation2 + $0x2c8] sm:$0xff] %vm171, -inf
      %263 = vst.msk [vmem:[#allocation2 + $0x2d0] sm:$0xff] %vm171, -inf
      %264 = vst.msk [vmem:[#allocation2 + $0x2d8] sm:$0xf] %vm175, -inf
      %265 = vst.msk [vmem:[#allocation2 + $0x2e0] sm:$0xff] %vm171, -inf
      %266 = vst.msk [vmem:[#allocation2 + $0x2e8] sm:$0xff] %vm171, -inf
      %267 = vst.msk [vmem:[#allocation2 + $0x2f0] sm:$0xff] %vm171, -inf
      %268 = vst.msk [vmem:[#allocation2 + $0x2f8] sm:$0xf] %vm175, -inf
      %269 = vst.msk [vmem:[#allocation2 + $0x300] sm:$0xff] %vm171, -inf
      %270 = vst.msk [vmem:[#allocation2 + $0x308] sm:$0xff] %vm171, -inf
      %271 = vst.msk [vmem:[#allocation2 + $0x310] sm:$0xff] %vm171, -inf
      %272 = vst.msk [vmem:[#allocation2 + $0x318] sm:$0xf] %vm175, -inf
      %273 = vst.msk [vmem:[#allocation2 + $0x320] sm:$0xff] %vm171, -inf
      %274 = vst.msk [vmem:[#allocation2 + $0x328] sm:$0xff] %vm171, -inf
      %275 = vst.msk [vmem:[#allocation2 + $0x330] sm:$0xff] %vm171, -inf
      %276 = vst.msk [vmem:[#allocation2 + $0x338] sm:$0xf] %vm175, -inf
      %277 = vst.msk [vmem:[#allocation2 + $0x340] sm:$0xff] %vm171, -inf
      %278 = vst.msk [vmem:[#allocation2 + $0x348] sm:$0xff] %vm171, -inf
      %279 = vst.msk [vmem:[#allocation2 + $0x350] sm:$0xff] %vm171, -inf
      %280 = vst.msk [vmem:[#allocation2 + $0x358] sm:$0xf] %vm175, -inf
      %281 = vst.msk [vmem:[#allocation2 + $0x360] sm:$0xff] %vm171, -inf
      %282 = vst.msk [vmem:[#allocation2 + $0x368] sm:$0xff] %vm171, -inf
      %283 = vst.msk [vmem:[#allocation2 + $0x370] sm:$0xff] %vm171, -inf
      %284 = vst.msk [vmem:[#allocation2 + $0x378] sm:$0xf] %vm175, -inf
      %v285 = vld [vmem:[%s165] sm:$0xff]
      %v286 = vld [vmem:[%s165 + $0x8] sm:$0xff]
      %v287 = vld [vmem:[%s165 + $0x10] sm:$0xff]
      %v288 = vld [vmem:[%s165 + $0x18] sm:$0xff]
      %v289 = vld [vmem:[%s165 + $0x20] sm:$0xff]
      %v290 = vld [vmem:[%s165 + $0x28] sm:$0xff]
      %v291 = vld [vmem:[%s165 + $0x30] sm:$0xff]
      %v292 = vld [vmem:[%s165 + $0x38] sm:$0xff]
      %v293 = vld [vmem:[%s165 + $0x40] sm:$0xff]
      %v294 = vld [vmem:[%s165 + $0x48] sm:$0xff]
      %v295 = vld [vmem:[%s165 + $0x50] sm:$0xff]
      %v296 = vld [vmem:[%s165 + $0x58] sm:$0xff]
      %v297 = vld [vmem:[%s165 + $0x60] sm:$0xff]
      %v298 = vld [vmem:[%s165 + $0x68] sm:$0xff]
      %v299 = vld [vmem:[%s165 + $0x70] sm:$0xff]
      %v300 = vld [vmem:[%s165 + $0x78] sm:$0xff]
      %v301 = vld [vmem:[%s165 + $0x80] sm:$0xff]
      %v302 = vld [vmem:[%s165 + $0x88] sm:$0xff]
      %v303 = vld [vmem:[%s165 + $0x90] sm:$0xff]
      %v304 = vld [vmem:[%s165 + $0x98] sm:$0xff]
      %v305 = vld [vmem:[%s165 + $0xa0] sm:$0xff]
      %v306 = vld [vmem:[%s165 + $0xa8] sm:$0xff]
      %v307 = vld [vmem:[%s165 + $0xb0] sm:$0xff]
      %v308 = vld [vmem:[%s165 + $0xb8] sm:$0xff]
      %v309 = vld [vmem:[%s165 + $0xc0] sm:$0xff]
      %v310 = vld [vmem:[%s165 + $0xc8] sm:$0xff]
      %v311 = vld [vmem:[%s165 + $0xd0] sm:$0xff]
      %v312 = vld [vmem:[%s165 + $0xd8] sm:$0xff]
      %v313 = vld [vmem:[%s165 + $0xe0] sm:$0xff]
      %v314 = vld [vmem:[%s165 + $0xe8] sm:$0xff]
      %v315 = vld [vmem:[%s165 + $0xf0] sm:$0xff]
      %v316 = vld [vmem:[%s165 + $0xf8] sm:$0xff]
      %s317 = scalar_lea.vmem [#allocation2], 192
      %318 = vst.msk [vmem:[%s317 + $0x6] sm:$0xff] %vm171, %v285
      %319 = vst.msk [vmem:[%s317 + $0xe] sm:$0xff] %vm171, %v286
      %320 = vst.msk [vmem:[%s317 + $0x26] sm:$0xff] %vm171, %v287
      %321 = vst.msk [vmem:[%s317 + $0x2e] sm:$0xff] %vm171, %v288
      %322 = vst.msk [vmem:[%s317 + $0x46] sm:$0xff] %vm171, %v289
      %323 = vst.msk [vmem:[%s317 + $0x4e] sm:$0xff] %vm171, %v290
      %324 = vst.msk [vmem:[%s317 + $0x66] sm:$0xff] %vm171, %v291
      %325 = vst.msk [vmem:[%s317 + $0x6e] sm:$0xff] %vm171, %v292
      %326 = vst.msk [vmem:[%s317 + $0x86] sm:$0xff] %vm171, %v293
      %327 = vst.msk [vmem:[%s317 + $0x8e] sm:$0xff] %vm171, %v294
      %328 = vst.msk [vmem:[%s317 + $0xa6] sm:$0xff] %vm171, %v295
      %329 = vst.msk [vmem:[%s317 + $0xae] sm:$0xff] %vm171, %v296
      %330 = vst.msk [vmem:[%s317 + $0xc6] sm:$0xff] %vm171, %v297
      %331 = vst.msk [vmem:[%s317 + $0xce] sm:$0xff] %vm171, %v298
      %332 = vst.msk [vmem:[%s317 + $0xe6] sm:$0xff] %vm171, %v299
      %333 = vst.msk [vmem:[%s317 + $0xee] sm:$0xff] %vm171, %v300
      %334 = vst.msk [vmem:[%s317 + $0x106] sm:$0xff] %vm171, %v301
      %335 = vst.msk [vmem:[%s317 + $0x10e] sm:$0xff] %vm171, %v302
      %336 = vst.msk [vmem:[%s317 + $0x126] sm:$0xff] %vm171, %v303
      %337 = vst.msk [vmem:[%s317 + $0x12e] sm:$0xff] %vm171, %v304
      %338 = vst.msk [vmem:[%s317 + $0x146] sm:$0xff] %vm171, %v305
      %339 = vst.msk [vmem:[%s317 + $0x14e] sm:$0xff] %vm171, %v306
      %340 = vst.msk [vmem:[%s317 + $0x166] sm:$0xff] %vm171, %v307
      %341 = vst.msk [vmem:[%s317 + $0x16e] sm:$0xff] %vm171, %v308
      %342 = vst.msk [vmem:[%s317 + $0x186] sm:$0xff] %vm171, %v309
      %343 = vst.msk [vmem:[%s317 + $0x18e] sm:$0xff] %vm171, %v310
      %344 = vst.msk [vmem:[%s317 + $0x1a6] sm:$0xff] %vm171, %v311
      %345 = vst.msk [vmem:[%s317 + $0x1ae] sm:$0xff] %vm171, %v312
      %346 = vst.msk [vmem:[%s317 + $0x1c6] sm:$0xff] %vm171, %v313
      %347 = vst.msk [vmem:[%s317 + $0x1ce] sm:$0xff] %vm171, %v314
      %348 = vst.msk [vmem:[%s317 + $0x1e6] sm:$0xff] %vm171, %v315
      %349 = vst.msk [vmem:[%s317 + $0x1ee] sm:$0xff] %vm171, %v316
      %v350 = vld [vmem:[#allocation2] sm:$0xff]
      %v351 = vld [vmem:[#allocation2 + $0x8] sm:$0xff]
      %v352 = vld [vmem:[#allocation2 + $0x10] sm:$0xff]
      %v353 = vld [vmem:[#allocation2 + $0x18] sm:$0xf]
      %v354 = vld [vmem:[#allocation2 + $0x20] sm:$0xff]
      %v355 = vld [vmem:[#allocation2 + $0x28] sm:$0xff]
      %v356 = vld [vmem:[#allocation2 + $0x30] sm:$0xff]
      %v357 = vld [vmem:[#allocation2 + $0x38] sm:$0xf]
      %v358 = vld [vmem:[#allocation2 + $0x40] sm:$0xff]
      %v359 = vld [vmem:[#allocation2 + $0x48] sm:$0xff]
      %v360 = vld [vmem:[#allocation2 + $0x50] sm:$0xff]
      %v361 = vld [vmem:[#allocation2 + $0x58] sm:$0xf]
      %v362 = vld [vmem:[#allocation2 + $0x60] sm:$0xff]
      %v363 = vld [vmem:[#allocation2 + $0x68] sm:$0xff]
      %v364 = vld [vmem:[#allocation2 + $0x70] sm:$0xff]
      %v365 = vld [vmem:[#allocation2 + $0x78] sm:$0xf]
      %v366 = vld [vmem:[#allocation2 + $0x80] sm:$0xff]
      %v367 = vld [vmem:[#allocation2 + $0x88] sm:$0xff]
      %v368 = vld [vmem:[#allocation2 + $0x90] sm:$0xff]
      %v369 = vld [vmem:[#allocation2 + $0x98] sm:$0xf]
      %v370 = vld [vmem:[#allocation2 + $0xa0] sm:$0xff]
      %v371 = vld [vmem:[#allocation2 + $0xa8] sm:$0xff]
      %v372 = vld [vmem:[#allocation2 + $0xb0] sm:$0xff]
      %v373 = vld [vmem:[#allocation2 + $0xb8] sm:$0xf]
      %v374 = vld [vmem:[#allocation2 + $0xc0] sm:$0xff]
      %v375 = vld [vmem:[#allocation2 + $0xc8] sm:$0xff]
      %v376 = vld [vmem:[#allocation2 + $0xd0] sm:$0xff]
      %v377 = vld [vmem:[#allocation2 + $0xd8] sm:$0xf]
      %v378 = vld [vmem:[#allocation2 + $0xe0] sm:$0xff]
      %v379 = vld [vmem:[#allocation2 + $0xe8] sm:$0xff]
      %v380 = vld [vmem:[#allocation2 + $0xf0] sm:$0xff]
      %v381 = vld [vmem:[#allocation2 + $0xf8] sm:$0xf]
      %v382 = vld [vmem:[#allocation2 + $0x100] sm:$0xff]
      %v383 = vld [vmem:[#allocation2 + $0x108] sm:$0xff]
      %v384 = vld [vmem:[#allocation2 + $0x110] sm:$0xff]
      %v385 = vld [vmem:[#allocation2 + $0x118] sm:$0xf]
      %v386 = vld [vmem:[#allocation2 + $0x120] sm:$0xff]
      %v387 = vld [vmem:[#allocation2 + $0x128] sm:$0xff]
      %v388 = vld [vmem:[#allocation2 + $0x130] sm:$0xff]
      %v389 = vld [vmem:[#allocation2 + $0x138] sm:$0xf]
      %v390 = vld [vmem:[#allocation2 + $0x140] sm:$0xff]
      %v391 = vld [vmem:[#allocation2 + $0x148] sm:$0xff]
      %v392 = vld [vmem:[#allocation2 + $0x150] sm:$0xff]
      %v393 = vld [vmem:[#allocation2 + $0x158] sm:$0xf]
      %v394 = vld [vmem:[#allocation2 + $0x160] sm:$0xff]
      %v395 = vld [vmem:[#allocation2 + $0x168] sm:$0xff]
      %v396 = vld [vmem:[#allocation2 + $0x170] sm:$0xff]
      %v397 = vld [vmem:[#allocation2 + $0x178] sm:$0xf]
      %v398 = vld [vmem:[#allocation2 + $0x180] sm:$0xff]
      %v399 = vld [vmem:[#allocation2 + $0x188] sm:$0xff]
      %v400 = vld [vmem:[#allocation2 + $0x190] sm:$0xff]
      %v401 = vld [vmem:[#allocation2 + $0x198] sm:$0xf]
      %v402 = vld [vmem:[#allocation2 + $0x1a0] sm:$0xff]
      %v403 = vld [vmem:[#allocation2 + $0x1a8] sm:$0xff]
      %v404 = vld [vmem:[#allocation2 + $0x1b0] sm:$0xff]
      %v405 = vld [vmem:[#allocation2 + $0x1b8] sm:$0xf]
      %v406 = vld [vmem:[#allocation2 + $0x1c0] sm:$0xff]
      %v407 = vld [vmem:[#allocation2 + $0x1c8] sm:$0xff]
      %v408 = vld [vmem:[#allocation2 + $0x1d0] sm:$0xff]
      %v409 = vld [vmem:[#allocation2 + $0x1d8] sm:$0xf]
      %v410 = vld [vmem:[#allocation2 + $0x1e0] sm:$0xff]
      %v411 = vld [vmem:[#allocation2 + $0x1e8] sm:$0xff]
      %v412 = vld [vmem:[#allocation2 + $0x1f0] sm:$0xff]
      %v413 = vld [vmem:[#allocation2 + $0x1f8] sm:$0xf]
      %v414 = vld [vmem:[#allocation2 + $0x200] sm:$0xff]
      %v415 = vld [vmem:[#allocation2 + $0x208] sm:$0xff]
      %v416 = vld [vmem:[#allocation2 + $0x210] sm:$0xff]
      %v417 = vld [vmem:[#allocation2 + $0x218] sm:$0xf]
      %v418 = vld [vmem:[#allocation2 + $0x220] sm:$0xff]
      %v419 = vld [vmem:[#allocation2 + $0x228] sm:$0xff]
      %v420 = vld [vmem:[#allocation2 + $0x230] sm:$0xff]
      %v421 = vld [vmem:[#allocation2 + $0x238] sm:$0xf]
      %v422 = vld [vmem:[#allocation2 + $0x240] sm:$0xff]
      %v423 = vld [vmem:[#allocation2 + $0x248] sm:$0xff]
      %v424 = vld [vmem:[#allocation2 + $0x250] sm:$0xff]
      %v425 = vld [vmem:[#allocation2 + $0x258] sm:$0xf]
      %v426 = vld [vmem:[#allocation2 + $0x260] sm:$0xff]
      %v427 = vld [vmem:[#allocation2 + $0x268] sm:$0xff]
      %v428 = vld [vmem:[#allocation2 + $0x270] sm:$0xff]
      %v429 = vld [vmem:[#allocation2 + $0x278] sm:$0xf]
      %v430 = vld [vmem:[#allocation2 + $0x280] sm:$0xff]
      %v431 = vld [vmem:[#allocation2 + $0x288] sm:$0xff]
      %v432 = vld [vmem:[#allocation2 + $0x290] sm:$0xff]
      %v433 = vld [vmem:[#allocation2 + $0x298] sm:$0xf]
      %v434 = vld [vmem:[#allocation2 + $0x2a0] sm:$0xff]
      %v435 = vld [vmem:[#allocation2 + $0x2a8] sm:$0xff]
      %v436 = vld [vmem:[#allocation2 + $0x2b0] sm:$0xff]
      %v437 = vld [vmem:[#allocation2 + $0x2b8] sm:$0xf]
      %v438 = vld [vmem:[#allocation2 + $0x2c0] sm:$0xff]
      %v439 = vld [vmem:[#allocation2 + $0x2c8] sm:$0xff]
      %v440 = vld [vmem:[#allocation2 + $0x2d0] sm:$0xff]
      %v441 = vld [vmem:[#allocation2 + $0x2d8] sm:$0xf]
      %v442 = vld [vmem:[#allocation2 + $0x2e0] sm:$0xff]
      %v443 = vld [vmem:[#allocation2 + $0x2e8] sm:$0xff]
      %v444 = vld [vmem:[#allocation2 + $0x2f0] sm:$0xff]
      %v445 = vld [vmem:[#allocation2 + $0x2f8] sm:$0xf]
      %v446 = vld [vmem:[#allocation2 + $0x300] sm:$0xff]
      %v447 = vld [vmem:[#allocation2 + $0x308] sm:$0xff]
      %v448 = vld [vmem:[#allocation2 + $0x310] sm:$0xff]
      %v449 = vld [vmem:[#allocation2 + $0x318] sm:$0xf]
      %v450 = vld [vmem:[#allocation2 + $0x320] sm:$0xff]
      %v451 = vld [vmem:[#allocation2 + $0x328] sm:$0xff]
      %v452 = vld [vmem:[#allocation2 + $0x330] sm:$0xff]
      %v453 = vld [vmem:[#allocation2 + $0x338] sm:$0xf]
      %v454 = vld [vmem:[#allocation2 + $0x340] sm:$0xff]
      %v455 = vld [vmem:[#allocation2 + $0x348] sm:$0xff]
      %v456 = vld [vmem:[#allocation2 + $0x350] sm:$0xff]
      %v457 = vld [vmem:[#allocation2 + $0x358] sm:$0xf]
      %v458 = vld [vmem:[#allocation2 + $0x360] sm:$0xff]
      %v459 = vld [vmem:[#allocation2 + $0x368] sm:$0xff]
      %v460 = vld [vmem:[#allocation2 + $0x370] sm:$0xff]
      %v461 = vld [vmem:[#allocation2 + $0x378] sm:$0xf]
      %v462 = vmax.f32 %v350, %v354
      %v463 = vmax.f32 %v351, %v355
      %v464 = vmax.f32 %v352, %v356
      %v465 = vmax.f32 %v353, %v357
      %v466 = vmax.f32 %v354, %v358
      %v467 = vmax.f32 %v355, %v359
      %v468 = vmax.f32 %v356, %v360
      %v469 = vmax.f32 %v357, %v361
      %v470 = vmax.f32 %v358, %v362
      %v471 = vmax.f32 %v359, %v363
      %v472 = vmax.f32 %v360, %v364
      %v473 = vmax.f32 %v361, %v365
      %v474 = vmax.f32 %v362, %v366
      %v475 = vmax.f32 %v363, %v367
      %v476 = vmax.f32 %v364, %v368
      %v477 = vmax.f32 %v365, %v369
      %v478 = vmax.f32 %v366, %v370
      %v479 = vmax.f32 %v367, %v371
      %v480 = vmax.f32 %v368, %v372
      %v481 = vmax.f32 %v369, %v373
      %v482 = vmax.f32 %v370, %v374
      %v483 = vmax.f32 %v371, %v375
      %v484 = vmax.f32 %v372, %v376
      %v485 = vmax.f32 %v373, %v377
      %v486 = vmax.f32 %v374, %v378
      %v487 = vmax.f32 %v375, %v379
      %v488 = vmax.f32 %v376, %v380
      %v489 = vmax.f32 %v377, %v381
      %v490 = vmax.f32 %v378, %v382
      %v491 = vmax.f32 %v379, %v383
      %v492 = vmax.f32 %v380, %v384
      %v493 = vmax.f32 %v381, %v385
      %v494 = vmax.f32 %v382, %v386
      %v495 = vmax.f32 %v383, %v387
      %v496 = vmax.f32 %v384, %v388
      %v497 = vmax.f32 %v385, %v389
      %v498 = vmax.f32 %v386, %v390
      %v499 = vmax.f32 %v387, %v391
      %v500 = vmax.f32 %v388, %v392
      %v501 = vmax.f32 %v389, %v393
      %v502 = vmax.f32 %v390, %v394
      %v503 = vmax.f32 %v391, %v395
      %v504 = vmax.f32 %v392, %v396
      %v505 = vmax.f32 %v393, %v397
      %v506 = vmax.f32 %v394, %v398
      %v507 = vmax.f32 %v395, %v399
      %v508 = vmax.f32 %v396, %v400
      %v509 = vmax.f32 %v397, %v401
      %v510 = vmax.f32 %v398, %v402
      %v511 = vmax.f32 %v399, %v403
      %v512 = vmax.f32 %v400, %v404
      %v513 = vmax.f32 %v401, %v405
      %v514 = vmax.f32 %v402, %v406
      %v515 = vmax.f32 %v403, %v407
      %v516 = vmax.f32 %v404, %v408
      %v517 = vmax.f32 %v405, %v409
      %v518 = vmax.f32 %v406, %v410
      %v519 = vmax.f32 %v407, %v411
      %v520 = vmax.f32 %v408, %v412
      %v521 = vmax.f32 %v409, %v413
      %v522 = vmax.f32 %v410, %v414
      %v523 = vmax.f32 %v411, %v415
      %v524 = vmax.f32 %v412, %v416
      %v525 = vmax.f32 %v413, %v417
      %v526 = vmax.f32 %v414, %v418
      %v527 = vmax.f32 %v415, %v419
      %v528 = vmax.f32 %v416, %v420
      %v529 = vmax.f32 %v417, %v421
      %v530 = vmax.f32 %v418, %v422
      %v531 = vmax.f32 %v419, %v423
      %v532 = vmax.f32 %v420, %v424
      %v533 = vmax.f32 %v421, %v425
      %v534 = vmax.f32 %v422, %v426
      %v535 = vmax.f32 %v423, %v427
      %v536 = vmax.f32 %v424, %v428
      %v537 = vmax.f32 %v425, %v429
      %v538 = vmax.f32 %v426, %v430
      %v539 = vmax.f32 %v427, %v431
      %v540 = vmax.f32 %v428, %v432
      %v541 = vmax.f32 %v429, %v433
      %v542 = vmax.f32 %v430, %v434
      %v543 = vmax.f32 %v431, %v435
      %v544 = vmax.f32 %v432, %v436
      %v545 = vmax.f32 %v433, %v437
      %v546 = vmax.f32 %v434, %v438
      %v547 = vmax.f32 %v435, %v439
      %v548 = vmax.f32 %v436, %v440
      %v549 = vmax.f32 %v437, %v441
      %v550 = vmax.f32 %v438, %v442
      %v551 = vmax.f32 %v439, %v443
      %v552 = vmax.f32 %v440, %v444
      %v553 = vmax.f32 %v441, %v445
      %v554 = vmax.f32 %v442, %v446
      %v555 = vmax.f32 %v443, %v447
      %v556 = vmax.f32 %v444, %v448
      %v557 = vmax.f32 %v445, %v449
      %v558 = vmax.f32 %v446, %v450
      %v559 = vmax.f32 %v447, %v451
      %v560 = vmax.f32 %v448, %v452
      %v561 = vmax.f32 %v449, %v453
      %v562 = vmax.f32 %v450, %v454
      %v563 = vmax.f32 %v451, %v455
      %v564 = vmax.f32 %v452, %v456
      %v565 = vmax.f32 %v453, %v457
      %v566 = vmax.f32 %v462, %v470
      %v567 = vmax.f32 %v463, %v471
      %v568 = vmax.f32 %v464, %v472
      %v569 = vmax.f32 %v465, %v473
      %v570 = vmax.f32 %v466, %v474
      %v571 = vmax.f32 %v467, %v475
      %v572 = vmax.f32 %v468, %v476
      %v573 = vmax.f32 %v469, %v477
      %v574 = vmax.f32 %v470, %v478
      %v575 = vmax.f32 %v471, %v479
      %v576 = vmax.f32 %v472, %v480
      %v577 = vmax.f32 %v473, %v481
      %v578 = vmax.f32 %v474, %v482
      %v579 = vmax.f32 %v475, %v483
      %v580 = vmax.f32 %v476, %v484
      %v581 = vmax.f32 %v477, %v485
      %v582 = vmax.f32 %v478, %v486
      %v583 = vmax.f32 %v479, %v487
      %v584 = vmax.f32 %v480, %v488
      %v585 = vmax.f32 %v481, %v489
      %v586 = vmax.f32 %v482, %v490
      %v587 = vmax.f32 %v483, %v491
      %v588 = vmax.f32 %v484, %v492
      %v589 = vmax.f32 %v485, %v493
      %v590 = vmax.f32 %v486, %v494
      %v591 = vmax.f32 %v487, %v495
      %v592 = vmax.f32 %v488, %v496
      %v593 = vmax.f32 %v489, %v497
      %v594 = vmax.f32 %v490, %v498
      %v595 = vmax.f32 %v491, %v499
      %v596 = vmax.f32 %v492, %v500
      %v597 = vmax.f32 %v493, %v501
      %v598 = vmax.f32 %v494, %v502
      %v599 = vmax.f32 %v495, %v503
      %v600 = vmax.f32 %v496, %v504
      %v601 = vmax.f32 %v497, %v505
      %v602 = vmax.f32 %v498, %v506
      %v603 = vmax.f32 %v499, %v507
      %v604 = vmax.f32 %v500, %v508
      %v605 = vmax.f32 %v501, %v509
      %v606 = vmax.f32 %v502, %v510
      %v607 = vmax.f32 %v503, %v511
      %v608 = vmax.f32 %v504, %v512
      %v609 = vmax.f32 %v505, %v513
      %v610 = vmax.f32 %v506, %v514
      %v611 = vmax.f32 %v507, %v515
      %v612 = vmax.f32 %v508, %v516
      %v613 = vmax.f32 %v509, %v517
      %v614 = vmax.f32 %v510, %v518
      %v615 = vmax.f32 %v511, %v519
      %v616 = vmax.f32 %v512, %v520
      %v617 = vmax.f32 %v513, %v521
      %v618 = vmax.f32 %v514, %v522
      %v619 = vmax.f32 %v515, %v523
      %v620 = vmax.f32 %v516, %v524
      %v621 = vmax.f32 %v517, %v525
      %v622 = vmax.f32 %v518, %v526
      %v623 = vmax.f32 %v519, %v527
      %v624 = vmax.f32 %v520, %v528
      %v625 = vmax.f32 %v521, %v529
      %v626 = vmax.f32 %v522, %v530
      %v627 = vmax.f32 %v523, %v531
      %v628 = vmax.f32 %v524, %v532
      %v629 = vmax.f32 %v525, %v533
      %v630 = vmax.f32 %v526, %v534
      %v631 = vmax.f32 %v527, %v535
      %v632 = vmax.f32 %v528, %v536
      %v633 = vmax.f32 %v529, %v537
      %v634 = vmax.f32 %v530, %v538
      %v635 = vmax.f32 %v531, %v539
      %v636 = vmax.f32 %v532, %v540
      %v637 = vmax.f32 %v533, %v541
      %v638 = vmax.f32 %v534, %v542
      %v639 = vmax.f32 %v535, %v543
      %v640 = vmax.f32 %v536, %v544
      %v641 = vmax.f32 %v537, %v545
      %v642 = vmax.f32 %v538, %v546
      %v643 = vmax.f32 %v539, %v547
      %v644 = vmax.f32 %v540, %v548
      %v645 = vmax.f32 %v541, %v549
      %v646 = vmax.f32 %v542, %v550
      %v647 = vmax.f32 %v543, %v551
      %v648 = vmax.f32 %v544, %v552
      %v649 = vmax.f32 %v545, %v553
      %v650 = vmax.f32 %v546, %v554
      %v651 = vmax.f32 %v547, %v555
      %v652 = vmax.f32 %v548, %v556
      %v653 = vmax.f32 %v549, %v557
      %v654 = vmax.f32 %v550, %v558
      %v655 = vmax.f32 %v551, %v559
      %v656 = vmax.f32 %v552, %v560
      %v657 = vmax.f32 %v553, %v561
      %v658 = vmax.f32 %v554, %v562
      %v659 = vmax.f32 %v555, %v563
      %v660 = vmax.f32 %v556, %v564
      %v661 = vmax.f32 %v557, %v565
      %v662 = vmax.f32 %v566, %v366
      %v663 = vmax.f32 %v567, %v367
      %v664 = vmax.f32 %v568, %v368
      %v665 = vmax.f32 %v569, %v369
      %v666 = vmax.f32 %v570, %v370
      %v667 = vmax.f32 %v571, %v371
      %v668 = vmax.f32 %v572, %v372
      %v669 = vmax.f32 %v573, %v373
      %v670 = vmax.f32 %v574, %v374
      %v671 = vmax.f32 %v575, %v375
      %v672 = vmax.f32 %v576, %v376
      %v673 = vmax.f32 %v577, %v377
      %v674 = vmax.f32 %v578, %v378
      %v675 = vmax.f32 %v579, %v379
      %v676 = vmax.f32 %v580, %v380
      %v677 = vmax.f32 %v581, %v381
      %v678 = vmax.f32 %v582, %v382
      %v679 = vmax.f32 %v583, %v383
      %v680 = vmax.f32 %v584, %v384
      %v681 = vmax.f32 %v585, %v385
      %v682 = vmax.f32 %v586, %v386
      %v683 = vmax.f32 %v587, %v387
      %v684 = vmax.f32 %v588, %v388
      %v685 = vmax.f32 %v589, %v389
      %v686 = vmax.f32 %v590, %v390
      %v687 = vmax.f32 %v591, %v391
      %v688 = vmax.f32 %v592, %v392
      %v689 = vmax.f32 %v593, %v393
      %v690 = vmax.f32 %v594, %v394
      %v691 = vmax.f32 %v595, %v395
      %v692 = vmax.f32 %v596, %v396
      %v693 = vmax.f32 %v597, %v397
      %v694 = vmax.f32 %v598, %v398
      %v695 = vmax.f32 %v599, %v399
      %v696 = vmax.f32 %v600, %v400
      %v697 = vmax.f32 %v601, %v401
      %v698 = vmax.f32 %v602, %v402
      %v699 = vmax.f32 %v603, %v403
      %v700 = vmax.f32 %v604, %v404
      %v701 = vmax.f32 %v605, %v405
      %v702 = vmax.f32 %v606, %v406
      %v703 = vmax.f32 %v607, %v407
      %v704 = vmax.f32 %v608, %v408
      %v705 = vmax.f32 %v609, %v409
      %v706 = vmax.f32 %v610, %v410
      %v707 = vmax.f32 %v611, %v411
      %v708 = vmax.f32 %v612, %v412
      %v709 = vmax.f32 %v613, %v413
      %v710 = vmax.f32 %v614, %v414
      %v711 = vmax.f32 %v615, %v415
      %v712 = vmax.f32 %v616, %v416
      %v713 = vmax.f32 %v617, %v417
      %v714 = vmax.f32 %v618, %v418
      %v715 = vmax.f32 %v619, %v419
      %v716 = vmax.f32 %v620, %v420
      %v717 = vmax.f32 %v621, %v421
      %v718 = vmax.f32 %v622, %v422
      %v719 = vmax.f32 %v623, %v423
      %v720 = vmax.f32 %v624, %v424
      %v721 = vmax.f32 %v625, %v425
      %v722 = vmax.f32 %v626, %v426
      %v723 = vmax.f32 %v627, %v427
      %v724 = vmax.f32 %v628, %v428
      %v725 = vmax.f32 %v629, %v429
      %v726 = vmax.f32 %v630, %v430
      %v727 = vmax.f32 %v631, %v431
      %v728 = vmax.f32 %v632, %v432
      %v729 = vmax.f32 %v633, %v433
      %v730 = vmax.f32 %v634, %v434
      %v731 = vmax.f32 %v635, %v435
      %v732 = vmax.f32 %v636, %v436
      %v733 = vmax.f32 %v637, %v437
      %v734 = vmax.f32 %v638, %v438
      %v735 = vmax.f32 %v639, %v439
      %v736 = vmax.f32 %v640, %v440
      %v737 = vmax.f32 %v641, %v441
      %v738 = vmax.f32 %v642, %v442
      %v739 = vmax.f32 %v643, %v443
      %v740 = vmax.f32 %v644, %v444
      %v741 = vmax.f32 %v645, %v445
      %v742 = vmax.f32 %v646, %v446
      %v743 = vmax.f32 %v647, %v447
      %v744 = vmax.f32 %v648, %v448
      %v745 = vmax.f32 %v649, %v449
      %v746 = vmax.f32 %v650, %v450
      %v747 = vmax.f32 %v651, %v451
      %v748 = vmax.f32 %v652, %v452
      %v749 = vmax.f32 %v653, %v453
      %v750 = vmax.f32 %v654, %v454
      %v751 = vmax.f32 %v655, %v455
      %v752 = vmax.f32 %v656, %v456
      %v753 = vmax.f32 %v657, %v457
      %v754 = vmax.f32 %v658, %v458
      %v755 = vmax.f32 %v659, %v459
      %v756 = vmax.f32 %v660, %v460
      %v757 = vmax.f32 %v661, %v461
      %vm854 = vcmask 1046528
      %v855 = vrot.slane %v662, 1
      %v856 = vrot.slane %v663, 1
      %v857 = vsel %vm854, %v855, %v856
      %v858 = vrot.slane %v664, 1
      %v859 = vsel %vm854, %v856, %v858
      %v860 = vrot.slane %v665, 1
      %v861 = vsel %vm854, %v858, %v860
      %v862 = vrot.slane %v666, 1
      %v863 = vrot.slane %v667, 1
      %v864 = vsel %vm854, %v862, %v863
      %v865 = vrot.slane %v668, 1
      %v866 = vsel %vm854, %v863, %v865
      %v867 = vrot.slane %v669, 1
      %v868 = vsel %vm854, %v865, %v867
      %v869 = vrot.slane %v670, 1
      %v870 = vrot.slane %v671, 1
      %v871 = vsel %vm854, %v869, %v870
      %v872 = vrot.slane %v672, 1
      %v873 = vsel %vm854, %v870, %v872
      %v874 = vrot.slane %v673, 1
      %v875 = vsel %vm854, %v872, %v874
      %v876 = vrot.slane %v674, 1
      %v877 = vrot.slane %v675, 1
      %v878 = vsel %vm854, %v876, %v877
      %v879 = vrot.slane %v676, 1
      %v880 = vsel %vm854, %v877, %v879
      %v881 = vrot.slane %v677, 1
      %v882 = vsel %vm854, %v879, %v881
      %v883 = vrot.slane %v678, 1
      %v884 = vrot.slane %v679, 1
      %v885 = vsel %vm854, %v883, %v884
      %v886 = vrot.slane %v680, 1
      %v887 = vsel %vm854, %v884, %v886
      %v888 = vrot.slane %v681, 1
      %v889 = vsel %vm854, %v886, %v888
      %v890 = vrot.slane %v682, 1
      %v891 = vrot.slane %v683, 1
      %v892 = vsel %vm854, %v890, %v891
      %v893 = vrot.slane %v684, 1
      %v894 = vsel %vm854, %v891, %v893
      %v895 = vrot.slane %v685, 1
      %v896 = vsel %vm854, %v893, %v895
      %v897 = vrot.slane %v686, 1
      %v898 = vrot.slane %v687, 1
      %v899 = vsel %vm854, %v897, %v898
      %v900 = vrot.slane %v688, 1
      %v901 = vsel %vm854, %v898, %v900
      %v902 = vrot.slane %v689, 1
      %v903 = vsel %vm854, %v900, %v902
      %v904 = vrot.slane %v690, 1
      %v905 = vrot.slane %v691, 1
      %v906 = vsel %vm854, %v904, %v905
      %v907 = vrot.slane %v692, 1
      %v908 = vsel %vm854, %v905, %v907
      %v909 = vrot.slane %v693, 1
      %v910 = vsel %vm854, %v907, %v909
      %v911 = vrot.slane %v694, 1
      %v912 = vrot.slane %v695, 1
      %v913 = vsel %vm854, %v911, %v912
      %v914 = vrot.slane %v696, 1
      %v915 = vsel %vm854, %v912, %v914
      %v916 = vrot.slane %v697, 1
      %v917 = vsel %vm854, %v914, %v916
      %v918 = vrot.slane %v698, 1
      %v919 = vrot.slane %v699, 1
      %v920 = vsel %vm854, %v918, %v919
      %v921 = vrot.slane %v700, 1
      %v922 = vsel %vm854, %v919, %v921
      %v923 = vrot.slane %v701, 1
      %v924 = vsel %vm854, %v921, %v923
      %v925 = vrot.slane %v702, 1
      %v926 = vrot.slane %v703, 1
      %v927 = vsel %vm854, %v925, %v926
      %v928 = vrot.slane %v704, 1
      %v929 = vsel %vm854, %v926, %v928
      %v930 = vrot.slane %v705, 1
      %v931 = vsel %vm854, %v928, %v930
      %v932 = vrot.slane %v706, 1
      %v933 = vrot.slane %v707, 1
      %v934 = vsel %vm854, %v932, %v933
      %v935 = vrot.slane %v708, 1
      %v936 = vsel %vm854, %v933, %v935
      %v937 = vrot.slane %v709, 1
      %v938 = vsel %vm854, %v935, %v937
      %v939 = vrot.slane %v710, 1
      %v940 = vrot.slane %v711, 1
      %v941 = vsel %vm854, %v939, %v940
      %v942 = vrot.slane %v712, 1
      %v943 = vsel %vm854, %v940, %v942
      %v944 = vrot.slane %v713, 1
      %v945 = vsel %vm854, %v942, %v944
      %v946 = vrot.slane %v714, 1
      %v947 = vrot.slane %v715, 1
      %v948 = vsel %vm854, %v946, %v947
      %v949 = vrot.slane %v716, 1
      %v950 = vsel %vm854, %v947, %v949
      %v951 = vrot.slane %v717, 1
      %v952 = vsel %vm854, %v949, %v951
      %v953 = vrot.slane %v718, 1
      %v954 = vrot.slane %v719, 1
      %v955 = vsel %vm854, %v953, %v954
      %v956 = vrot.slane %v720, 1
      %v957 = vsel %vm854, %v954, %v956
      %v958 = vrot.slane %v721, 1
      %v959 = vsel %vm854, %v956, %v958
      %v960 = vrot.slane %v722, 1
      %v961 = vrot.slane %v723, 1
      %v962 = vsel %vm854, %v960, %v961
      %v963 = vrot.slane %v724, 1
      %v964 = vsel %vm854, %v961, %v963
      %v965 = vrot.slane %v725, 1
      %v966 = vsel %vm854, %v963, %v965
      %v967 = vrot.slane %v726, 1
      %v968 = vrot.slane %v727, 1
      %v969 = vsel %vm854, %v967, %v968
      %v970 = vrot.slane %v728, 1
      %v971 = vsel %vm854, %v968, %v970
      %v972 = vrot.slane %v729, 1
      %v973 = vsel %vm854, %v970, %v972
      %v974 = vrot.slane %v730, 1
      %v975 = vrot.slane %v731, 1
      %v976 = vsel %vm854, %v974, %v975
      %v977 = vrot.slane %v732, 1
      %v978 = vsel %vm854, %v975, %v977
      %v979 = vrot.slane %v733, 1
      %v980 = vsel %vm854, %v977, %v979
      %v981 = vrot.slane %v734, 1
      %v982 = vrot.slane %v735, 1
      %v983 = vsel %vm854, %v981, %v982
      %v984 = vrot.slane %v736, 1
      %v985 = vsel %vm854, %v982, %v984
      %v986 = vrot.slane %v737, 1
      %v987 = vsel %vm854, %v984, %v986
      %v988 = vrot.slane %v738, 1
      %v989 = vrot.slane %v739, 1
      %v990 = vsel %vm854, %v988, %v989
      %v991 = vrot.slane %v740, 1
      %v992 = vsel %vm854, %v989, %v991
      %v993 = vrot.slane %v741, 1
      %v994 = vsel %vm854, %v991, %v993
      %v995 = vrot.slane %v742, 1
      %v996 = vrot.slane %v743, 1
      %v997 = vsel %vm854, %v995, %v996
      %v998 = vrot.slane %v744, 1
      %v999 = vsel %vm854, %v996, %v998
      %v1000 = vrot.slane %v745, 1
      %v1001 = vsel %vm854, %v998, %v1000
      %v1002 = vrot.slane %v746, 1
      %v1003 = vrot.slane %v747, 1
      %v1004 = vsel %vm854, %v1002, %v1003
      %v1005 = vrot.slane %v748, 1
      %v1006 = vsel %vm854, %v1003, %v1005
      %v1007 = vrot.slane %v749, 1
      %v1008 = vsel %vm854, %v1005, %v1007
      %v1009 = vrot.slane %v750, 1
      %v1010 = vrot.slane %v751, 1
      %v1011 = vsel %vm854, %v1009, %v1010
      %v1012 = vrot.slane %v752, 1
      %v1013 = vsel %vm854, %v1010, %v1012
      %v1014 = vrot.slane %v753, 1
      %v1015 = vsel %vm854, %v1012, %v1014
      %v1016 = vrot.slane %v754, 1
      %v1017 = vrot.slane %v755, 1
      %v1018 = vsel %vm854, %v1016, %v1017
      %v1019 = vrot.slane %v756, 1
      %v1020 = vsel %vm854, %v1017, %v1019
      %v1021 = vrot.slane %v757, 1
      %v1022 = vsel %vm854, %v1019, %v1021
      %v1119 = vmax.f32 %v662, %v857
      %v1120 = vmax.f32 %v663, %v859
      %v1121 = vmax.f32 %v664, %v861
      %v1122 = vmax.f32 %v665, %v860
      %v1123 = vmax.f32 %v666, %v864
      %v1124 = vmax.f32 %v667, %v866
      %v1125 = vmax.f32 %v668, %v868
      %v1126 = vmax.f32 %v669, %v867
      %v1127 = vmax.f32 %v670, %v871
      %v1128 = vmax.f32 %v671, %v873
      %v1129 = vmax.f32 %v672, %v875
      %v1130 = vmax.f32 %v673, %v874
      %v1131 = vmax.f32 %v674, %v878
      %v1132 = vmax.f32 %v675, %v880
      %v1133 = vmax.f32 %v676, %v882
      %v1134 = vmax.f32 %v677, %v881
      %v1135 = vmax.f32 %v678, %v885
      %v1136 = vmax.f32 %v679, %v887
      %v1137 = vmax.f32 %v680, %v889
      %v1138 = vmax.f32 %v681, %v888
      %v1139 = vmax.f32 %v682, %v892
      %v1140 = vmax.f32 %v683, %v894
      %v1141 = vmax.f32 %v684, %v896
      %v1142 = vmax.f32 %v685, %v895
      %v1143 = vmax.f32 %v686, %v899
      %v1144 = vmax.f32 %v687, %v901
      %v1145 = vmax.f32 %v688, %v903
      %v1146 = vmax.f32 %v689, %v902
      %v1147 = vmax.f32 %v690, %v906
      %v1148 = vmax.f32 %v691, %v908
      %v1149 = vmax.f32 %v692, %v910
      %v1150 = vmax.f32 %v693, %v909
      %v1151 = vmax.f32 %v694, %v913
      %v1152 = vmax.f32 %v695, %v915
      %v1153 = vmax.f32 %v696, %v917
      %v1154 = vmax.f32 %v697, %v916
      %v1155 = vmax.f32 %v698, %v920
      %v1156 = vmax.f32 %v699, %v922
      %v1157 = vmax.f32 %v700, %v924
      %v1158 = vmax.f32 %v701, %v923
      %v1159 = vmax.f32 %v702, %v927
      %v1160 = vmax.f32 %v703, %v929
      %v1161 = vmax.f32 %v704, %v931
      %v1162 = vmax.f32 %v705, %v930
      %v1163 = vmax.f32 %v706, %v934
      %v1164 = vmax.f32 %v707, %v936
      %v1165 = vmax.f32 %v708, %v938
      %v1166 = vmax.f32 %v709, %v937
      %v1167 = vmax.f32 %v710, %v941
      %v1168 = vmax.f32 %v711, %v943
      %v1169 = vmax.f32 %v712, %v945
      %v1170 = vmax.f32 %v713, %v944
      %v1171 = vmax.f32 %v714, %v948
      %v1172 = vmax.f32 %v715, %v950
      %v1173 = vmax.f32 %v716, %v952
      %v1174 = vmax.f32 %v717, %v951
      %v1175 = vmax.f32 %v718, %v955
      %v1176 = vmax.f32 %v719, %v957
      %v1177 = vmax.f32 %v720, %v959
      %v1178 = vmax.f32 %v721, %v958
      %v1179 = vmax.f32 %v722, %v962
      %v1180 = vmax.f32 %v723, %v964
      %v1181 = vmax.f32 %v724, %v966
      %v1182 = vmax.f32 %v725, %v965
      %v1183 = vmax.f32 %v726, %v969
      %v1184 = vmax.f32 %v727, %v971
      %v1185 = vmax.f32 %v728, %v973
      %v1186 = vmax.f32 %v729, %v972
      %v1187 = vmax.f32 %v730, %v976
      %v1188 = vmax.f32 %v731, %v978
      %v1189 = vmax.f32 %v732, %v980
      %v1190 = vmax.f32 %v733, %v979
      %v1191 = vmax.f32 %v734, %v983
      %v1192 = vmax.f32 %v735, %v985
      %v1193 = vmax.f32 %v736, %v987
      %v1194 = vmax.f32 %v737, %v986
      %v1195 = vmax.f32 %v738, %v990
      %v1196 = vmax.f32 %v739, %v992
      %v1197 = vmax.f32 %v740, %v994
      %v1198 = vmax.f32 %v741, %v993
      %v1199 = vmax.f32 %v742, %v997
      %v1200 = vmax.f32 %v743, %v999
      %v1201 = vmax.f32 %v744, %v1001
      %v1202 = vmax.f32 %v745, %v1000
      %v1203 = vmax.f32 %v746, %v1004
      %v1204 = vmax.f32 %v747, %v1006
      %v1205 = vmax.f32 %v748, %v1008
      %v1206 = vmax.f32 %v749, %v1007
      %v1207 = vmax.f32 %v750, %v1011
      %v1208 = vmax.f32 %v751, %v1013
      %v1209 = vmax.f32 %v752, %v1015
      %v1210 = vmax.f32 %v753, %v1014
      %v1211 = vmax.f32 %v754, %v1018
      %v1212 = vmax.f32 %v755, %v1020
      %v1213 = vmax.f32 %v756, %v1022
      %v1214 = vmax.f32 %v757, %v1021
      %vm1311 = vcmask 1045504
      %v1312 = vrot.slane %v1119, 2
      %v1313 = vrot.slane %v1120, 2
      %v1314 = vsel %vm1311, %v1312, %v1313
      %v1315 = vrot.slane %v1121, 2
      %v1316 = vsel %vm1311, %v1313, %v1315
      %v1317 = vrot.slane %v1122, 2
      %v1318 = vsel %vm1311, %v1315, %v1317
      %v1319 = vrot.slane %v1123, 2
      %v1320 = vrot.slane %v1124, 2
      %v1321 = vsel %vm1311, %v1319, %v1320
      %v1322 = vrot.slane %v1125, 2
      %v1323 = vsel %vm1311, %v1320, %v1322
      %v1324 = vrot.slane %v1126, 2
      %v1325 = vsel %vm1311, %v1322, %v1324
      %v1326 = vrot.slane %v1127, 2
      %v1327 = vrot.slane %v1128, 2
      %v1328 = vsel %vm1311, %v1326, %v1327
      %v1329 = vrot.slane %v1129, 2
      %v1330 = vsel %vm1311, %v1327, %v1329
      %v1331 = vrot.slane %v1130, 2
      %v1332 = vsel %vm1311, %v1329, %v1331
      %v1333 = vrot.slane %v1131, 2
      %v1334 = vrot.slane %v1132, 2
      %v1335 = vsel %vm1311, %v1333, %v1334
      %v1336 = vrot.slane %v1133, 2
      %v1337 = vsel %vm1311, %v1334, %v1336
      %v1338 = vrot.slane %v1134, 2
      %v1339 = vsel %vm1311, %v1336, %v1338
      %v1340 = vrot.slane %v1135, 2
      %v1341 = vrot.slane %v1136, 2
      %v1342 = vsel %vm1311, %v1340, %v1341
      %v1343 = vrot.slane %v1137, 2
      %v1344 = vsel %vm1311, %v1341, %v1343
      %v1345 = vrot.slane %v1138, 2
      %v1346 = vsel %vm1311, %v1343, %v1345
      %v1347 = vrot.slane %v1139, 2
      %v1348 = vrot.slane %v1140, 2
      %v1349 = vsel %vm1311, %v1347, %v1348
      %v1350 = vrot.slane %v1141, 2
      %v1351 = vsel %vm1311, %v1348, %v1350
      %v1352 = vrot.slane %v1142, 2
      %v1353 = vsel %vm1311, %v1350, %v1352
      %v1354 = vrot.slane %v1143, 2
      %v1355 = vrot.slane %v1144, 2
      %v1356 = vsel %vm1311, %v1354, %v1355
      %v1357 = vrot.slane %v1145, 2
      %v1358 = vsel %vm1311, %v1355, %v1357
      %v1359 = vrot.slane %v1146, 2
      %v1360 = vsel %vm1311, %v1357, %v1359
      %v1361 = vrot.slane %v1147, 2
      %v1362 = vrot.slane %v1148, 2
      %v1363 = vsel %vm1311, %v1361, %v1362
      %v1364 = vrot.slane %v1149, 2
      %v1365 = vsel %vm1311, %v1362, %v1364
      %v1366 = vrot.slane %v1150, 2
      %v1367 = vsel %vm1311, %v1364, %v1366
      %v1368 = vrot.slane %v1151, 2
      %v1369 = vrot.slane %v1152, 2
      %v1370 = vsel %vm1311, %v1368, %v1369
      %v1371 = vrot.slane %v1153, 2
      %v1372 = vsel %vm1311, %v1369, %v1371
      %v1373 = vrot.slane %v1154, 2
      %v1374 = vsel %vm1311, %v1371, %v1373
      %v1375 = vrot.slane %v1155, 2
      %v1376 = vrot.slane %v1156, 2
      %v1377 = vsel %vm1311, %v1375, %v1376
      %v1378 = vrot.slane %v1157, 2
      %v1379 = vsel %vm1311, %v1376, %v1378
      %v1380 = vrot.slane %v1158, 2
      %v1381 = vsel %vm1311, %v1378, %v1380
      %v1382 = vrot.slane %v1159, 2
      %v1383 = vrot.slane %v1160, 2
      %v1384 = vsel %vm1311, %v1382, %v1383
      %v1385 = vrot.slane %v1161, 2
      %v1386 = vsel %vm1311, %v1383, %v1385
      %v1387 = vrot.slane %v1162, 2
      %v1388 = vsel %vm1311, %v1385, %v1387
      %v1389 = vrot.slane %v1163, 2
      %v1390 = vrot.slane %v1164, 2
      %v1391 = vsel %vm1311, %v1389, %v1390
      %v1392 = vrot.slane %v1165, 2
      %v1393 = vsel %vm1311, %v1390, %v1392
      %v1394 = vrot.slane %v1166, 2
      %v1395 = vsel %vm1311, %v1392, %v1394
      %v1396 = vrot.slane %v1167, 2
      %v1397 = vrot.slane %v1168, 2
      %v1398 = vsel %vm1311, %v1396, %v1397
      %v1399 = vrot.slane %v1169, 2
      %v1400 = vsel %vm1311, %v1397, %v1399
      %v1401 = vrot.slane %v1170, 2
      %v1402 = vsel %vm1311, %v1399, %v1401
      %v1403 = vrot.slane %v1171, 2
      %v1404 = vrot.slane %v1172, 2
      %v1405 = vsel %vm1311, %v1403, %v1404
      %v1406 = vrot.slane %v1173, 2
      %v1407 = vsel %vm1311, %v1404, %v1406
      %v1408 = vrot.slane %v1174, 2
      %v1409 = vsel %vm1311, %v1406, %v1408
      %v1410 = vrot.slane %v1175, 2
      %v1411 = vrot.slane %v1176, 2
      %v1412 = vsel %vm1311, %v1410, %v1411
      %v1413 = vrot.slane %v1177, 2
      %v1414 = vsel %vm1311, %v1411, %v1413
      %v1415 = vrot.slane %v1178, 2
      %v1416 = vsel %vm1311, %v1413, %v1415
      %v1417 = vrot.slane %v1179, 2
      %v1418 = vrot.slane %v1180, 2
      %v1419 = vsel %vm1311, %v1417, %v1418
      %v1420 = vrot.slane %v1181, 2
      %v1421 = vsel %vm1311, %v1418, %v1420
      %v1422 = vrot.slane %v1182, 2
      %v1423 = vsel %vm1311, %v1420, %v1422
      %v1424 = vrot.slane %v1183, 2
      %v1425 = vrot.slane %v1184, 2
      %v1426 = vsel %vm1311, %v1424, %v1425
      %v1427 = vrot.slane %v1185, 2
      %v1428 = vsel %vm1311, %v1425, %v1427
      %v1429 = vrot.slane %v1186, 2
      %v1430 = vsel %vm1311, %v1427, %v1429
      %v1431 = vrot.slane %v1187, 2
      %v1432 = vrot.slane %v1188, 2
      %v1433 = vsel %vm1311, %v1431, %v1432
      %v1434 = vrot.slane %v1189, 2
      %v1435 = vsel %vm1311, %v1432, %v1434
      %v1436 = vrot.slane %v1190, 2
      %v1437 = vsel %vm1311, %v1434, %v1436
      %v1438 = vrot.slane %v1191, 2
      %v1439 = vrot.slane %v1192, 2
      %v1440 = vsel %vm1311, %v1438, %v1439
      %v1441 = vrot.slane %v1193, 2
      %v1442 = vsel %vm1311, %v1439, %v1441
      %v1443 = vrot.slane %v1194, 2
      %v1444 = vsel %vm1311, %v1441, %v1443
      %v1445 = vrot.slane %v1195, 2
      %v1446 = vrot.slane %v1196, 2
      %v1447 = vsel %vm1311, %v1445, %v1446
      %v1448 = vrot.slane %v1197, 2
      %v1449 = vsel %vm1311, %v1446, %v1448
      %v1450 = vrot.slane %v1198, 2
      %v1451 = vsel %vm1311, %v1448, %v1450
      %v1452 = vrot.slane %v1199, 2
      %v1453 = vrot.slane %v1200, 2
      %v1454 = vsel %vm1311, %v1452, %v1453
      %v1455 = vrot.slane %v1201, 2
      %v1456 = vsel %vm1311, %v1453, %v1455
      %v1457 = vrot.slane %v1202, 2
      %v1458 = vsel %vm1311, %v1455, %v1457
      %v1459 = vrot.slane %v1203, 2
      %v1460 = vrot.slane %v1204, 2
      %v1461 = vsel %vm1311, %v1459, %v1460
      %v1462 = vrot.slane %v1205, 2
      %v1463 = vsel %vm1311, %v1460, %v1462
      %v1464 = vrot.slane %v1206, 2
      %v1465 = vsel %vm1311, %v1462, %v1464
      %v1466 = vrot.slane %v1207, 2
      %v1467 = vrot.slane %v1208, 2
      %v1468 = vsel %vm1311, %v1466, %v1467
      %v1469 = vrot.slane %v1209, 2
      %v1470 = vsel %vm1311, %v1467, %v1469
      %v1471 = vrot.slane %v1210, 2
      %v1472 = vsel %vm1311, %v1469, %v1471
      %v1473 = vrot.slane %v1211, 2
      %v1474 = vrot.slane %v1212, 2
      %v1475 = vsel %vm1311, %v1473, %v1474
      %v1476 = vrot.slane %v1213, 2
      %v1477 = vsel %vm1311, %v1474, %v1476
      %v1478 = vrot.slane %v1214, 2
      %v1479 = vsel %vm1311, %v1476, %v1478
      %v1552 = vmax.f32 %v1119, %v1314
      %v1553 = vmax.f32 %v1120, %v1316
      %v1554 = vmax.f32 %v1121, %v1318
      %v1555 = vmax.f32 %v1123, %v1321
      %v1556 = vmax.f32 %v1124, %v1323
      %v1557 = vmax.f32 %v1125, %v1325
      %v1558 = vmax.f32 %v1127, %v1328
      %v1559 = vmax.f32 %v1128, %v1330
      %v1560 = vmax.f32 %v1129, %v1332
      %v1561 = vmax.f32 %v1131, %v1335
      %v1562 = vmax.f32 %v1132, %v1337
      %v1563 = vmax.f32 %v1133, %v1339
      %v1564 = vmax.f32 %v1135, %v1342
      %v1565 = vmax.f32 %v1136, %v1344
      %v1566 = vmax.f32 %v1137, %v1346
      %v1567 = vmax.f32 %v1139, %v1349
      %v1568 = vmax.f32 %v1140, %v1351
      %v1569 = vmax.f32 %v1141, %v1353
      %v1570 = vmax.f32 %v1143, %v1356
      %v1571 = vmax.f32 %v1144, %v1358
      %v1572 = vmax.f32 %v1145, %v1360
      %v1573 = vmax.f32 %v1147, %v1363
      %v1574 = vmax.f32 %v1148, %v1365
      %v1575 = vmax.f32 %v1149, %v1367
      %v1576 = vmax.f32 %v1151, %v1370
      %v1577 = vmax.f32 %v1152, %v1372
      %v1578 = vmax.f32 %v1153, %v1374
      %v1579 = vmax.f32 %v1155, %v1377
      %v1580 = vmax.f32 %v1156, %v1379
      %v1581 = vmax.f32 %v1157, %v1381
      %v1582 = vmax.f32 %v1159, %v1384
      %v1583 = vmax.f32 %v1160, %v1386
      %v1584 = vmax.f32 %v1161, %v1388
      %v1585 = vmax.f32 %v1163, %v1391
      %v1586 = vmax.f32 %v1164, %v1393
      %v1587 = vmax.f32 %v1165, %v1395
      %v1588 = vmax.f32 %v1167, %v1398
      %v1589 = vmax.f32 %v1168, %v1400
      %v1590 = vmax.f32 %v1169, %v1402
      %v1591 = vmax.f32 %v1171, %v1405
      %v1592 = vmax.f32 %v1172, %v1407
      %v1593 = vmax.f32 %v1173, %v1409
      %v1594 = vmax.f32 %v1175, %v1412
      %v1595 = vmax.f32 %v1176, %v1414
      %v1596 = vmax.f32 %v1177, %v1416
      %v1597 = vmax.f32 %v1179, %v1419
      %v1598 = vmax.f32 %v1180, %v1421
      %v1599 = vmax.f32 %v1181, %v1423
      %v1600 = vmax.f32 %v1183, %v1426
      %v1601 = vmax.f32 %v1184, %v1428
      %v1602 = vmax.f32 %v1185, %v1430
      %v1603 = vmax.f32 %v1187, %v1433
      %v1604 = vmax.f32 %v1188, %v1435
      %v1605 = vmax.f32 %v1189, %v1437
      %v1606 = vmax.f32 %v1191, %v1440
      %v1607 = vmax.f32 %v1192, %v1442
      %v1608 = vmax.f32 %v1193, %v1444
      %v1609 = vmax.f32 %v1195, %v1447
      %v1610 = vmax.f32 %v1196, %v1449
      %v1611 = vmax.f32 %v1197, %v1451
      %v1612 = vmax.f32 %v1199, %v1454
      %v1613 = vmax.f32 %v1200, %v1456
      %v1614 = vmax.f32 %v1201, %v1458
      %v1615 = vmax.f32 %v1203, %v1461
      %v1616 = vmax.f32 %v1204, %v1463
      %v1617 = vmax.f32 %v1205, %v1465
      %v1618 = vmax.f32 %v1207, %v1468
      %v1619 = vmax.f32 %v1208, %v1470
      %v1620 = vmax.f32 %v1209, %v1472
      %v1621 = vmax.f32 %v1211, %v1475
      %v1622 = vmax.f32 %v1212, %v1477
      %v1623 = vmax.f32 %v1213, %v1479
      %vm1624 = vcmask 1043456
      %v1625 = vrot.slane %v662, 4
      %v1626 = vrot.slane %v663, 4
      %v1627 = vsel %vm1624, %v1625, %v1626
      %v1628 = vrot.slane %v664, 4
      %v1629 = vsel %vm1624, %v1626, %v1628
      %v1630 = vrot.slane %v665, 4
      %v1631 = vsel %vm1624, %v1628, %v1630
      %v1632 = vrot.slane %v666, 4
      %v1633 = vrot.slane %v667, 4
      %v1634 = vsel %vm1624, %v1632, %v1633
      %v1635 = vrot.slane %v668, 4
      %v1636 = vsel %vm1624, %v1633, %v1635
      %v1637 = vrot.slane %v669, 4
      %v1638 = vsel %vm1624, %v1635, %v1637
      %v1639 = vrot.slane %v670, 4
      %v1640 = vrot.slane %v671, 4
      %v1641 = vsel %vm1624, %v1639, %v1640
      %v1642 = vrot.slane %v672, 4
      %v1643 = vsel %vm1624, %v1640, %v1642
      %v1644 = vrot.slane %v673, 4
      %v1645 = vsel %vm1624, %v1642, %v1644
      %v1646 = vrot.slane %v674, 4
      %v1647 = vrot.slane %v675, 4
      %v1648 = vsel %vm1624, %v1646, %v1647
      %v1649 = vrot.slane %v676, 4
      %v1650 = vsel %vm1624, %v1647, %v1649
      %v1651 = vrot.slane %v677, 4
      %v1652 = vsel %vm1624, %v1649, %v1651
      %v1653 = vrot.slane %v678, 4
      %v1654 = vrot.slane %v679, 4
      %v1655 = vsel %vm1624, %v1653, %v1654
      %v1656 = vrot.slane %v680, 4
      %v1657 = vsel %vm1624, %v1654, %v1656
      %v1658 = vrot.slane %v681, 4
      %v1659 = vsel %vm1624, %v1656, %v1658
      %v1660 = vrot.slane %v682, 4
      %v1661 = vrot.slane %v683, 4
      %v1662 = vsel %vm1624, %v1660, %v1661
      %v1663 = vrot.slane %v684, 4
      %v1664 = vsel %vm1624, %v1661, %v1663
      %v1665 = vrot.slane %v685, 4
      %v1666 = vsel %vm1624, %v1663, %v1665
      %v1667 = vrot.slane %v686, 4
      %v1668 = vrot.slane %v687, 4
      %v1669 = vsel %vm1624, %v1667, %v1668
      %v1670 = vrot.slane %v688, 4
      %v1671 = vsel %vm1624, %v1668, %v1670
      %v1672 = vrot.slane %v689, 4
      %v1673 = vsel %vm1624, %v1670, %v1672
      %v1674 = vrot.slane %v690, 4
      %v1675 = vrot.slane %v691, 4
      %v1676 = vsel %vm1624, %v1674, %v1675
      %v1677 = vrot.slane %v692, 4
      %v1678 = vsel %vm1624, %v1675, %v1677
      %v1679 = vrot.slane %v693, 4
      %v1680 = vsel %vm1624, %v1677, %v1679
      %v1681 = vrot.slane %v694, 4
      %v1682 = vrot.slane %v695, 4
      %v1683 = vsel %vm1624, %v1681, %v1682
      %v1684 = vrot.slane %v696, 4
      %v1685 = vsel %vm1624, %v1682, %v1684
      %v1686 = vrot.slane %v697, 4
      %v1687 = vsel %vm1624, %v1684, %v1686
      %v1688 = vrot.slane %v698, 4
      %v1689 = vrot.slane %v699, 4
      %v1690 = vsel %vm1624, %v1688, %v1689
      %v1691 = vrot.slane %v700, 4
      %v1692 = vsel %vm1624, %v1689, %v1691
      %v1693 = vrot.slane %v701, 4
      %v1694 = vsel %vm1624, %v1691, %v1693
      %v1695 = vrot.slane %v702, 4
      %v1696 = vrot.slane %v703, 4
      %v1697 = vsel %vm1624, %v1695, %v1696
      %v1698 = vrot.slane %v704, 4
      %v1699 = vsel %vm1624, %v1696, %v1698
      %v1700 = vrot.slane %v705, 4
      %v1701 = vsel %vm1624, %v1698, %v1700
      %v1702 = vrot.slane %v706, 4
      %v1703 = vrot.slane %v707, 4
      %v1704 = vsel %vm1624, %v1702, %v1703
      %v1705 = vrot.slane %v708, 4
      %v1706 = vsel %vm1624, %v1703, %v1705
      %v1707 = vrot.slane %v709, 4
      %v1708 = vsel %vm1624, %v1705, %v1707
      %v1709 = vrot.slane %v710, 4
      %v1710 = vrot.slane %v711, 4
      %v1711 = vsel %vm1624, %v1709, %v1710
      %v1712 = vrot.slane %v712, 4
      %v1713 = vsel %vm1624, %v1710, %v1712
      %v1714 = vrot.slane %v713, 4
      %v1715 = vsel %vm1624, %v1712, %v1714
      %v1716 = vrot.slane %v714, 4
      %v1717 = vrot.slane %v715, 4
      %v1718 = vsel %vm1624, %v1716, %v1717
      %v1719 = vrot.slane %v716, 4
      %v1720 = vsel %vm1624, %v1717, %v1719
      %v1721 = vrot.slane %v717, 4
      %v1722 = vsel %vm1624, %v1719, %v1721
      %v1723 = vrot.slane %v718, 4
      %v1724 = vrot.slane %v719, 4
      %v1725 = vsel %vm1624, %v1723, %v1724
      %v1726 = vrot.slane %v720, 4
      %v1727 = vsel %vm1624, %v1724, %v1726
      %v1728 = vrot.slane %v721, 4
      %v1729 = vsel %vm1624, %v1726, %v1728
      %v1730 = vrot.slane %v722, 4
      %v1731 = vrot.slane %v723, 4
      %v1732 = vsel %vm1624, %v1730, %v1731
      %v1733 = vrot.slane %v724, 4
      %v1734 = vsel %vm1624, %v1731, %v1733
      %v1735 = vrot.slane %v725, 4
      %v1736 = vsel %vm1624, %v1733, %v1735
      %v1737 = vrot.slane %v726, 4
      %v1738 = vrot.slane %v727, 4
      %v1739 = vsel %vm1624, %v1737, %v1738
      %v1740 = vrot.slane %v728, 4
      %v1741 = vsel %vm1624, %v1738, %v1740
      %v1742 = vrot.slane %v729, 4
      %v1743 = vsel %vm1624, %v1740, %v1742
      %v1744 = vrot.slane %v730, 4
      %v1745 = vrot.slane %v731, 4
      %v1746 = vsel %vm1624, %v1744, %v1745
      %v1747 = vrot.slane %v732, 4
      %v1748 = vsel %vm1624, %v1745, %v1747
      %v1749 = vrot.slane %v733, 4
      %v1750 = vsel %vm1624, %v1747, %v1749
      %v1751 = vrot.slane %v734, 4
      %v1752 = vrot.slane %v735, 4
      %v1753 = vsel %vm1624, %v1751, %v1752
      %v1754 = vrot.slane %v736, 4
      %v1755 = vsel %vm1624, %v1752, %v1754
      %v1756 = vrot.slane %v737, 4
      %v1757 = vsel %vm1624, %v1754, %v1756
      %v1758 = vrot.slane %v738, 4
      %v1759 = vrot.slane %v739, 4
      %v1760 = vsel %vm1624, %v1758, %v1759
      %v1761 = vrot.slane %v740, 4
      %v1762 = vsel %vm1624, %v1759, %v1761
      %v1763 = vrot.slane %v741, 4
      %v1764 = vsel %vm1624, %v1761, %v1763
      %v1765 = vrot.slane %v742, 4
      %v1766 = vrot.slane %v743, 4
      %v1767 = vsel %vm1624, %v1765, %v1766
      %v1768 = vrot.slane %v744, 4
      %v1769 = vsel %vm1624, %v1766, %v1768
      %v1770 = vrot.slane %v745, 4
      %v1771 = vsel %vm1624, %v1768, %v1770
      %v1772 = vrot.slane %v746, 4
      %v1773 = vrot.slane %v747, 4
      %v1774 = vsel %vm1624, %v1772, %v1773
      %v1775 = vrot.slane %v748, 4
      %v1776 = vsel %vm1624, %v1773, %v1775
      %v1777 = vrot.slane %v749, 4
      %v1778 = vsel %vm1624, %v1775, %v1777
      %v1779 = vrot.slane %v750, 4
      %v1780 = vrot.slane %v751, 4
      %v1781 = vsel %vm1624, %v1779, %v1780
      %v1782 = vrot.slane %v752, 4
      %v1783 = vsel %vm1624, %v1780, %v1782
      %v1784 = vrot.slane %v753, 4
      %v1785 = vsel %vm1624, %v1782, %v1784
      %v1786 = vrot.slane %v754, 4
      %v1787 = vrot.slane %v755, 4
      %v1788 = vsel %vm1624, %v1786, %v1787
      %v1789 = vrot.slane %v756, 4
      %v1790 = vsel %vm1624, %v1787, %v1789
      %v1791 = vrot.slane %v757, 4
      %v1792 = vsel %vm1624, %v1789, %v1791
      %v1865 = vmax.f32 %v1552, %v1627
      %v1866 = vmax.f32 %v1553, %v1629
      %v1867 = vmax.f32 %v1554, %v1631
      %v1868 = vmax.f32 %v1555, %v1634
      %v1869 = vmax.f32 %v1556, %v1636
      %v1870 = vmax.f32 %v1557, %v1638
      %v1871 = vmax.f32 %v1558, %v1641
      %v1872 = vmax.f32 %v1559, %v1643
      %v1873 = vmax.f32 %v1560, %v1645
      %v1874 = vmax.f32 %v1561, %v1648
      %v1875 = vmax.f32 %v1562, %v1650
      %v1876 = vmax.f32 %v1563, %v1652
      %v1877 = vmax.f32 %v1564, %v1655
      %v1878 = vmax.f32 %v1565, %v1657
      %v1879 = vmax.f32 %v1566, %v1659
      %v1880 = vmax.f32 %v1567, %v1662
      %v1881 = vmax.f32 %v1568, %v1664
      %v1882 = vmax.f32 %v1569, %v1666
      %v1883 = vmax.f32 %v1570, %v1669
      %v1884 = vmax.f32 %v1571, %v1671
      %v1885 = vmax.f32 %v1572, %v1673
      %v1886 = vmax.f32 %v1573, %v1676
      %v1887 = vmax.f32 %v1574, %v1678
      %v1888 = vmax.f32 %v1575, %v1680
      %v1889 = vmax.f32 %v1576, %v1683
      %v1890 = vmax.f32 %v1577, %v1685
      %v1891 = vmax.f32 %v1578, %v1687
      %v1892 = vmax.f32 %v1579, %v1690
      %v1893 = vmax.f32 %v1580, %v1692
      %v1894 = vmax.f32 %v1581, %v1694
      %v1895 = vmax.f32 %v1582, %v1697
      %v1896 = vmax.f32 %v1583, %v1699
      %v1897 = vmax.f32 %v1584, %v1701
      %v1898 = vmax.f32 %v1585, %v1704
      %v1899 = vmax.f32 %v1586, %v1706
      %v1900 = vmax.f32 %v1587, %v1708
      %v1901 = vmax.f32 %v1588, %v1711
      %v1902 = vmax.f32 %v1589, %v1713
      %v1903 = vmax.f32 %v1590, %v1715
      %v1904 = vmax.f32 %v1591, %v1718
      %v1905 = vmax.f32 %v1592, %v1720
      %v1906 = vmax.f32 %v1593, %v1722
      %v1907 = vmax.f32 %v1594, %v1725
      %v1908 = vmax.f32 %v1595, %v1727
      %v1909 = vmax.f32 %v1596, %v1729
      %v1910 = vmax.f32 %v1597, %v1732
      %v1911 = vmax.f32 %v1598, %v1734
      %v1912 = vmax.f32 %v1599, %v1736
      %v1913 = vmax.f32 %v1600, %v1739
      %v1914 = vmax.f32 %v1601, %v1741
      %v1915 = vmax.f32 %v1602, %v1743
      %v1916 = vmax.f32 %v1603, %v1746
      %v1917 = vmax.f32 %v1604, %v1748
      %v1918 = vmax.f32 %v1605, %v1750
      %v1919 = vmax.f32 %v1606, %v1753
      %v1920 = vmax.f32 %v1607, %v1755
      %v1921 = vmax.f32 %v1608, %v1757
      %v1922 = vmax.f32 %v1609, %v1760
      %v1923 = vmax.f32 %v1610, %v1762
      %v1924 = vmax.f32 %v1611, %v1764
      %v1925 = vmax.f32 %v1612, %v1767
      %v1926 = vmax.f32 %v1613, %v1769
      %v1927 = vmax.f32 %v1614, %v1771
      %v1928 = vmax.f32 %v1615, %v1774
      %v1929 = vmax.f32 %v1616, %v1776
      %v1930 = vmax.f32 %v1617, %v1778
      %v1931 = vmax.f32 %v1618, %v1781
      %v1932 = vmax.f32 %v1619, %v1783
      %v1933 = vmax.f32 %v1620, %v1785
      %v1934 = vmax.f32 %v1621, %v1788
      %v1935 = vmax.f32 %v1622, %v1790
      %v1936 = vmax.f32 %v1623, %v1792
      %v1937 = vmax.f32 %v1865, %v1868
      %v1938 = vmax.f32 %v1866, %v1869
      %v1939 = vmax.f32 %v1867, %v1870
      %v1940 = vmax.f32 %v1868, %v1871
      %v1941 = vmax.f32 %v1869, %v1872
      %v1942 = vmax.f32 %v1870, %v1873
      %v1943 = vmax.f32 %v1871, %v1874
      %v1944 = vmax.f32 %v1872, %v1875
      %v1945 = vmax.f32 %v1873, %v1876
      %v1946 = vmax.f32 %v1874, %v1877
      %v1947 = vmax.f32 %v1875, %v1878
      %v1948 = vmax.f32 %v1876, %v1879
      %v1949 = vmax.f32 %v1877, %v1880
      %v1950 = vmax.f32 %v1878, %v1881
      %v1951 = vmax.f32 %v1879, %v1882
      %v1952 = vmax.f32 %v1880, %v1883
      %v1953 = vmax.f32 %v1881, %v1884
      %v1954 = vmax.f32 %v1882, %v1885
      %v1955 = vmax.f32 %v1883, %v1886
      %v1956 = vmax.f32 %v1884, %v1887
      %v1957 = vmax.f32 %v1885, %v1888
      %v1958 = vmax.f32 %v1886, %v1889
      %v1959 = vmax.f32 %v1887, %v1890
      %v1960 = vmax.f32 %v1888, %v1891
      %v1961 = vmax.f32 %v1889, %v1892
      %v1962 = vmax.f32 %v1890, %v1893
      %v1963 = vmax.f32 %v1891, %v1894
      %v1964 = vmax.f32 %v1892, %v1895
      %v1965 = vmax.f32 %v1893, %v1896
      %v1966 = vmax.f32 %v1894, %v1897
      %v1967 = vmax.f32 %v1895, %v1898
      %v1968 = vmax.f32 %v1896, %v1899
      %v1969 = vmax.f32 %v1897, %v1900
      %v1970 = vmax.f32 %v1898, %v1901
      %v1971 = vmax.f32 %v1899, %v1902
      %v1972 = vmax.f32 %v1900, %v1903
      %v1973 = vmax.f32 %v1901, %v1904
      %v1974 = vmax.f32 %v1902, %v1905
      %v1975 = vmax.f32 %v1903, %v1906
      %v1976 = vmax.f32 %v1904, %v1907
      %v1977 = vmax.f32 %v1905, %v1908
      %v1978 = vmax.f32 %v1906, %v1909
      %v1979 = vmax.f32 %v1907, %v1910
      %v1980 = vmax.f32 %v1908, %v1911
      %v1981 = vmax.f32 %v1909, %v1912
      %v1982 = vmax.f32 %v1910, %v1913
      %v1983 = vmax.f32 %v1911, %v1914
      %v1984 = vmax.f32 %v1912, %v1915
      %v1985 = vmax.f32 %v1913, %v1916
      %v1986 = vmax.f32 %v1914, %v1917
      %v1987 = vmax.f32 %v1915, %v1918
      %v1988 = vmax.f32 %v1916, %v1919
      %v1989 = vmax.f32 %v1917, %v1920
      %v1990 = vmax.f32 %v1918, %v1921
      %v1991 = vmax.f32 %v1919, %v1922
      %v1992 = vmax.f32 %v1920, %v1923
      %v1993 = vmax.f32 %v1921, %v1924
      %v1994 = vmax.f32 %v1922, %v1925
      %v1995 = vmax.f32 %v1923, %v1926
      %v1996 = vmax.f32 %v1924, %v1927
      %v1997 = vmax.f32 %v1925, %v1928
      %v1998 = vmax.f32 %v1926, %v1929
      %v1999 = vmax.f32 %v1927, %v1930
      %v2000 = vmax.f32 %v1928, %v1931
      %v2001 = vmax.f32 %v1929, %v1932
      %v2002 = vmax.f32 %v1930, %v1933
      %v2003 = vmax.f32 %v1937, %v1943
      %v2004 = vmax.f32 %v1938, %v1944
      %v2005 = vmax.f32 %v1939, %v1945
      %v2006 = vmax.f32 %v1940, %v1946
      %v2007 = vmax.f32 %v1941, %v1947
      %v2008 = vmax.f32 %v1942, %v1948
      %v2009 = vmax.f32 %v1943, %v1949
      %v2010 = vmax.f32 %v1944, %v1950
      %v2011 = vmax.f32 %v1945, %v1951
      %v2012 = vmax.f32 %v1946, %v1952
      %v2013 = vmax.f32 %v1947, %v1953
      %v2014 = vmax.f32 %v1948, %v1954
      %v2015 = vmax.f32 %v1949, %v1955
      %v2016 = vmax.f32 %v1950, %v1956
      %v2017 = vmax.f32 %v1951, %v1957
      %v2018 = vmax.f32 %v1952, %v1958
      %v2019 = vmax.f32 %v1953, %v1959
      %v2020 = vmax.f32 %v1954, %v1960
      %v2021 = vmax.f32 %v1955, %v1961
      %v2022 = vmax.f32 %v1956, %v1962
      %v2023 = vmax.f32 %v1957, %v1963
      %v2024 = vmax.f32 %v1958, %v1964
      %v2025 = vmax.f32 %v1959, %v1965
      %v2026 = vmax.f32 %v1960, %v1966
      %v2027 = vmax.f32 %v1961, %v1967
      %v2028 = vmax.f32 %v1962, %v1968
      %v2029 = vmax.f32 %v1963, %v1969
      %v2030 = vmax.f32 %v1964, %v1970
      %v2031 = vmax.f32 %v1965, %v1971
      %v2032 = vmax.f32 %v1966, %v1972
      %v2033 = vmax.f32 %v1967, %v1973
      %v2034 = vmax.f32 %v1968, %v1974
      %v2035 = vmax.f32 %v1969, %v1975
      %v2036 = vmax.f32 %v1970, %v1976
      %v2037 = vmax.f32 %v1971, %v1977
      %v2038 = vmax.f32 %v1972, %v1978
      %v2039 = vmax.f32 %v1973, %v1979
      %v2040 = vmax.f32 %v1974, %v1980
      %v2041 = vmax.f32 %v1975, %v1981
      %v2042 = vmax.f32 %v1976, %v1982
      %v2043 = vmax.f32 %v1977, %v1983
      %v2044 = vmax.f32 %v1978, %v1984
      %v2045 = vmax.f32 %v1979, %v1985
      %v2046 = vmax.f32 %v1980, %v1986
      %v2047 = vmax.f32 %v1981, %v1987
      %v2048 = vmax.f32 %v1982, %v1988
      %v2049 = vmax.f32 %v1983, %v1989
      %v2050 = vmax.f32 %v1984, %v1990
      %v2051 = vmax.f32 %v1985, %v1991
      %v2052 = vmax.f32 %v1986, %v1992
      %v2053 = vmax.f32 %v1987, %v1993
      %v2054 = vmax.f32 %v1988, %v1994
      %v2055 = vmax.f32 %v1989, %v1995
      %v2056 = vmax.f32 %v1990, %v1996
      %v2057 = vmax.f32 %v1991, %v1997
      %v2058 = vmax.f32 %v1992, %v1998
      %v2059 = vmax.f32 %v1993, %v1999
      %v2060 = vmax.f32 %v1994, %v2000
      %v2061 = vmax.f32 %v1995, %v2001
      %v2062 = vmax.f32 %v1996, %v2002
      %v2063 = vmax.f32 %v2003, %v1877
      %v2064 = vmax.f32 %v2004, %v1878
      %v2065 = vmax.f32 %v2005, %v1879
      %v2066 = vmax.f32 %v2006, %v1880
      %v2067 = vmax.f32 %v2007, %v1881
      %v2068 = vmax.f32 %v2008, %v1882
      %v2069 = vmax.f32 %v2009, %v1883
      %v2070 = vmax.f32 %v2010, %v1884
      %v2071 = vmax.f32 %v2011, %v1885
      %v2072 = vmax.f32 %v2012, %v1886
      %v2073 = vmax.f32 %v2013, %v1887
      %v2074 = vmax.f32 %v2014, %v1888
      %v2075 = vmax.f32 %v2015, %v1889
      %v2076 = vmax.f32 %v2016, %v1890
      %v2077 = vmax.f32 %v2017, %v1891
      %v2078 = vmax.f32 %v2018, %v1892
      %v2079 = vmax.f32 %v2019, %v1893
      %v2080 = vmax.f32 %v2020, %v1894
      %v2081 = vmax.f32 %v2021, %v1895
      %v2082 = vmax.f32 %v2022, %v1896
      %v2083 = vmax.f32 %v2023, %v1897
      %v2084 = vmax.f32 %v2024, %v1898
      %v2085 = vmax.f32 %v2025, %v1899
      %v2086 = vmax.f32 %v2026, %v1900
      %v2087 = vmax.f32 %v2027, %v1901
      %v2088 = vmax.f32 %v2028, %v1902
      %v2089 = vmax.f32 %v2029, %v1903
      %v2090 = vmax.f32 %v2030, %v1904
      %v2091 = vmax.f32 %v2031, %v1905
      %v2092 = vmax.f32 %v2032, %v1906
      %v2093 = vmax.f32 %v2033, %v1907
      %v2094 = vmax.f32 %v2034, %v1908
      %v2095 = vmax.f32 %v2035, %v1909
      %v2096 = vmax.f32 %v2036, %v1910
      %v2097 = vmax.f32 %v2037, %v1911
      %v2098 = vmax.f32 %v2038, %v1912
      %v2099 = vmax.f32 %v2039, %v1913
      %v2100 = vmax.f32 %v2040, %v1914
      %v2101 = vmax.f32 %v2041, %v1915
      %v2102 = vmax.f32 %v2042, %v1916
      %v2103 = vmax.f32 %v2043, %v1917
      %v2104 = vmax.f32 %v2044, %v1918
      %v2105 = vmax.f32 %v2045, %v1919
      %v2106 = vmax.f32 %v2046, %v1920
      %v2107 = vmax.f32 %v2047, %v1921
      %v2108 = vmax.f32 %v2048, %v1922
      %v2109 = vmax.f32 %v2049, %v1923
      %v2110 = vmax.f32 %v2050, %v1924
      %v2111 = vmax.f32 %v2051, %v1925
      %v2112 = vmax.f32 %v2052, %v1926
      %v2113 = vmax.f32 %v2053, %v1927
      %v2114 = vmax.f32 %v2054, %v1928
      %v2115 = vmax.f32 %v2055, %v1929
      %v2116 = vmax.f32 %v2056, %v1930
      %v2117 = vmax.f32 %v2057, %v1931
      %v2118 = vmax.f32 %v2058, %v1932
      %v2119 = vmax.f32 %v2059, %v1933
      %v2120 = vmax.f32 %v2060, %v1934
      %v2121 = vmax.f32 %v2061, %v1935
      %v2122 = vmax.f32 %v2062, %v1936
      %v2183 = vrot.slane %v2063, 1
      %v2184 = vrot.slane %v2064, 1
      %v2185 = vsel %vm854, %v2183, %v2184
      %v2186 = vrot.slane %v2065, 1
      %v2187 = vsel %vm854, %v2184, %v2186
      %v2188 = vrot.slane %v2066, 1
      %v2189 = vrot.slane %v2067, 1
      %v2190 = vsel %vm854, %v2188, %v2189
      %v2191 = vrot.slane %v2068, 1
      %v2192 = vsel %vm854, %v2189, %v2191
      %v2193 = vrot.slane %v2069, 1
      %v2194 = vrot.slane %v2070, 1
      %v2195 = vsel %vm854, %v2193, %v2194
      %v2196 = vrot.slane %v2071, 1
      %v2197 = vsel %vm854, %v2194, %v2196
      %v2198 = vrot.slane %v2072, 1
      %v2199 = vrot.slane %v2073, 1
      %v2200 = vsel %vm854, %v2198, %v2199
      %v2201 = vrot.slane %v2074, 1
      %v2202 = vsel %vm854, %v2199, %v2201
      %v2203 = vrot.slane %v2075, 1
      %v2204 = vrot.slane %v2076, 1
      %v2205 = vsel %vm854, %v2203, %v2204
      %v2206 = vrot.slane %v2077, 1
      %v2207 = vsel %vm854, %v2204, %v2206
      %v2208 = vrot.slane %v2078, 1
      %v2209 = vrot.slane %v2079, 1
      %v2210 = vsel %vm854, %v2208, %v2209
      %v2211 = vrot.slane %v2080, 1
      %v2212 = vsel %vm854, %v2209, %v2211
      %v2213 = vrot.slane %v2081, 1
      %v2214 = vrot.slane %v2082, 1
      %v2215 = vsel %vm854, %v2213, %v2214
      %v2216 = vrot.slane %v2083, 1
      %v2217 = vsel %vm854, %v2214, %v2216
      %v2218 = vrot.slane %v2084, 1
      %v2219 = vrot.slane %v2085, 1
      %v2220 = vsel %vm854, %v2218, %v2219
      %v2221 = vrot.slane %v2086, 1
      %v2222 = vsel %vm854, %v2219, %v2221
      %v2223 = vrot.slane %v2087, 1
      %v2224 = vrot.slane %v2088, 1
      %v2225 = vsel %vm854, %v2223, %v2224
      %v2226 = vrot.slane %v2089, 1
      %v2227 = vsel %vm854, %v2224, %v2226
      %v2228 = vrot.slane %v2090, 1
      %v2229 = vrot.slane %v2091, 1
      %v2230 = vsel %vm854, %v2228, %v2229
      %v2231 = vrot.slane %v2092, 1
      %v2232 = vsel %vm854, %v2229, %v2231
      %v2233 = vrot.slane %v2093, 1
      %v2234 = vrot.slane %v2094, 1
      %v2235 = vsel %vm854, %v2233, %v2234
      %v2236 = vrot.slane %v2095, 1
      %v2237 = vsel %vm854, %v2234, %v2236
      %v2238 = vrot.slane %v2096, 1
      %v2239 = vrot.slane %v2097, 1
      %v2240 = vsel %vm854, %v2238, %v2239
      %v2241 = vrot.slane %v2098, 1
      %v2242 = vsel %vm854, %v2239, %v2241
      %v2243 = vrot.slane %v2099, 1
      %v2244 = vrot.slane %v2100, 1
      %v2245 = vsel %vm854, %v2243, %v2244
      %v2246 = vrot.slane %v2101, 1
      %v2247 = vsel %vm854, %v2244, %v2246
      %v2248 = vrot.slane %v2102, 1
      %v2249 = vrot.slane %v2103, 1
      %v2250 = vsel %vm854, %v2248, %v2249
      %v2251 = vrot.slane %v2104, 1
      %v2252 = vsel %vm854, %v2249, %v2251
      %v2253 = vrot.slane %v2105, 1
      %v2254 = vrot.slane %v2106, 1
      %v2255 = vsel %vm854, %v2253, %v2254
      %v2256 = vrot.slane %v2107, 1
      %v2257 = vsel %vm854, %v2254, %v2256
      %v2258 = vrot.slane %v2108, 1
      %v2259 = vrot.slane %v2109, 1
      %v2260 = vsel %vm854, %v2258, %v2259
      %v2261 = vrot.slane %v2110, 1
      %v2262 = vsel %vm854, %v2259, %v2261
      %v2263 = vrot.slane %v2111, 1
      %v2264 = vrot.slane %v2112, 1
      %v2265 = vsel %vm854, %v2263, %v2264
      %v2266 = vrot.slane %v2113, 1
      %v2267 = vsel %vm854, %v2264, %v2266
      %v2268 = vrot.slane %v2114, 1
      %v2269 = vrot.slane %v2115, 1
      %v2270 = vsel %vm854, %v2268, %v2269
      %v2271 = vrot.slane %v2116, 1
      %v2272 = vsel %vm854, %v2269, %v2271
      %v2273 = vrot.slane %v2117, 1
      %v2274 = vrot.slane %v2118, 1
      %v2275 = vsel %vm854, %v2273, %v2274
      %v2276 = vrot.slane %v2119, 1
      %v2277 = vsel %vm854, %v2274, %v2276
      %v2278 = vrot.slane %v2120, 1
      %v2279 = vrot.slane %v2121, 1
      %v2280 = vsel %vm854, %v2278, %v2279
      %v2281 = vrot.slane %v2122, 1
      %v2282 = vsel %vm854, %v2279, %v2281
      %v2343 = vmax.f32 %v2063, %v2185
      %v2344 = vmax.f32 %v2064, %v2187
      %v2345 = vmax.f32 %v2065, %v2186
      %v2346 = vmax.f32 %v2066, %v2190
      %v2347 = vmax.f32 %v2067, %v2192
      %v2348 = vmax.f32 %v2068, %v2191
      %v2349 = vmax.f32 %v2069, %v2195
      %v2350 = vmax.f32 %v2070, %v2197
      %v2351 = vmax.f32 %v2071, %v2196
      %v2352 = vmax.f32 %v2072, %v2200
      %v2353 = vmax.f32 %v2073, %v2202
      %v2354 = vmax.f32 %v2074, %v2201
      %v2355 = vmax.f32 %v2075, %v2205
      %v2356 = vmax.f32 %v2076, %v2207
      %v2357 = vmax.f32 %v2077, %v2206
      %v2358 = vmax.f32 %v2078, %v2210
      %v2359 = vmax.f32 %v2079, %v2212
      %v2360 = vmax.f32 %v2080, %v2211
      %v2361 = vmax.f32 %v2081, %v2215
      %v2362 = vmax.f32 %v2082, %v2217
      %v2363 = vmax.f32 %v2083, %v2216
      %v2364 = vmax.f32 %v2084, %v2220
      %v2365 = vmax.f32 %v2085, %v2222
      %v2366 = vmax.f32 %v2086, %v2221
      %v2367 = vmax.f32 %v2087, %v2225
      %v2368 = vmax.f32 %v2088, %v2227
      %v2369 = vmax.f32 %v2089, %v2226
      %v2370 = vmax.f32 %v2090, %v2230
      %v2371 = vmax.f32 %v2091, %v2232
      %v2372 = vmax.f32 %v2092, %v2231
      %v2373 = vmax.f32 %v2093, %v2235
      %v2374 = vmax.f32 %v2094, %v2237
      %v2375 = vmax.f32 %v2095, %v2236
      %v2376 = vmax.f32 %v2096, %v2240
      %v2377 = vmax.f32 %v2097, %v2242
      %v2378 = vmax.f32 %v2098, %v2241
      %v2379 = vmax.f32 %v2099, %v2245
      %v2380 = vmax.f32 %v2100, %v2247
      %v2381 = vmax.f32 %v2101, %v2246
      %v2382 = vmax.f32 %v2102, %v2250
      %v2383 = vmax.f32 %v2103, %v2252
      %v2384 = vmax.f32 %v2104, %v2251
      %v2385 = vmax.f32 %v2105, %v2255
      %v2386 = vmax.f32 %v2106, %v2257
      %v2387 = vmax.f32 %v2107, %v2256
      %v2388 = vmax.f32 %v2108, %v2260
      %v2389 = vmax.f32 %v2109, %v2262
      %v2390 = vmax.f32 %v2110, %v2261
      %v2391 = vmax.f32 %v2111, %v2265
      %v2392 = vmax.f32 %v2112, %v2267
      %v2393 = vmax.f32 %v2113, %v2266
      %v2394 = vmax.f32 %v2114, %v2270
      %v2395 = vmax.f32 %v2115, %v2272
      %v2396 = vmax.f32 %v2116, %v2271
      %v2397 = vmax.f32 %v2117, %v2275
      %v2398 = vmax.f32 %v2118, %v2277
      %v2399 = vmax.f32 %v2119, %v2276
      %v2400 = vmax.f32 %v2120, %v2280
      %v2401 = vmax.f32 %v2121, %v2282
      %v2402 = vmax.f32 %v2122, %v2281
      %v2463 = vrot.slane %v2343, 2
      %v2464 = vrot.slane %v2344, 2
      %v2465 = vsel %vm1311, %v2463, %v2464
      %v2466 = vrot.slane %v2345, 2
      %v2467 = vsel %vm1311, %v2464, %v2466
      %v2468 = vrot.slane %v2346, 2
      %v2469 = vrot.slane %v2347, 2
      %v2470 = vsel %vm1311, %v2468, %v2469
      %v2471 = vrot.slane %v2348, 2
      %v2472 = vsel %vm1311, %v2469, %v2471
      %v2473 = vrot.slane %v2349, 2
      %v2474 = vrot.slane %v2350, 2
      %v2475 = vsel %vm1311, %v2473, %v2474
      %v2476 = vrot.slane %v2351, 2
      %v2477 = vsel %vm1311, %v2474, %v2476
      %v2478 = vrot.slane %v2352, 2
      %v2479 = vrot.slane %v2353, 2
      %v2480 = vsel %vm1311, %v2478, %v2479
      %v2481 = vrot.slane %v2354, 2
      %v2482 = vsel %vm1311, %v2479, %v2481
      %v2483 = vrot.slane %v2355, 2
      %v2484 = vrot.slane %v2356, 2
      %v2485 = vsel %vm1311, %v2483, %v2484
      %v2486 = vrot.slane %v2357, 2
      %v2487 = vsel %vm1311, %v2484, %v2486
      %v2488 = vrot.slane %v2358, 2
      %v2489 = vrot.slane %v2359, 2
      %v2490 = vsel %vm1311, %v2488, %v2489
      %v2491 = vrot.slane %v2360, 2
      %v2492 = vsel %vm1311, %v2489, %v2491
      %v2493 = vrot.slane %v2361, 2
      %v2494 = vrot.slane %v2362, 2
      %v2495 = vsel %vm1311, %v2493, %v2494
      %v2496 = vrot.slane %v2363, 2
      %v2497 = vsel %vm1311, %v2494, %v2496
      %v2498 = vrot.slane %v2364, 2
      %v2499 = vrot.slane %v2365, 2
      %v2500 = vsel %vm1311, %v2498, %v2499
      %v2501 = vrot.slane %v2366, 2
      %v2502 = vsel %vm1311, %v2499, %v2501
      %v2503 = vrot.slane %v2367, 2
      %v2504 = vrot.slane %v2368, 2
      %v2505 = vsel %vm1311, %v2503, %v2504
      %v2506 = vrot.slane %v2369, 2
      %v2507 = vsel %vm1311, %v2504, %v2506
      %v2508 = vrot.slane %v2370, 2
      %v2509 = vrot.slane %v2371, 2
      %v2510 = vsel %vm1311, %v2508, %v2509
      %v2511 = vrot.slane %v2372, 2
      %v2512 = vsel %vm1311, %v2509, %v2511
      %v2513 = vrot.slane %v2373, 2
      %v2514 = vrot.slane %v2374, 2
      %v2515 = vsel %vm1311, %v2513, %v2514
      %v2516 = vrot.slane %v2375, 2
      %v2517 = vsel %vm1311, %v2514, %v2516
      %v2518 = vrot.slane %v2376, 2
      %v2519 = vrot.slane %v2377, 2
      %v2520 = vsel %vm1311, %v2518, %v2519
      %v2521 = vrot.slane %v2378, 2
      %v2522 = vsel %vm1311, %v2519, %v2521
      %v2523 = vrot.slane %v2379, 2
      %v2524 = vrot.slane %v2380, 2
      %v2525 = vsel %vm1311, %v2523, %v2524
      %v2526 = vrot.slane %v2381, 2
      %v2527 = vsel %vm1311, %v2524, %v2526
      %v2528 = vrot.slane %v2382, 2
      %v2529 = vrot.slane %v2383, 2
      %v2530 = vsel %vm1311, %v2528, %v2529
      %v2531 = vrot.slane %v2384, 2
      %v2532 = vsel %vm1311, %v2529, %v2531
      %v2533 = vrot.slane %v2385, 2
      %v2534 = vrot.slane %v2386, 2
      %v2535 = vsel %vm1311, %v2533, %v2534
      %v2536 = vrot.slane %v2387, 2
      %v2537 = vsel %vm1311, %v2534, %v2536
      %v2538 = vrot.slane %v2388, 2
      %v2539 = vrot.slane %v2389, 2
      %v2540 = vsel %vm1311, %v2538, %v2539
      %v2541 = vrot.slane %v2390, 2
      %v2542 = vsel %vm1311, %v2539, %v2541
      %v2543 = vrot.slane %v2391, 2
      %v2544 = vrot.slane %v2392, 2
      %v2545 = vsel %vm1311, %v2543, %v2544
      %v2546 = vrot.slane %v2393, 2
      %v2547 = vsel %vm1311, %v2544, %v2546
      %v2548 = vrot.slane %v2394, 2
      %v2549 = vrot.slane %v2395, 2
      %v2550 = vsel %vm1311, %v2548, %v2549
      %v2551 = vrot.slane %v2396, 2
      %v2552 = vsel %vm1311, %v2549, %v2551
      %v2553 = vrot.slane %v2397, 2
      %v2554 = vrot.slane %v2398, 2
      %v2555 = vsel %vm1311, %v2553, %v2554
      %v2556 = vrot.slane %v2399, 2
      %v2557 = vsel %vm1311, %v2554, %v2556
      %v2558 = vrot.slane %v2400, 2
      %v2559 = vrot.slane %v2401, 2
      %v2560 = vsel %vm1311, %v2558, %v2559
      %v2561 = vrot.slane %v2402, 2
      %v2562 = vsel %vm1311, %v2559, %v2561
      %v2623 = vmax.f32 %v2343, %v2465
      %v2624 = vmax.f32 %v2344, %v2467
      %v2625 = vmax.f32 %v2345, %v2466
      %v2626 = vmax.f32 %v2346, %v2470
      %v2627 = vmax.f32 %v2347, %v2472
      %v2628 = vmax.f32 %v2348, %v2471
      %v2629 = vmax.f32 %v2349, %v2475
      %v2630 = vmax.f32 %v2350, %v2477
      %v2631 = vmax.f32 %v2351, %v2476
      %v2632 = vmax.f32 %v2352, %v2480
      %v2633 = vmax.f32 %v2353, %v2482
      %v2634 = vmax.f32 %v2354, %v2481
      %v2635 = vmax.f32 %v2355, %v2485
      %v2636 = vmax.f32 %v2356, %v2487
      %v2637 = vmax.f32 %v2357, %v2486
      %v2638 = vmax.f32 %v2358, %v2490
      %v2639 = vmax.f32 %v2359, %v2492
      %v2640 = vmax.f32 %v2360, %v2491
      %v2641 = vmax.f32 %v2361, %v2495
      %v2642 = vmax.f32 %v2362, %v2497
      %v2643 = vmax.f32 %v2363, %v2496
      %v2644 = vmax.f32 %v2364, %v2500
      %v2645 = vmax.f32 %v2365, %v2502
      %v2646 = vmax.f32 %v2366, %v2501
      %v2647 = vmax.f32 %v2367, %v2505
      %v2648 = vmax.f32 %v2368, %v2507
      %v2649 = vmax.f32 %v2369, %v2506
      %v2650 = vmax.f32 %v2370, %v2510
      %v2651 = vmax.f32 %v2371, %v2512
      %v2652 = vmax.f32 %v2372, %v2511
      %v2653 = vmax.f32 %v2373, %v2515
      %v2654 = vmax.f32 %v2374, %v2517
      %v2655 = vmax.f32 %v2375, %v2516
      %v2656 = vmax.f32 %v2376, %v2520
      %v2657 = vmax.f32 %v2377, %v2522
      %v2658 = vmax.f32 %v2378, %v2521
      %v2659 = vmax.f32 %v2379, %v2525
      %v2660 = vmax.f32 %v2380, %v2527
      %v2661 = vmax.f32 %v2381, %v2526
      %v2662 = vmax.f32 %v2382, %v2530
      %v2663 = vmax.f32 %v2383, %v2532
      %v2664 = vmax.f32 %v2384, %v2531
      %v2665 = vmax.f32 %v2385, %v2535
      %v2666 = vmax.f32 %v2386, %v2537
      %v2667 = vmax.f32 %v2387, %v2536
      %v2668 = vmax.f32 %v2388, %v2540
      %v2669 = vmax.f32 %v2389, %v2542
      %v2670 = vmax.f32 %v2390, %v2541
      %v2671 = vmax.f32 %v2391, %v2545
      %v2672 = vmax.f32 %v2392, %v2547
      %v2673 = vmax.f32 %v2393, %v2546
      %v2674 = vmax.f32 %v2394, %v2550
      %v2675 = vmax.f32 %v2395, %v2552
      %v2676 = vmax.f32 %v2396, %v2551
      %v2677 = vmax.f32 %v2397, %v2555
      %v2678 = vmax.f32 %v2398, %v2557
      %v2679 = vmax.f32 %v2399, %v2556
      %v2680 = vmax.f32 %v2400, %v2560
      %v2681 = vmax.f32 %v2401, %v2562
      %v2682 = vmax.f32 %v2402, %v2561
      %v2683 = vrot.slane %v2063, 4
      %v2684 = vrot.slane %v2064, 4
      %v2685 = vsel %vm1624, %v2683, %v2684
      %v2686 = vrot.slane %v2065, 4
      %v2687 = vsel %vm1624, %v2684, %v2686
      %v2688 = vrot.slane %v2066, 4
      %v2689 = vrot.slane %v2067, 4
      %v2690 = vsel %vm1624, %v2688, %v2689
      %v2691 = vrot.slane %v2068, 4
      %v2692 = vsel %vm1624, %v2689, %v2691
      %v2693 = vrot.slane %v2069, 4
      %v2694 = vrot.slane %v2070, 4
      %v2695 = vsel %vm1624, %v2693, %v2694
      %v2696 = vrot.slane %v2071, 4
      %v2697 = vsel %vm1624, %v2694, %v2696
      %v2698 = vrot.slane %v2072, 4
      %v2699 = vrot.slane %v2073, 4
      %v2700 = vsel %vm1624, %v2698, %v2699
      %v2701 = vrot.slane %v2074, 4
      %v2702 = vsel %vm1624, %v2699, %v2701
      %v2703 = vrot.slane %v2075, 4
      %v2704 = vrot.slane %v2076, 4
      %v2705 = vsel %vm1624, %v2703, %v2704
      %v2706 = vrot.slane %v2077, 4
      %v2707 = vsel %vm1624, %v2704, %v2706
      %v2708 = vrot.slane %v2078, 4
      %v2709 = vrot.slane %v2079, 4
      %v2710 = vsel %vm1624, %v2708, %v2709
      %v2711 = vrot.slane %v2080, 4
      %v2712 = vsel %vm1624, %v2709, %v2711
      %v2713 = vrot.slane %v2081, 4
      %v2714 = vrot.slane %v2082, 4
      %v2715 = vsel %vm1624, %v2713, %v2714
      %v2716 = vrot.slane %v2083, 4
      %v2717 = vsel %vm1624, %v2714, %v2716
      %v2718 = vrot.slane %v2084, 4
      %v2719 = vrot.slane %v2085, 4
      %v2720 = vsel %vm1624, %v2718, %v2719
      %v2721 = vrot.slane %v2086, 4
      %v2722 = vsel %vm1624, %v2719, %v2721
      %v2723 = vrot.slane %v2087, 4
      %v2724 = vrot.slane %v2088, 4
      %v2725 = vsel %vm1624, %v2723, %v2724
      %v2726 = vrot.slane %v2089, 4
      %v2727 = vsel %vm1624, %v2724, %v2726
      %v2728 = vrot.slane %v2090, 4
      %v2729 = vrot.slane %v2091, 4
      %v2730 = vsel %vm1624, %v2728, %v2729
      %v2731 = vrot.slane %v2092, 4
      %v2732 = vsel %vm1624, %v2729, %v2731
      %v2733 = vrot.slane %v2093, 4
      %v2734 = vrot.slane %v2094, 4
      %v2735 = vsel %vm1624, %v2733, %v2734
      %v2736 = vrot.slane %v2095, 4
      %v2737 = vsel %vm1624, %v2734, %v2736
      %v2738 = vrot.slane %v2096, 4
      %v2739 = vrot.slane %v2097, 4
      %v2740 = vsel %vm1624, %v2738, %v2739
      %v2741 = vrot.slane %v2098, 4
      %v2742 = vsel %vm1624, %v2739, %v2741
      %v2743 = vrot.slane %v2099, 4
      %v2744 = vrot.slane %v2100, 4
      %v2745 = vsel %vm1624, %v2743, %v2744
      %v2746 = vrot.slane %v2101, 4
      %v2747 = vsel %vm1624, %v2744, %v2746
      %v2748 = vrot.slane %v2102, 4
      %v2749 = vrot.slane %v2103, 4
      %v2750 = vsel %vm1624, %v2748, %v2749
      %v2751 = vrot.slane %v2104, 4
      %v2752 = vsel %vm1624, %v2749, %v2751
      %v2753 = vrot.slane %v2105, 4
      %v2754 = vrot.slane %v2106, 4
      %v2755 = vsel %vm1624, %v2753, %v2754
      %v2756 = vrot.slane %v2107, 4
      %v2757 = vsel %vm1624, %v2754, %v2756
      %v2758 = vrot.slane %v2108, 4
      %v2759 = vrot.slane %v2109, 4
      %v2760 = vsel %vm1624, %v2758, %v2759
      %v2761 = vrot.slane %v2110, 4
      %v2762 = vsel %vm1624, %v2759, %v2761
      %v2763 = vrot.slane %v2111, 4
      %v2764 = vrot.slane %v2112, 4
      %v2765 = vsel %vm1624, %v2763, %v2764
      %v2766 = vrot.slane %v2113, 4
      %v2767 = vsel %vm1624, %v2764, %v2766
      %v2768 = vrot.slane %v2114, 4
      %v2769 = vrot.slane %v2115, 4
      %v2770 = vsel %vm1624, %v2768, %v2769
      %v2771 = vrot.slane %v2116, 4
      %v2772 = vsel %vm1624, %v2769, %v2771
      %v2773 = vrot.slane %v2117, 4
      %v2774 = vrot.slane %v2118, 4
      %v2775 = vsel %vm1624, %v2773, %v2774
      %v2776 = vrot.slane %v2119, 4
      %v2777 = vsel %vm1624, %v2774, %v2776
      %v2778 = vrot.slane %v2120, 4
      %v2779 = vrot.slane %v2121, 4
      %v2780 = vsel %vm1624, %v2778, %v2779
      %v2781 = vrot.slane %v2122, 4
      %v2782 = vsel %vm1624, %v2779, %v2781
      %v2843 = vmax.f32 %v2623, %v2685
      %v2844 = vmax.f32 %v2624, %v2687
      %v2845 = vmax.f32 %v2625, %v2686
      %v2846 = vmax.f32 %v2626, %v2690
      %v2847 = vmax.f32 %v2627, %v2692
      %v2848 = vmax.f32 %v2628, %v2691
      %v2849 = vmax.f32 %v2629, %v2695
      %v2850 = vmax.f32 %v2630, %v2697
      %v2851 = vmax.f32 %v2631, %v2696
      %v2852 = vmax.f32 %v2632, %v2700
      %v2853 = vmax.f32 %v2633, %v2702
      %v2854 = vmax.f32 %v2634, %v2701
      %v2855 = vmax.f32 %v2635, %v2705
      %v2856 = vmax.f32 %v2636, %v2707
      %v2857 = vmax.f32 %v2637, %v2706
      %v2858 = vmax.f32 %v2638, %v2710
      %v2859 = vmax.f32 %v2639, %v2712
      %v2860 = vmax.f32 %v2640, %v2711
      %v2861 = vmax.f32 %v2641, %v2715
      %v2862 = vmax.f32 %v2642, %v2717
      %v2863 = vmax.f32 %v2643, %v2716
      %v2864 = vmax.f32 %v2644, %v2720
      %v2865 = vmax.f32 %v2645, %v2722
      %v2866 = vmax.f32 %v2646, %v2721
      %v2867 = vmax.f32 %v2647, %v2725
      %v2868 = vmax.f32 %v2648, %v2727
      %v2869 = vmax.f32 %v2649, %v2726
      %v2870 = vmax.f32 %v2650, %v2730
      %v2871 = vmax.f32 %v2651, %v2732
      %v2872 = vmax.f32 %v2652, %v2731
      %v2873 = vmax.f32 %v2653, %v2735
      %v2874 = vmax.f32 %v2654, %v2737
      %v2875 = vmax.f32 %v2655, %v2736
      %v2876 = vmax.f32 %v2656, %v2740
      %v2877 = vmax.f32 %v2657, %v2742
      %v2878 = vmax.f32 %v2658, %v2741
      %v2879 = vmax.f32 %v2659, %v2745
      %v2880 = vmax.f32 %v2660, %v2747
      %v2881 = vmax.f32 %v2661, %v2746
      %v2882 = vmax.f32 %v2662, %v2750
      %v2883 = vmax.f32 %v2663, %v2752
      %v2884 = vmax.f32 %v2664, %v2751
      %v2885 = vmax.f32 %v2665, %v2755
      %v2886 = vmax.f32 %v2666, %v2757
      %v2887 = vmax.f32 %v2667, %v2756
      %v2888 = vmax.f32 %v2668, %v2760
      %v2889 = vmax.f32 %v2669, %v2762
      %v2890 = vmax.f32 %v2670, %v2761
      %v2891 = vmax.f32 %v2671, %v2765
      %v2892 = vmax.f32 %v2672, %v2767
      %v2893 = vmax.f32 %v2673, %v2766
      %v2894 = vmax.f32 %v2674, %v2770
      %v2895 = vmax.f32 %v2675, %v2772
      %v2896 = vmax.f32 %v2676, %v2771
      %v2897 = vmax.f32 %v2677, %v2775
      %v2898 = vmax.f32 %v2678, %v2777
      %v2899 = vmax.f32 %v2679, %v2776
      %v2900 = vmax.f32 %v2680, %v2780
      %v2901 = vmax.f32 %v2681, %v2782
      %v2902 = vmax.f32 %v2682, %v2781
      %v2903 = vmax.f32 %v2843, %v2846
      %v2904 = vmax.f32 %v2844, %v2847
      %v2905 = vmax.f32 %v2845, %v2848
      %v2906 = vmax.f32 %v2846, %v2849
      %v2907 = vmax.f32 %v2847, %v2850
      %v2908 = vmax.f32 %v2848, %v2851
      %v2909 = vmax.f32 %v2849, %v2852
      %v2910 = vmax.f32 %v2850, %v2853
      %v2911 = vmax.f32 %v2851, %v2854
      %v2912 = vmax.f32 %v2852, %v2855
      %v2913 = vmax.f32 %v2853, %v2856
      %v2914 = vmax.f32 %v2854, %v2857
      %v2915 = vmax.f32 %v2855, %v2858
      %v2916 = vmax.f32 %v2856, %v2859
      %v2917 = vmax.f32 %v2857, %v2860
      %v2918 = vmax.f32 %v2858, %v2861
      %v2919 = vmax.f32 %v2859, %v2862
      %v2920 = vmax.f32 %v2860, %v2863
      %v2921 = vmax.f32 %v2861, %v2864
      %v2922 = vmax.f32 %v2862, %v2865
      %v2923 = vmax.f32 %v2863, %v2866
      %v2924 = vmax.f32 %v2864, %v2867
      %v2925 = vmax.f32 %v2865, %v2868
      %v2926 = vmax.f32 %v2866, %v2869
      %v2927 = vmax.f32 %v2867, %v2870
      %v2928 = vmax.f32 %v2868, %v2871
      %v2929 = vmax.f32 %v2869, %v2872
      %v2930 = vmax.f32 %v2870, %v2873
      %v2931 = vmax.f32 %v2871, %v2874
      %v2932 = vmax.f32 %v2872, %v2875
      %v2933 = vmax.f32 %v2873, %v2876
      %v2934 = vmax.f32 %v2874, %v2877
      %v2935 = vmax.f32 %v2875, %v2878
      %v2936 = vmax.f32 %v2876, %v2879
      %v2937 = vmax.f32 %v2877, %v2880
      %v2938 = vmax.f32 %v2878, %v2881
      %v2939 = vmax.f32 %v2879, %v2882
      %v2940 = vmax.f32 %v2880, %v2883
      %v2941 = vmax.f32 %v2881, %v2884
      %v2942 = vmax.f32 %v2882, %v2885
      %v2943 = vmax.f32 %v2883, %v2886
      %v2944 = vmax.f32 %v2884, %v2887
      %v2945 = vmax.f32 %v2885, %v2888
      %v2946 = vmax.f32 %v2886, %v2889
      %v2947 = vmax.f32 %v2887, %v2890
      %v2948 = vmax.f32 %v2888, %v2891
      %v2949 = vmax.f32 %v2889, %v2892
      %v2950 = vmax.f32 %v2890, %v2893
      %v2951 = vmax.f32 %v2891, %v2894
      %v2952 = vmax.f32 %v2892, %v2895
      %v2953 = vmax.f32 %v2893, %v2896
      %v2954 = vmax.f32 %v2894, %v2897
      %v2955 = vmax.f32 %v2895, %v2898
      %v2956 = vmax.f32 %v2896, %v2899
      %v2957 = vmax.f32 %v2903, %v2909
      %v2958 = vmax.f32 %v2904, %v2910
      %v2959 = vmax.f32 %v2905, %v2911
      %v2960 = vmax.f32 %v2906, %v2912
      %v2961 = vmax.f32 %v2907, %v2913
      %v2962 = vmax.f32 %v2908, %v2914
      %v2963 = vmax.f32 %v2909, %v2915
      %v2964 = vmax.f32 %v2910, %v2916
      %v2965 = vmax.f32 %v2911, %v2917
      %v2966 = vmax.f32 %v2912, %v2918
      %v2967 = vmax.f32 %v2913, %v2919
      %v2968 = vmax.f32 %v2914, %v2920
      %v2969 = vmax.f32 %v2915, %v2921
      %v2970 = vmax.f32 %v2916, %v2922
      %v2971 = vmax.f32 %v2917, %v2923
      %v2972 = vmax.f32 %v2918, %v2924
      %v2973 = vmax.f32 %v2919, %v2925
      %v2974 = vmax.f32 %v2920, %v2926
      %v2975 = vmax.f32 %v2921, %v2927
      %v2976 = vmax.f32 %v2922, %v2928
      %v2977 = vmax.f32 %v2923, %v2929
      %v2978 = vmax.f32 %v2924, %v2930
      %v2979 = vmax.f32 %v2925, %v2931
      %v2980 = vmax.f32 %v2926, %v2932
      %v2981 = vmax.f32 %v2927, %v2933
      %v2982 = vmax.f32 %v2928, %v2934
      %v2983 = vmax.f32 %v2929, %v2935
      %v2984 = vmax.f32 %v2930, %v2936
      %v2985 = vmax.f32 %v2931, %v2937
      %v2986 = vmax.f32 %v2932, %v2938
      %v2987 = vmax.f32 %v2933, %v2939
      %v2988 = vmax.f32 %v2934, %v2940
      %v2989 = vmax.f32 %v2935, %v2941
      %v2990 = vmax.f32 %v2936, %v2942
      %v2991 = vmax.f32 %v2937, %v2943
      %v2992 = vmax.f32 %v2938, %v2944
      %v2993 = vmax.f32 %v2939, %v2945
      %v2994 = vmax.f32 %v2940, %v2946
      %v2995 = vmax.f32 %v2941, %v2947
      %v2996 = vmax.f32 %v2942, %v2948
      %v2997 = vmax.f32 %v2943, %v2949
      %v2998 = vmax.f32 %v2944, %v2950
      %v2999 = vmax.f32 %v2945, %v2951
      %v3000 = vmax.f32 %v2946, %v2952
      %v3001 = vmax.f32 %v2947, %v2953
      %v3002 = vmax.f32 %v2948, %v2954
      %v3003 = vmax.f32 %v2949, %v2955
      %v3004 = vmax.f32 %v2950, %v2956
      %v3005 = vmax.f32 %v2957, %v2855
      %v3006 = vmax.f32 %v2958, %v2856
      %v3007 = vmax.f32 %v2959, %v2857
      %v3008 = vmax.f32 %v2960, %v2858
      %v3009 = vmax.f32 %v2961, %v2859
      %v3010 = vmax.f32 %v2962, %v2860
      %v3011 = vmax.f32 %v2963, %v2861
      %v3012 = vmax.f32 %v2964, %v2862
      %v3013 = vmax.f32 %v2965, %v2863
      %v3014 = vmax.f32 %v2966, %v2864
      %v3015 = vmax.f32 %v2967, %v2865
      %v3016 = vmax.f32 %v2968, %v2866
      %v3017 = vmax.f32 %v2969, %v2867
      %v3018 = vmax.f32 %v2970, %v2868
      %v3019 = vmax.f32 %v2971, %v2869
      %v3020 = vmax.f32 %v2972, %v2870
      %v3021 = vmax.f32 %v2973, %v2871
      %v3022 = vmax.f32 %v2974, %v2872
      %v3023 = vmax.f32 %v2975, %v2873
      %v3024 = vmax.f32 %v2976, %v2874
      %v3025 = vmax.f32 %v2977, %v2875
      %v3026 = vmax.f32 %v2978, %v2876
      %v3027 = vmax.f32 %v2979, %v2877
      %v3028 = vmax.f32 %v2980, %v2878
      %v3029 = vmax.f32 %v2981, %v2879
      %v3030 = vmax.f32 %v2982, %v2880
      %v3031 = vmax.f32 %v2983, %v2881
      %v3032 = vmax.f32 %v2984, %v2882
      %v3033 = vmax.f32 %v2985, %v2883
      %v3034 = vmax.f32 %v2986, %v2884
      %v3035 = vmax.f32 %v2987, %v2885
      %v3036 = vmax.f32 %v2988, %v2886
      %v3037 = vmax.f32 %v2989, %v2887
      %v3038 = vmax.f32 %v2990, %v2888
      %v3039 = vmax.f32 %v2991, %v2889
      %v3040 = vmax.f32 %v2992, %v2890
      %v3041 = vmax.f32 %v2993, %v2891
      %v3042 = vmax.f32 %v2994, %v2892
      %v3043 = vmax.f32 %v2995, %v2893
      %v3044 = vmax.f32 %v2996, %v2894
      %v3045 = vmax.f32 %v2997, %v2895
      %v3046 = vmax.f32 %v2998, %v2896
      %v3047 = vmax.f32 %v2999, %v2897
      %v3048 = vmax.f32 %v3000, %v2898
      %v3049 = vmax.f32 %v3001, %v2899
      %v3050 = vmax.f32 %v3002, %v2900
      %v3051 = vmax.f32 %v3003, %v2901
      %v3052 = vmax.f32 %v3004, %v2902
      %v3101 = vrot.slane %v3005, 1
      %v3102 = vrot.slane %v3006, 1
      %v3103 = vsel %vm854, %v3101, %v3102
      %v3104 = vrot.slane %v3007, 1
      %v3105 = vsel %vm854, %v3102, %v3104
      %v3106 = vrot.slane %v3008, 1
      %v3107 = vrot.slane %v3009, 1
      %v3108 = vsel %vm854, %v3106, %v3107
      %v3109 = vrot.slane %v3010, 1
      %v3110 = vsel %vm854, %v3107, %v3109
      %v3111 = vrot.slane %v3011, 1
      %v3112 = vrot.slane %v3012, 1
      %v3113 = vsel %vm854, %v3111, %v3112
      %v3114 = vrot.slane %v3013, 1
      %v3115 = vsel %vm854, %v3112, %v3114
      %v3116 = vrot.slane %v3014, 1
      %v3117 = vrot.slane %v3015, 1
      %v3118 = vsel %vm854, %v3116, %v3117
      %v3119 = vrot.slane %v3016, 1
      %v3120 = vsel %vm854, %v3117, %v3119
      %v3121 = vrot.slane %v3017, 1
      %v3122 = vrot.slane %v3018, 1
      %v3123 = vsel %vm854, %v3121, %v3122
      %v3124 = vrot.slane %v3019, 1
      %v3125 = vsel %vm854, %v3122, %v3124
      %v3126 = vrot.slane %v3020, 1
      %v3127 = vrot.slane %v3021, 1
      %v3128 = vsel %vm854, %v3126, %v3127
      %v3129 = vrot.slane %v3022, 1
      %v3130 = vsel %vm854, %v3127, %v3129
      %v3131 = vrot.slane %v3023, 1
      %v3132 = vrot.slane %v3024, 1
      %v3133 = vsel %vm854, %v3131, %v3132
      %v3134 = vrot.slane %v3025, 1
      %v3135 = vsel %vm854, %v3132, %v3134
      %v3136 = vrot.slane %v3026, 1
      %v3137 = vrot.slane %v3027, 1
      %v3138 = vsel %vm854, %v3136, %v3137
      %v3139 = vrot.slane %v3028, 1
      %v3140 = vsel %vm854, %v3137, %v3139
      %v3141 = vrot.slane %v3029, 1
      %v3142 = vrot.slane %v3030, 1
      %v3143 = vsel %vm854, %v3141, %v3142
      %v3144 = vrot.slane %v3031, 1
      %v3145 = vsel %vm854, %v3142, %v3144
      %v3146 = vrot.slane %v3032, 1
      %v3147 = vrot.slane %v3033, 1
      %v3148 = vsel %vm854, %v3146, %v3147
      %v3149 = vrot.slane %v3034, 1
      %v3150 = vsel %vm854, %v3147, %v3149
      %v3151 = vrot.slane %v3035, 1
      %v3152 = vrot.slane %v3036, 1
      %v3153 = vsel %vm854, %v3151, %v3152
      %v3154 = vrot.slane %v3037, 1
      %v3155 = vsel %vm854, %v3152, %v3154
      %v3156 = vrot.slane %v3038, 1
      %v3157 = vrot.slane %v3039, 1
      %v3158 = vsel %vm854, %v3156, %v3157
      %v3159 = vrot.slane %v3040, 1
      %v3160 = vsel %vm854, %v3157, %v3159
      %v3161 = vrot.slane %v3041, 1
      %v3162 = vrot.slane %v3042, 1
      %v3163 = vsel %vm854, %v3161, %v3162
      %v3164 = vrot.slane %v3043, 1
      %v3165 = vsel %vm854, %v3162, %v3164
      %v3166 = vrot.slane %v3044, 1
      %v3167 = vrot.slane %v3045, 1
      %v3168 = vsel %vm854, %v3166, %v3167
      %v3169 = vrot.slane %v3046, 1
      %v3170 = vsel %vm854, %v3167, %v3169
      %v3171 = vrot.slane %v3047, 1
      %v3172 = vrot.slane %v3048, 1
      %v3173 = vsel %vm854, %v3171, %v3172
      %v3174 = vrot.slane %v3049, 1
      %v3175 = vsel %vm854, %v3172, %v3174
      %v3176 = vrot.slane %v3050, 1
      %v3177 = vrot.slane %v3051, 1
      %v3178 = vsel %vm854, %v3176, %v3177
      %v3179 = vrot.slane %v3052, 1
      %v3180 = vsel %vm854, %v3177, %v3179
      %v3229 = vmax.f32 %v3005, %v3103
      %v3230 = vmax.f32 %v3006, %v3105
      %v3231 = vmax.f32 %v3007, %v3104
      %v3232 = vmax.f32 %v3008, %v3108
      %v3233 = vmax.f32 %v3009, %v3110
      %v3234 = vmax.f32 %v3010, %v3109
      %v3235 = vmax.f32 %v3011, %v3113
      %v3236 = vmax.f32 %v3012, %v3115
      %v3237 = vmax.f32 %v3013, %v3114
      %v3238 = vmax.f32 %v3014, %v3118
      %v3239 = vmax.f32 %v3015, %v3120
      %v3240 = vmax.f32 %v3016, %v3119
      %v3241 = vmax.f32 %v3017, %v3123
      %v3242 = vmax.f32 %v3018, %v3125
      %v3243 = vmax.f32 %v3019, %v3124
      %v3244 = vmax.f32 %v3020, %v3128
      %v3245 = vmax.f32 %v3021, %v3130
      %v3246 = vmax.f32 %v3022, %v3129
      %v3247 = vmax.f32 %v3023, %v3133
      %v3248 = vmax.f32 %v3024, %v3135
      %v3249 = vmax.f32 %v3025, %v3134
      %v3250 = vmax.f32 %v3026, %v3138
      %v3251 = vmax.f32 %v3027, %v3140
      %v3252 = vmax.f32 %v3028, %v3139
      %v3253 = vmax.f32 %v3029, %v3143
      %v3254 = vmax.f32 %v3030, %v3145
      %v3255 = vmax.f32 %v3031, %v3144
      %v3256 = vmax.f32 %v3032, %v3148
      %v3257 = vmax.f32 %v3033, %v3150
      %v3258 = vmax.f32 %v3034, %v3149
      %v3259 = vmax.f32 %v3035, %v3153
      %v3260 = vmax.f32 %v3036, %v3155
      %v3261 = vmax.f32 %v3037, %v3154
      %v3262 = vmax.f32 %v3038, %v3158
      %v3263 = vmax.f32 %v3039, %v3160
      %v3264 = vmax.f32 %v3040, %v3159
      %v3265 = vmax.f32 %v3041, %v3163
      %v3266 = vmax.f32 %v3042, %v3165
      %v3267 = vmax.f32 %v3043, %v3164
      %v3268 = vmax.f32 %v3044, %v3168
      %v3269 = vmax.f32 %v3045, %v3170
      %v3270 = vmax.f32 %v3046, %v3169
      %v3271 = vmax.f32 %v3047, %v3173
      %v3272 = vmax.f32 %v3048, %v3175
      %v3273 = vmax.f32 %v3049, %v3174
      %v3274 = vmax.f32 %v3050, %v3178
      %v3275 = vmax.f32 %v3051, %v3180
      %v3276 = vmax.f32 %v3052, %v3179
      %v3325 = vrot.slane %v3229, 2
      %v3326 = vrot.slane %v3230, 2
      %v3327 = vsel %vm1311, %v3325, %v3326
      %v3328 = vrot.slane %v3231, 2
      %v3329 = vsel %vm1311, %v3326, %v3328
      %v3330 = vrot.slane %v3232, 2
      %v3331 = vrot.slane %v3233, 2
      %v3332 = vsel %vm1311, %v3330, %v3331
      %v3333 = vrot.slane %v3234, 2
      %v3334 = vsel %vm1311, %v3331, %v3333
      %v3335 = vrot.slane %v3235, 2
      %v3336 = vrot.slane %v3236, 2
      %v3337 = vsel %vm1311, %v3335, %v3336
      %v3338 = vrot.slane %v3237, 2
      %v3339 = vsel %vm1311, %v3336, %v3338
      %v3340 = vrot.slane %v3238, 2
      %v3341 = vrot.slane %v3239, 2
      %v3342 = vsel %vm1311, %v3340, %v3341
      %v3343 = vrot.slane %v3240, 2
      %v3344 = vsel %vm1311, %v3341, %v3343
      %v3345 = vrot.slane %v3241, 2
      %v3346 = vrot.slane %v3242, 2
      %v3347 = vsel %vm1311, %v3345, %v3346
      %v3348 = vrot.slane %v3243, 2
      %v3349 = vsel %vm1311, %v3346, %v3348
      %v3350 = vrot.slane %v3244, 2
      %v3351 = vrot.slane %v3245, 2
      %v3352 = vsel %vm1311, %v3350, %v3351
      %v3353 = vrot.slane %v3246, 2
      %v3354 = vsel %vm1311, %v3351, %v3353
      %v3355 = vrot.slane %v3247, 2
      %v3356 = vrot.slane %v3248, 2
      %v3357 = vsel %vm1311, %v3355, %v3356
      %v3358 = vrot.slane %v3249, 2
      %v3359 = vsel %vm1311, %v3356, %v3358
      %v3360 = vrot.slane %v3250, 2
      %v3361 = vrot.slane %v3251, 2
      %v3362 = vsel %vm1311, %v3360, %v3361
      %v3363 = vrot.slane %v3252, 2
      %v3364 = vsel %vm1311, %v3361, %v3363
      %v3365 = vrot.slane %v3253, 2
      %v3366 = vrot.slane %v3254, 2
      %v3367 = vsel %vm1311, %v3365, %v3366
      %v3368 = vrot.slane %v3255, 2
      %v3369 = vsel %vm1311, %v3366, %v3368
      %v3370 = vrot.slane %v3256, 2
      %v3371 = vrot.slane %v3257, 2
      %v3372 = vsel %vm1311, %v3370, %v3371
      %v3373 = vrot.slane %v3258, 2
      %v3374 = vsel %vm1311, %v3371, %v3373
      %v3375 = vrot.slane %v3259, 2
      %v3376 = vrot.slane %v3260, 2
      %v3377 = vsel %vm1311, %v3375, %v3376
      %v3378 = vrot.slane %v3261, 2
      %v3379 = vsel %vm1311, %v3376, %v3378
      %v3380 = vrot.slane %v3262, 2
      %v3381 = vrot.slane %v3263, 2
      %v3382 = vsel %vm1311, %v3380, %v3381
      %v3383 = vrot.slane %v3264, 2
      %v3384 = vsel %vm1311, %v3381, %v3383
      %v3385 = vrot.slane %v3265, 2
      %v3386 = vrot.slane %v3266, 2
      %v3387 = vsel %vm1311, %v3385, %v3386
      %v3388 = vrot.slane %v3267, 2
      %v3389 = vsel %vm1311, %v3386, %v3388
      %v3390 = vrot.slane %v3268, 2
      %v3391 = vrot.slane %v3269, 2
      %v3392 = vsel %vm1311, %v3390, %v3391
      %v3393 = vrot.slane %v3270, 2
      %v3394 = vsel %vm1311, %v3391, %v3393
      %v3395 = vrot.slane %v3271, 2
      %v3396 = vrot.slane %v3272, 2
      %v3397 = vsel %vm1311, %v3395, %v3396
      %v3398 = vrot.slane %v3273, 2
      %v3399 = vsel %vm1311, %v3396, %v3398
      %v3400 = vrot.slane %v3274, 2
      %v3401 = vrot.slane %v3275, 2
      %v3402 = vsel %vm1311, %v3400, %v3401
      %v3403 = vrot.slane %v3276, 2
      %v3404 = vsel %vm1311, %v3401, %v3403
      %v3437 = vmax.f32 %v3229, %v3327
      %v3438 = vmax.f32 %v3230, %v3329
      %v3439 = vmax.f32 %v3232, %v3332
      %v3440 = vmax.f32 %v3233, %v3334
      %v3441 = vmax.f32 %v3235, %v3337
      %v3442 = vmax.f32 %v3236, %v3339
      %v3443 = vmax.f32 %v3238, %v3342
      %v3444 = vmax.f32 %v3239, %v3344
      %v3445 = vmax.f32 %v3241, %v3347
      %v3446 = vmax.f32 %v3242, %v3349
      %v3447 = vmax.f32 %v3244, %v3352
      %v3448 = vmax.f32 %v3245, %v3354
      %v3449 = vmax.f32 %v3247, %v3357
      %v3450 = vmax.f32 %v3248, %v3359
      %v3451 = vmax.f32 %v3250, %v3362
      %v3452 = vmax.f32 %v3251, %v3364
      %v3453 = vmax.f32 %v3253, %v3367
      %v3454 = vmax.f32 %v3254, %v3369
      %v3455 = vmax.f32 %v3256, %v3372
      %v3456 = vmax.f32 %v3257, %v3374
      %v3457 = vmax.f32 %v3259, %v3377
      %v3458 = vmax.f32 %v3260, %v3379
      %v3459 = vmax.f32 %v3262, %v3382
      %v3460 = vmax.f32 %v3263, %v3384
      %v3461 = vmax.f32 %v3265, %v3387
      %v3462 = vmax.f32 %v3266, %v3389
      %v3463 = vmax.f32 %v3268, %v3392
      %v3464 = vmax.f32 %v3269, %v3394
      %v3465 = vmax.f32 %v3271, %v3397
      %v3466 = vmax.f32 %v3272, %v3399
      %v3467 = vmax.f32 %v3274, %v3402
      %v3468 = vmax.f32 %v3275, %v3404
      %v3469 = vrot.slane %v3005, 4
      %v3470 = vrot.slane %v3006, 4
      %v3471 = vsel %vm1624, %v3469, %v3470
      %v3472 = vrot.slane %v3007, 4
      %v3473 = vsel %vm1624, %v3470, %v3472
      %v3474 = vrot.slane %v3008, 4
      %v3475 = vrot.slane %v3009, 4
      %v3476 = vsel %vm1624, %v3474, %v3475
      %v3477 = vrot.slane %v3010, 4
      %v3478 = vsel %vm1624, %v3475, %v3477
      %v3479 = vrot.slane %v3011, 4
      %v3480 = vrot.slane %v3012, 4
      %v3481 = vsel %vm1624, %v3479, %v3480
      %v3482 = vrot.slane %v3013, 4
      %v3483 = vsel %vm1624, %v3480, %v3482
      %v3484 = vrot.slane %v3014, 4
      %v3485 = vrot.slane %v3015, 4
      %v3486 = vsel %vm1624, %v3484, %v3485
      %v3487 = vrot.slane %v3016, 4
      %v3488 = vsel %vm1624, %v3485, %v3487
      %v3489 = vrot.slane %v3017, 4
      %v3490 = vrot.slane %v3018, 4
      %v3491 = vsel %vm1624, %v3489, %v3490
      %v3492 = vrot.slane %v3019, 4
      %v3493 = vsel %vm1624, %v3490, %v3492
      %v3494 = vrot.slane %v3020, 4
      %v3495 = vrot.slane %v3021, 4
      %v3496 = vsel %vm1624, %v3494, %v3495
      %v3497 = vrot.slane %v3022, 4
      %v3498 = vsel %vm1624, %v3495, %v3497
      %v3499 = vrot.slane %v3023, 4
      %v3500 = vrot.slane %v3024, 4
      %v3501 = vsel %vm1624, %v3499, %v3500
      %v3502 = vrot.slane %v3025, 4
      %v3503 = vsel %vm1624, %v3500, %v3502
      %v3504 = vrot.slane %v3026, 4
      %v3505 = vrot.slane %v3027, 4
      %v3506 = vsel %vm1624, %v3504, %v3505
      %v3507 = vrot.slane %v3028, 4
      %v3508 = vsel %vm1624, %v3505, %v3507
      %v3509 = vrot.slane %v3029, 4
      %v3510 = vrot.slane %v3030, 4
      %v3511 = vsel %vm1624, %v3509, %v3510
      %v3512 = vrot.slane %v3031, 4
      %v3513 = vsel %vm1624, %v3510, %v3512
      %v3514 = vrot.slane %v3032, 4
      %v3515 = vrot.slane %v3033, 4
      %v3516 = vsel %vm1624, %v3514, %v3515
      %v3517 = vrot.slane %v3034, 4
      %v3518 = vsel %vm1624, %v3515, %v3517
      %v3519 = vrot.slane %v3035, 4
      %v3520 = vrot.slane %v3036, 4
      %v3521 = vsel %vm1624, %v3519, %v3520
      %v3522 = vrot.slane %v3037, 4
      %v3523 = vsel %vm1624, %v3520, %v3522
      %v3524 = vrot.slane %v3038, 4
      %v3525 = vrot.slane %v3039, 4
      %v3526 = vsel %vm1624, %v3524, %v3525
      %v3527 = vrot.slane %v3040, 4
      %v3528 = vsel %vm1624, %v3525, %v3527
      %v3529 = vrot.slane %v3041, 4
      %v3530 = vrot.slane %v3042, 4
      %v3531 = vsel %vm1624, %v3529, %v3530
      %v3532 = vrot.slane %v3043, 4
      %v3533 = vsel %vm1624, %v3530, %v3532
      %v3534 = vrot.slane %v3044, 4
      %v3535 = vrot.slane %v3045, 4
      %v3536 = vsel %vm1624, %v3534, %v3535
      %v3537 = vrot.slane %v3046, 4
      %v3538 = vsel %vm1624, %v3535, %v3537
      %v3539 = vrot.slane %v3047, 4
      %v3540 = vrot.slane %v3048, 4
      %v3541 = vsel %vm1624, %v3539, %v3540
      %v3542 = vrot.slane %v3049, 4
      %v3543 = vsel %vm1624, %v3540, %v3542
      %v3544 = vrot.slane %v3050, 4
      %v3545 = vrot.slane %v3051, 4
      %v3546 = vsel %vm1624, %v3544, %v3545
      %v3547 = vrot.slane %v3052, 4
      %v3548 = vsel %vm1624, %v3545, %v3547
      %v3581 = vmax.f32 %v3437, %v3471
      %v3582 = vmax.f32 %v3438, %v3473
      %v3583 = vmax.f32 %v3439, %v3476
      %v3584 = vmax.f32 %v3440, %v3478
      %v3585 = vmax.f32 %v3441, %v3481
      %v3586 = vmax.f32 %v3442, %v3483
      %v3587 = vmax.f32 %v3443, %v3486
      %v3588 = vmax.f32 %v3444, %v3488
      %v3589 = vmax.f32 %v3445, %v3491
      %v3590 = vmax.f32 %v3446, %v3493
      %v3591 = vmax.f32 %v3447, %v3496
      %v3592 = vmax.f32 %v3448, %v3498
      %v3593 = vmax.f32 %v3449, %v3501
      %v3594 = vmax.f32 %v3450, %v3503
      %v3595 = vmax.f32 %v3451, %v3506
      %v3596 = vmax.f32 %v3452, %v3508
      %v3597 = vmax.f32 %v3453, %v3511
      %v3598 = vmax.f32 %v3454, %v3513
      %v3599 = vmax.f32 %v3455, %v3516
      %v3600 = vmax.f32 %v3456, %v3518
      %v3601 = vmax.f32 %v3457, %v3521
      %v3602 = vmax.f32 %v3458, %v3523
      %v3603 = vmax.f32 %v3459, %v3526
      %v3604 = vmax.f32 %v3460, %v3528
      %v3605 = vmax.f32 %v3461, %v3531
      %v3606 = vmax.f32 %v3462, %v3533
      %v3607 = vmax.f32 %v3463, %v3536
      %v3608 = vmax.f32 %v3464, %v3538
      %v3609 = vmax.f32 %v3465, %v3541
      %v3610 = vmax.f32 %v3466, %v3543
      %v3611 = vmax.f32 %v3467, %v3546
      %v3612 = vmax.f32 %v3468, %v3548
      %v3613 = vld [vmem:[%s165] sm:$0xff]
      %v3614 = vld [vmem:[%s165 + $0x8] sm:$0xff]
      %v3615 = vld [vmem:[%s165 + $0x10] sm:$0xff]
      %v3616 = vld [vmem:[%s165 + $0x18] sm:$0xff]
      %v3617 = vld [vmem:[%s165 + $0x20] sm:$0xff]
      %v3618 = vld [vmem:[%s165 + $0x28] sm:$0xff]
      %v3619 = vld [vmem:[%s165 + $0x30] sm:$0xff]
      %v3620 = vld [vmem:[%s165 + $0x38] sm:$0xff]
      %v3621 = vld [vmem:[%s165 + $0x40] sm:$0xff]
      %v3622 = vld [vmem:[%s165 + $0x48] sm:$0xff]
      %v3623 = vld [vmem:[%s165 + $0x50] sm:$0xff]
      %v3624 = vld [vmem:[%s165 + $0x58] sm:$0xff]
      %v3625 = vld [vmem:[%s165 + $0x60] sm:$0xff]
      %v3626 = vld [vmem:[%s165 + $0x68] sm:$0xff]
      %v3627 = vld [vmem:[%s165 + $0x70] sm:$0xff]
      %v3628 = vld [vmem:[%s165 + $0x78] sm:$0xff]
      %v3629 = vld [vmem:[%s165 + $0x80] sm:$0xff]
      %v3630 = vld [vmem:[%s165 + $0x88] sm:$0xff]
      %v3631 = vld [vmem:[%s165 + $0x90] sm:$0xff]
      %v3632 = vld [vmem:[%s165 + $0x98] sm:$0xff]
      %v3633 = vld [vmem:[%s165 + $0xa0] sm:$0xff]
      %v3634 = vld [vmem:[%s165 + $0xa8] sm:$0xff]
      %v3635 = vld [vmem:[%s165 + $0xb0] sm:$0xff]
      %v3636 = vld [vmem:[%s165 + $0xb8] sm:$0xff]
      %v3637 = vld [vmem:[%s165 + $0xc0] sm:$0xff]
      %v3638 = vld [vmem:[%s165 + $0xc8] sm:$0xff]
      %v3639 = vld [vmem:[%s165 + $0xd0] sm:$0xff]
      %v3640 = vld [vmem:[%s165 + $0xd8] sm:$0xff]
      %v3641 = vld [vmem:[%s165 + $0xe0] sm:$0xff]
      %v3642 = vld [vmem:[%s165 + $0xe8] sm:$0xff]
      %v3643 = vld [vmem:[%s165 + $0xf0] sm:$0xff]
      %v3644 = vld [vmem:[%s165 + $0xf8] sm:$0xff]
      %v3645 = vld [vmem:[%s1] sm:$0xf]
      %v3694 = vrot.slane %v1877, 4
      %v3695 = vrot.slane %v1878, 4
      %v3696 = vsel %vm1624, %v3694, %v3695
      %v3697 = vrot.slane %v1879, 4
      %v3698 = vsel %vm1624, %v3695, %v3697
      %v3699 = vrot.slane %v1880, 4
      %v3700 = vrot.slane %v1881, 4
      %v3701 = vsel %vm1624, %v3699, %v3700
      %v3702 = vrot.slane %v1882, 4
      %v3703 = vsel %vm1624, %v3700, %v3702
      %v3704 = vrot.slane %v1883, 4
      %v3705 = vrot.slane %v1884, 4
      %v3706 = vsel %vm1624, %v3704, %v3705
      %v3707 = vrot.slane %v1885, 4
      %v3708 = vsel %vm1624, %v3705, %v3707
      %v3709 = vrot.slane %v1886, 4
      %v3710 = vrot.slane %v1887, 4
      %v3711 = vsel %vm1624, %v3709, %v3710
      %v3712 = vrot.slane %v1888, 4
      %v3713 = vsel %vm1624, %v3710, %v3712
      %v3714 = vrot.slane %v1889, 4
      %v3715 = vrot.slane %v1890, 4
      %v3716 = vsel %vm1624, %v3714, %v3715
      %v3717 = vrot.slane %v1891, 4
      %v3718 = vsel %vm1624, %v3715, %v3717
      %v3719 = vrot.slane %v1892, 4
      %v3720 = vrot.slane %v1893, 4
      %v3721 = vsel %vm1624, %v3719, %v3720
      %v3722 = vrot.slane %v1894, 4
      %v3723 = vsel %vm1624, %v3720, %v3722
      %v3724 = vrot.slane %v1895, 4
      %v3725 = vrot.slane %v1896, 4
      %v3726 = vsel %vm1624, %v3724, %v3725
      %v3727 = vrot.slane %v1897, 4
      %v3728 = vsel %vm1624, %v3725, %v3727
      %v3729 = vrot.slane %v1898, 4
      %v3730 = vrot.slane %v1899, 4
      %v3731 = vsel %vm1624, %v3729, %v3730
      %v3732 = vrot.slane %v1900, 4
      %v3733 = vsel %vm1624, %v3730, %v3732
      %v3734 = vrot.slane %v1901, 4
      %v3735 = vrot.slane %v1902, 4
      %v3736 = vsel %vm1624, %v3734, %v3735
      %v3737 = vrot.slane %v1903, 4
      %v3738 = vsel %vm1624, %v3735, %v3737
      %v3739 = vrot.slane %v1904, 4
      %v3740 = vrot.slane %v1905, 4
      %v3741 = vsel %vm1624, %v3739, %v3740
      %v3742 = vrot.slane %v1906, 4
      %v3743 = vsel %vm1624, %v3740, %v3742
      %v3744 = vrot.slane %v1907, 4
      %v3745 = vrot.slane %v1908, 4
      %v3746 = vsel %vm1624, %v3744, %v3745
      %v3747 = vrot.slane %v1909, 4
      %v3748 = vsel %vm1624, %v3745, %v3747
      %v3749 = vrot.slane %v1910, 4
      %v3750 = vrot.slane %v1911, 4
      %v3751 = vsel %vm1624, %v3749, %v3750
      %v3752 = vrot.slane %v1912, 4
      %v3753 = vsel %vm1624, %v3750, %v3752
      %v3754 = vrot.slane %v1913, 4
      %v3755 = vrot.slane %v1914, 4
      %v3756 = vsel %vm1624, %v3754, %v3755
      %v3757 = vrot.slane %v1915, 4
      %v3758 = vsel %vm1624, %v3755, %v3757
      %v3759 = vrot.slane %v1916, 4
      %v3760 = vrot.slane %v1917, 4
      %v3761 = vsel %vm1624, %v3759, %v3760
      %v3762 = vrot.slane %v1918, 4
      %v3763 = vsel %vm1624, %v3760, %v3762
      %v3764 = vrot.slane %v1919, 4
      %v3765 = vrot.slane %v1920, 4
      %v3766 = vsel %vm1624, %v3764, %v3765
      %v3767 = vrot.slane %v1921, 4
      %v3768 = vsel %vm1624, %v3765, %v3767
      %v3769 = vrot.slane %v1922, 4
      %v3770 = vrot.slane %v1923, 4
      %v3771 = vsel %vm1624, %v3769, %v3770
      %v3772 = vrot.slane %v1924, 4
      %v3773 = vsel %vm1624, %v3770, %v3772
      %s3774 = scalar_lea.vmem %s1, 4
      %v3775 = vld [vmem:[%s3774] sm:$0xf]
      %v3776 = vsel %vm171, %v3696, 0
      %v3778 = vsel %vm171, %v3698, 0
      %v3780 = vsel %vm171, %v3701, 0
      %v3782 = vsel %vm171, %v3703, 0
      %v3784 = vsel %vm171, %v3706, 0
      %v3786 = vsel %vm171, %v3708, 0
      %v3788 = vsel %vm171, %v3711, 0
      %v3790 = vsel %vm171, %v3713, 0
      %v3792 = vsel %vm171, %v3716, 0
      %v3794 = vsel %vm171, %v3718, 0
      %v3796 = vsel %vm171, %v3721, 0
      %v3798 = vsel %vm171, %v3723, 0
      %v3800 = vsel %vm171, %v3726, 0
      %v3802 = vsel %vm171, %v3728, 0
      %v3804 = vsel %vm171, %v3731, 0
      %v3806 = vsel %vm171, %v3733, 0
      %v3808 = vsel %vm171, %v3736, 0
      %v3810 = vsel %vm171, %v3738, 0
      %v3812 = vsel %vm171, %v3741, 0
      %v3814 = vsel %vm171, %v3743, 0
      %v3816 = vsel %vm171, %v3746, 0
      %v3818 = vsel %vm171, %v3748, 0
      %v3820 = vsel %vm171, %v3751, 0
      %v3822 = vsel %vm171, %v3753, 0
      %v3824 = vsel %vm171, %v3756, 0
      %v3826 = vsel %vm171, %v3758, 0
      %v3828 = vsel %vm171, %v3761, 0
      %v3830 = vsel %vm171, %v3763, 0
      %v3832 = vsel %vm171, %v3766, 0
      %v3834 = vsel %vm171, %v3768, 0
      %v3836 = vsel %vm171, %v3771, 0
      %v3838 = vsel %vm171, %v3773, 0
      %v3841 = vsel %vm1624, %v3775, 0
      %3843 = vmatprep.subr.mxu0 0.0
      %3844 = vmatpush1.msra.mxu0 %v3841
      %3845 = vmatprep.subr.mxu0 0.0
      %3846 = vmatpush1.msra.mxu0 0.0
      %3847 = vmatprep.subr.mxu0 0.0
      %3848 = vmatpush1.msra.mxu0 0.0
      %3849 = vmatprep.subr.mxu0 0.0
      %3850 = vmatpush1.msra.mxu0 0.0
      %3851 = vmatprep.subr.mxu0 0.0
      %3852 = vmatpush1.msra.mxu0 0.0
      %3853 = vmatprep.subr.mxu0 0.0
      %3854 = vmatpush1.msra.mxu0 0.0
      %3855 = vmatprep.subr.mxu0 0.0
      %3856 = vmatpush1.msra.mxu0 0.0
      %3857 = vmatprep.subr.mxu0 0.0
      %3858 = vmatpush1.msra.mxu0 0.0
      %3859 = vmatprep.subr.mxu0 0.0
      %3860 = vmatpush1.msra.mxu0 0.0
      %3861 = vmatprep.subr.mxu0 0.0
      %3862 = vmatpush1.msra.mxu0 0.0
      %3863 = vmatprep.subr.mxu0 0.0
      %3864 = vmatpush1.msra.mxu0 0.0
      %3865 = vmatprep.subr.mxu0 0.0
      %3866 = vmatpush1.msra.mxu0 0.0
      %3867 = vmatprep.subr.mxu0 0.0
      %3868 = vmatpush1.msra.mxu0 0.0
      %3869 = vmatprep.subr.mxu0 0.0
      %3870 = vmatpush1.msra.mxu0 0.0
      %3871 = vmatprep.subr.mxu0 0.0
      %3872 = vmatpush1.msra.mxu0 0.0
      %3873 = vmatprep.subr.mxu0 0.0
      %3874 = vmatpush1.msra.mxu0 0.0
      %3875 = vmatprep.subr.mxu0 0.0
      %3876 = vmatpush1.msra.mxu0 0.0
      %3877 = vmatprep.subr.mxu0 0.0
      %3878 = vmatpush1.msra.mxu0 0.0
      %3879 = vmatprep.subr.mxu0 0.0
      %3880 = vmatpush1.msra.mxu0 0.0
      %3881 = vmatprep.subr.mxu0 0.0
      %3882 = vmatpush1.msra.mxu0 0.0
      %3883 = vmatprep.subr.mxu0 0.0
      %3884 = vmatpush1.msra.mxu0 0.0
      %3885 = vmatprep.subr.mxu0 0.0
      %3886 = vmatpush1.msra.mxu0 0.0
      %3887 = vmatprep.subr.mxu0 0.0
      %3888 = vmatpush1.msra.mxu0 0.0
      %3889 = vmatprep.subr.mxu0 0.0
      %3890 = vmatpush1.msra.mxu0 0.0
      %3891 = vmatprep.subr.mxu0 0.0
      %3892 = vmatpush1.msra.mxu0 0.0
      %3893 = vmatprep.subr.mxu0 0.0
      %3894 = vmatpush1.msra.mxu0 0.0
      %3895 = vmatprep.subr.mxu0 0.0
      %3896 = vmatpush1.msra.mxu0 0.0
      %3897 = vmatprep.subr.mxu0 0.0
      %3898 = vmatpush1.msra.mxu0 0.0
      %3899 = vmatprep.subr.mxu0 0.0
      %3900 = vmatpush1.msra.mxu0 0.0
      %3901 = vmatprep.subr.mxu0 0.0
      %3902 = vmatpush1.msra.mxu0 0.0
      %3903 = vmatprep.subr.mxu0 0.0
      %3904 = vmatpush1.msra.mxu0 0.0
      %3905 = vmatprep.subr.mxu0 0.0
      %3906 = vmatpush1.msra.mxu0 0.0
      %3907 = vmatprep.mubr.f32.mxu0 0.0
      %3908 = vmatmul.mubr.f32.gmra.mrb[0].mxu0 %v3776
      %v3909 = vpop.f32.mrb[0].mxu0
      %v3910 = vadd.f32 0.0, %v3909
      %v3911 = vpop.f32.mrb[0].mxu0
      %3912 = vmatprep.mubr.f32.mxu0 0.0
      %3913 = vmatmul.mubr.f32.gmra.mrb[0].mxu0 %v3778
      %v3914 = vpop.f32.mrb[0].mxu0
      %v3915 = vadd.f32 0.0, %v3914
      %v3916 = vpop.f32.mrb[0].mxu0
      %3917 = vmatprep.mubr.f32.mxu0 0.0
      %3918 = vmatmul.mubr.f32.gmra.mrb[0].mxu0 %v3780
      %v3919 = vpop.f32.mrb[0].mxu0
      %v3920 = vadd.f32 0.0, %v3919
      %v3921 = vpop.f32.mrb[0].mxu0
      %3922 = vmatprep.mubr.f32.mxu0 0.0
      %3923 = vmatmul.mubr.f32.gmra.mrb[0].mxu0 %v3782
      %v3924 = vpop.f32.mrb[0].mxu0
      %v3925 = vadd.f32 0.0, %v3924
      %v3926 = vpop.f32.mrb[0].mxu0
      %3927 = vmatprep.mubr.f32.mxu0 0.0
      %3928 = vmatmul.mubr.f32.gmra.mrb[0].mxu0 %v3784
      %v3929 = vpop.f32.mrb[0].mxu0
      %v3930 = vadd.f32 0.0, %v3929
      %v3931 = vpop.f32.mrb[0].mxu0
      %3932 = vmatprep.mubr.f32.mxu0 0.0
      %3933 = vmatmul.mubr.f32.gmra.mrb[0].mxu0 %v3786
      %v3934 = vpop.f32.mrb[0].mxu0
      %v3935 = vadd.f32 0.0, %v3934
      %v3936 = vpop.f32.mrb[0].mxu0
      %3937 = vmatprep.mubr.f32.mxu0 0.0
      %3938 = vmatmul.mubr.f32.gmra.mrb[0].mxu0 %v3788
      %v3939 = vpop.f32.mrb[0].mxu0
      %v3940 = vadd.f32 0.0, %v3939
      %v3941 = vpop.f32.mrb[0].mxu0
      %3942 = vmatprep.mubr.f32.mxu0 0.0
      %3943 = vmatmul.mubr.f32.gmra.mrb[0].mxu0 %v3790
      %v3944 = vpop.f32.mrb[0].mxu0
      %v3945 = vadd.f32 0.0, %v3944
      %v3946 = vpop.f32.mrb[0].mxu0
      %3947 = vmatprep.mubr.f32.mxu0 0.0
      %3948 = vmatmul.mubr.f32.gmra.mrb[0].mxu0 %v3792
      %v3949 = vpop.f32.mrb[0].mxu0
      %v3950 = vadd.f32 0.0, %v3949
      %v3951 = vpop.f32.mrb[0].mxu0
      %3952 = vmatprep.mubr.f32.mxu0 0.0
      %3953 = vmatmul.mubr.f32.gmra.mrb[0].mxu0 %v3794
      %v3954 = vpop.f32.mrb[0].mxu0
      %v3955 = vadd.f32 0.0, %v3954
      %v3956 = vpop.f32.mrb[0].mxu0
      %3957 = vmatprep.mubr.f32.mxu0 0.0
      %3958 = vmatmul.mubr.f32.gmra.mrb[0].mxu0 %v3796
      %v3959 = vpop.f32.mrb[0].mxu0
      %v3960 = vadd.f32 0.0, %v3959
      %v3961 = vpop.f32.mrb[0].mxu0
      %3962 = vmatprep.mubr.f32.mxu0 0.0
      %3963 = vmatmul.mubr.f32.gmra.mrb[0].mxu0 %v3798
      %v3964 = vpop.f32.mrb[0].mxu0
      %v3965 = vadd.f32 0.0, %v3964
      %v3966 = vpop.f32.mrb[0].mxu0
      %3967 = vmatprep.mubr.f32.mxu0 0.0
      %3968 = vmatmul.mubr.f32.gmra.mrb[0].mxu0 %v3800
      %v3969 = vpop.f32.mrb[0].mxu0
      %v3970 = vadd.f32 0.0, %v3969
      %v3971 = vpop.f32.mrb[0].mxu0
      %3972 = vmatprep.mubr.f32.mxu0 0.0
      %3973 = vmatmul.mubr.f32.gmra.mrb[0].mxu0 %v3802
      %v3974 = vpop.f32.mrb[0].mxu0
      %v3975 = vadd.f32 0.0, %v3974
      %v3976 = vpop.f32.mrb[0].mxu0
      %3977 = vmatprep.mubr.f32.mxu0 0.0
      %3978 = vmatmul.mubr.f32.gmra.mrb[0].mxu0 %v3804
      %v3979 = vpop.f32.mrb[0].mxu0
      %v3980 = vadd.f32 0.0, %v3979
      %v3981 = vpop.f32.mrb[0].mxu0
      %3982 = vmatprep.mubr.f32.mxu0 0.0
      %3983 = vmatmul.mubr.f32.gmra.mrb[0].mxu0 %v3806
      %v3984 = vpop.f32.mrb[0].mxu0
      %v3985 = vadd.f32 0.0, %v3984
      %v3986 = vpop.f32.mrb[0].mxu0
      %3987 = vmatprep.mubr.f32.mxu0 0.0
      %3988 = vmatmul.mubr.f32.gmra.mrb[0].mxu0 %v3808
      %v3989 = vpop.f32.mrb[0].mxu0
      %v3990 = vadd.f32 0.0, %v3989
      %v3991 = vpop.f32.mrb[0].mxu0
      %3992 = vmatprep.mubr.f32.mxu0 0.0
      %3993 = vmatmul.mubr.f32.gmra.mrb[0].mxu0 %v3810
      %v3994 = vpop.f32.mrb[0].mxu0
      %v3995 = vadd.f32 0.0, %v3994
      %v3996 = vpop.f32.mrb[0].mxu0
      %3997 = vmatprep.mubr.f32.mxu0 0.0
      %3998 = vmatmul.mubr.f32.gmra.mrb[0].mxu0 %v3812
      %v3999 = vpop.f32.mrb[0].mxu0
      %v4000 = vadd.f32 0.0, %v3999
      %v4001 = vpop.f32.mrb[0].mxu0
      %4002 = vmatprep.mubr.f32.mxu0 0.0
      %4003 = vmatmul.mubr.f32.gmra.mrb[0].mxu0 %v3814
      %v4004 = vpop.f32.mrb[0].mxu0
      %v4005 = vadd.f32 0.0, %v4004
      %v4006 = vpop.f32.mrb[0].mxu0
      %4007 = vmatprep.mubr.f32.mxu0 0.0
      %4008 = vmatmul.mubr.f32.gmra.mrb[0].mxu0 %v3816
      %v4009 = vpop.f32.mrb[0].mxu0
      %v4010 = vadd.f32 0.0, %v4009
      %v4011 = vpop.f32.mrb[0].mxu0
      %4012 = vmatprep.mubr.f32.mxu0 0.0
      %4013 = vmatmul.mubr.f32.gmra.mrb[0].mxu0 %v3818
      %v4014 = vpop.f32.mrb[0].mxu0
      %v4015 = vadd.f32 0.0, %v4014
      %v4016 = vpop.f32.mrb[0].mxu0
      %4017 = vmatprep.mubr.f32.mxu0 0.0
      %4018 = vmatmul.mubr.f32.gmra.mrb[0].mxu0 %v3820
      %v4019 = vpop.f32.mrb[0].mxu0
      %v4020 = vadd.f32 0.0, %v4019
      %v4021 = vpop.f32.mrb[0].mxu0
      %4022 = vmatprep.mubr.f32.mxu0 0.0
      %4023 = vmatmul.mubr.f32.gmra.mrb[0].mxu0 %v3822
      %v4024 = vpop.f32.mrb[0].mxu0
      %v4025 = vadd.f32 0.0, %v4024
      %v4026 = vpop.f32.mrb[0].mxu0
      %4027 = vmatprep.mubr.f32.mxu0 0.0
      %4028 = vmatmul.mubr.f32.gmra.mrb[0].mxu0 %v3824
      %v4029 = vpop.f32.mrb[0].mxu0
      %v4030 = vadd.f32 0.0, %v4029
      %v4031 = vpop.f32.mrb[0].mxu0
      %4032 = vmatprep.mubr.f32.mxu0 0.0
      %4033 = vmatmul.mubr.f32.gmra.mrb[0].mxu0 %v3826
      %v4034 = vpop.f32.mrb[0].mxu0
      %v4035 = vadd.f32 0.0, %v4034
      %v4036 = vpop.f32.mrb[0].mxu0
      %4037 = vmatprep.mubr.f32.mxu0 0.0
      %4038 = vmatmul.mubr.f32.gmra.mrb[0].mxu0 %v3828
      %v4039 = vpop.f32.mrb[0].mxu0
      %v4040 = vadd.f32 0.0, %v4039
      %v4041 = vpop.f32.mrb[0].mxu0
      %4042 = vmatprep.mubr.f32.mxu0 0.0
      %4043 = vmatmul.mubr.f32.gmra.mrb[0].mxu0 %v3830
      %v4044 = vpop.f32.mrb[0].mxu0
      %v4045 = vadd.f32 0.0, %v4044
      %v4046 = vpop.f32.mrb[0].mxu0
      %4047 = vmatprep.mubr.f32.mxu0 0.0
      %4048 = vmatmul.mubr.f32.gmra.mrb[0].mxu0 %v3832
      %v4049 = vpop.f32.mrb[0].mxu0
      %v4050 = vadd.f32 0.0, %v4049
      %v4051 = vpop.f32.mrb[0].mxu0
      %4052 = vmatprep.mubr.f32.mxu0 0.0
      %4053 = vmatmul.mubr.f32.gmra.mrb[0].mxu0 %v3834
      %v4054 = vpop.f32.mrb[0].mxu0
      %v4055 = vadd.f32 0.0, %v4054
      %v4056 = vpop.f32.mrb[0].mxu0
      %4057 = vmatprep.mubr.f32.mxu0 0.0
      %4058 = vmatmul.mubr.f32.gmra.mrb[0].mxu0 %v3836
      %v4059 = vpop.f32.mrb[0].mxu0
      %v4060 = vadd.f32 0.0, %v4059
      %v4061 = vpop.f32.mrb[0].mxu0
      %4062 = vmatprep.mubr.f32.mxu0 0.0
      %4063 = vmatmul.mubr.f32.gmra.mrb[0].mxu0 %v3838
      %v4064 = vpop.f32.mrb[0].mxu0
      %v4065 = vadd.f32 0.0, %v4064
      %v4066 = vpop.f32.mrb[0].mxu0
      %4067 = vdwg.mxu0
      %v4069 = vsel %vm171, %v3613, 0
      %v4072 = vsel %vm171, %v3614, 0
      %v4075 = vsel %vm171, %v3615, 0
      %v4078 = vsel %vm171, %v3616, 0
      %v4081 = vsel %vm171, %v3617, 0
      %v4084 = vsel %vm171, %v3618, 0
      %v4087 = vsel %vm171, %v3619, 0
      %v4090 = vsel %vm171, %v3620, 0
      %v4093 = vsel %vm171, %v3621, 0
      %v4096 = vsel %vm171, %v3622, 0
      %v4099 = vsel %vm171, %v3623, 0
      %v4102 = vsel %vm171, %v3624, 0
      %v4105 = vsel %vm171, %v3625, 0
      %v4108 = vsel %vm171, %v3626, 0
      %v4111 = vsel %vm171, %v3627, 0
      %v4114 = vsel %vm171, %v3628, 0
      %v4117 = vsel %vm171, %v3629, 0
      %v4120 = vsel %vm171, %v3630, 0
      %v4123 = vsel %vm171, %v3631, 0
      %v4126 = vsel %vm171, %v3632, 0
      %v4129 = vsel %vm171, %v3633, 0
      %v4132 = vsel %vm171, %v3634, 0
      %v4135 = vsel %vm171, %v3635, 0
      %v4138 = vsel %vm171, %v3636, 0
      %v4141 = vsel %vm171, %v3637, 0
      %v4144 = vsel %vm171, %v3638, 0
      %v4147 = vsel %vm171, %v3639, 0
      %v4150 = vsel %vm171, %v3640, 0
      %v4153 = vsel %vm171, %v3641, 0
      %v4156 = vsel %vm171, %v3642, 0
      %v4159 = vsel %vm171, %v3643, 0
      %v4162 = vsel %vm171, %v3644, 0
      %v4165 = vsel %vm1624, %v3645, 0
      %4167 = vmatprep.subr.mxu0 0.0
      %4168 = vmatpush1.msra.mxu0 %v4165
      %4169 = vmatprep.subr.mxu0 0.0
      %4170 = vmatpush1.msra.mxu0 0.0
      %4171 = vmatprep.subr.mxu0 0.0
      %4172 = vmatpush1.msra.mxu0 0.0
      %4173 = vmatprep.subr.mxu0 0.0
      %4174 = vmatpush1.msra.mxu0 0.0
      %4175 = vmatprep.subr.mxu0 0.0
      %4176 = vmatpush1.msra.mxu0 0.0
      %4177 = vmatprep.subr.mxu0 0.0
      %4178 = vmatpush1.msra.mxu0 0.0
      %4179 = vmatprep.subr.mxu0 0.0
      %4180 = vmatpush1.msra.mxu0 0.0
      %4181 = vmatprep.subr.mxu0 0.0
      %4182 = vmatpush1.msra.mxu0 0.0
      %4183 = vmatprep.subr.mxu0 0.0
      %4184 = vmatpush1.msra.mxu0 0.0
      %4185 = vmatprep.subr.mxu0 0.0
      %4186 = vmatpush1.msra.mxu0 0.0
      %4187 = vmatprep.subr.mxu0 0.0
      %4188 = vmatpush1.msra.mxu0 0.0
      %4189 = vmatprep.subr.mxu0 0.0
      %4190 = vmatpush1.msra.mxu0 0.0
      %4191 = vmatprep.subr.mxu0 0.0
      %4192 = vmatpush1.msra.mxu0 0.0
      %4193 = vmatprep.subr.mxu0 0.0
      %4194 = vmatpush1.msra.mxu0 0.0
      %4195 = vmatprep.subr.mxu0 0.0
      %4196 = vmatpush1.msra.mxu0 0.0
      %4197 = vmatprep.subr.mxu0 0.0
      %4198 = vmatpush1.msra.mxu0 0.0
      %4199 = vmatprep.subr.mxu0 0.0
      %4200 = vmatpush1.msra.mxu0 0.0
      %4201 = vmatprep.subr.mxu0 0.0
      %4202 = vmatpush1.msra.mxu0 0.0
      %4203 = vmatprep.subr.mxu0 0.0
      %4204 = vmatpush1.msra.mxu0 0.0
      %4205 = vmatprep.subr.mxu0 0.0
      %4206 = vmatpush1.msra.mxu0 0.0
      %4207 = vmatprep.subr.mxu0 0.0
      %4208 = vmatpush1.msra.mxu0 0.0
      %4209 = vmatprep.subr.mxu0 0.0
      %4210 = vmatpush1.msra.mxu0 0.0
      %4211 = vmatprep.subr.mxu0 0.0
      %4212 = vmatpush1.msra.mxu0 0.0
      %4213 = vmatprep.subr.mxu0 0.0
      %4214 = vmatpush1.msra.mxu0 0.0
      %4215 = vmatprep.subr.mxu0 0.0
      %4216 = vmatpush1.msra.mxu0 0.0
      %4217 = vmatprep.subr.mxu0 0.0
      %4218 = vmatpush1.msra.mxu0 0.0
      %4219 = vmatprep.subr.mxu0 0.0
      %4220 = vmatpush1.msra.mxu0 0.0
      %4221 = vmatprep.subr.mxu0 0.0
      %4222 = vmatpush1.msra.mxu0 0.0
      %4223 = vmatprep.subr.mxu0 0.0
      %4224 = vmatpush1.msra.mxu0 0.0
      %4225 = vmatprep.subr.mxu0 0.0
      %4226 = vmatpush1.msra.mxu0 0.0
      %4227 = vmatprep.subr.mxu0 0.0
      %4228 = vmatpush1.msra.mxu0 0.0
      %4229 = vmatprep.subr.mxu0 0.0
      %4230 = vmatpush1.msra.mxu0 0.0
      %4231 = vmatprep.mubr.f32.mxu0 0.0
      %4232 = vmatmul.mubr.f32.gmra.mrb[0].mxu0 %v4069
      %v4233 = vpop.f32.mrb[0].mxu0
      %v4234 = vadd.f32 %v3910, %v4233
      %v4235 = vpop.f32.mrb[0].mxu0
      %4236 = vmatprep.mubr.f32.mxu0 0.0
      %4237 = vmatmul.mubr.f32.gmra.mrb[0].mxu0 %v4072
      %v4238 = vpop.f32.mrb[0].mxu0
      %v4239 = vadd.f32 %v3915, %v4238
      %v4240 = vpop.f32.mrb[0].mxu0
      %4241 = vmatprep.mubr.f32.mxu0 0.0
      %4242 = vmatmul.mubr.f32.gmra.mrb[0].mxu0 %v4075
      %v4243 = vpop.f32.mrb[0].mxu0
      %v4244 = vadd.f32 %v3920, %v4243
      %v4245 = vpop.f32.mrb[0].mxu0
      %4246 = vmatprep.mubr.f32.mxu0 0.0
      %4247 = vmatmul.mubr.f32.gmra.mrb[0].mxu0 %v4078
      %v4248 = vpop.f32.mrb[0].mxu0
      %v4249 = vadd.f32 %v3925, %v4248
      %v4250 = vpop.f32.mrb[0].mxu0
      %4251 = vmatprep.mubr.f32.mxu0 0.0
      %4252 = vmatmul.mubr.f32.gmra.mrb[0].mxu0 %v4081
      %v4253 = vpop.f32.mrb[0].mxu0
      %v4254 = vadd.f32 %v3930, %v4253
      %v4255 = vpop.f32.mrb[0].mxu0
      %4256 = vmatprep.mubr.f32.mxu0 0.0
      %4257 = vmatmul.mubr.f32.gmra.mrb[0].mxu0 %v4084
      %v4258 = vpop.f32.mrb[0].mxu0
      %v4259 = vadd.f32 %v3935, %v4258
      %v4260 = vpop.f32.mrb[0].mxu0
      %4261 = vmatprep.mubr.f32.mxu0 0.0
      %4262 = vmatmul.mubr.f32.gmra.mrb[0].mxu0 %v4087
      %v4263 = vpop.f32.mrb[0].mxu0
      %v4264 = vadd.f32 %v3940, %v4263
      %v4265 = vpop.f32.mrb[0].mxu0
      %4266 = vmatprep.mubr.f32.mxu0 0.0
      %4267 = vmatmul.mubr.f32.gmra.mrb[0].mxu0 %v4090
      %v4268 = vpop.f32.mrb[0].mxu0
      %v4269 = vadd.f32 %v3945, %v4268
      %v4270 = vpop.f32.mrb[0].mxu0
      %4271 = vmatprep.mubr.f32.mxu0 0.0
      %4272 = vmatmul.mubr.f32.gmra.mrb[0].mxu0 %v4093
      %v4273 = vpop.f32.mrb[0].mxu0
      %v4274 = vadd.f32 %v3950, %v4273
      %v4275 = vpop.f32.mrb[0].mxu0
      %4276 = vmatprep.mubr.f32.mxu0 0.0
      %4277 = vmatmul.mubr.f32.gmra.mrb[0].mxu0 %v4096
      %v4278 = vpop.f32.mrb[0].mxu0
      %v4279 = vadd.f32 %v3955, %v4278
      %v4280 = vpop.f32.mrb[0].mxu0
      %4281 = vmatprep.mubr.f32.mxu0 0.0
      %4282 = vmatmul.mubr.f32.gmra.mrb[0].mxu0 %v4099
      %v4283 = vpop.f32.mrb[0].mxu0
      %v4284 = vadd.f32 %v3960, %v4283
      %v4285 = vpop.f32.mrb[0].mxu0
      %4286 = vmatprep.mubr.f32.mxu0 0.0
      %4287 = vmatmul.mubr.f32.gmra.mrb[0].mxu0 %v4102
      %v4288 = vpop.f32.mrb[0].mxu0
      %v4289 = vadd.f32 %v3965, %v4288
      %v4290 = vpop.f32.mrb[0].mxu0
      %4291 = vmatprep.mubr.f32.mxu0 0.0
      %4292 = vmatmul.mubr.f32.gmra.mrb[0].mxu0 %v4105
      %v4293 = vpop.f32.mrb[0].mxu0
      %v4294 = vadd.f32 %v3970, %v4293
      %v4295 = vpop.f32.mrb[0].mxu0
      %4296 = vmatprep.mubr.f32.mxu0 0.0
      %4297 = vmatmul.mubr.f32.gmra.mrb[0].mxu0 %v4108
      %v4298 = vpop.f32.mrb[0].mxu0
      %v4299 = vadd.f32 %v3975, %v4298
      %v4300 = vpop.f32.mrb[0].mxu0
      %4301 = vmatprep.mubr.f32.mxu0 0.0
      %4302 = vmatmul.mubr.f32.gmra.mrb[0].mxu0 %v4111
      %v4303 = vpop.f32.mrb[0].mxu0
      %v4304 = vadd.f32 %v3980, %v4303
      %v4305 = vpop.f32.mrb[0].mxu0
      %4306 = vmatprep.mubr.f32.mxu0 0.0
      %4307 = vmatmul.mubr.f32.gmra.mrb[0].mxu0 %v4114
      %v4308 = vpop.f32.mrb[0].mxu0
      %v4309 = vadd.f32 %v3985, %v4308
      %v4310 = vpop.f32.mrb[0].mxu0
      %4311 = vmatprep.mubr.f32.mxu0 0.0
      %4312 = vmatmul.mubr.f32.gmra.mrb[0].mxu0 %v4117
      %v4313 = vpop.f32.mrb[0].mxu0
      %v4314 = vadd.f32 %v3990, %v4313
      %v4315 = vpop.f32.mrb[0].mxu0
      %4316 = vmatprep.mubr.f32.mxu0 0.0
      %4317 = vmatmul.mubr.f32.gmra.mrb[0].mxu0 %v4120
      %v4318 = vpop.f32.mrb[0].mxu0
      %v4319 = vadd.f32 %v3995, %v4318
      %v4320 = vpop.f32.mrb[0].mxu0
      %4321 = vmatprep.mubr.f32.mxu0 0.0
      %4322 = vmatmul.mubr.f32.gmra.mrb[0].mxu0 %v4123
      %v4323 = vpop.f32.mrb[0].mxu0
      %v4324 = vadd.f32 %v4000, %v4323
      %v4325 = vpop.f32.mrb[0].mxu0
      %4326 = vmatprep.mubr.f32.mxu0 0.0
      %4327 = vmatmul.mubr.f32.gmra.mrb[0].mxu0 %v4126
      %v4328 = vpop.f32.mrb[0].mxu0
      %v4329 = vadd.f32 %v4005, %v4328
      %v4330 = vpop.f32.mrb[0].mxu0
      %4331 = vmatprep.mubr.f32.mxu0 0.0
      %4332 = vmatmul.mubr.f32.gmra.mrb[0].mxu0 %v4129
      %v4333 = vpop.f32.mrb[0].mxu0
      %v4334 = vadd.f32 %v4010, %v4333
      %v4335 = vpop.f32.mrb[0].mxu0
      %4336 = vmatprep.mubr.f32.mxu0 0.0
      %4337 = vmatmul.mubr.f32.gmra.mrb[0].mxu0 %v4132
      %v4338 = vpop.f32.mrb[0].mxu0
      %v4339 = vadd.f32 %v4015, %v4338
      %v4340 = vpop.f32.mrb[0].mxu0
      %4341 = vmatprep.mubr.f32.mxu0 0.0
      %4342 = vmatmul.mubr.f32.gmra.mrb[0].mxu0 %v4135
      %v4343 = vpop.f32.mrb[0].mxu0
      %v4344 = vadd.f32 %v4020, %v4343
      %v4345 = vpop.f32.mrb[0].mxu0
      %4346 = vmatprep.mubr.f32.mxu0 0.0
      %4347 = vmatmul.mubr.f32.gmra.mrb[0].mxu0 %v4138
      %v4348 = vpop.f32.mrb[0].mxu0
      %v4349 = vadd.f32 %v4025, %v4348
      %v4350 = vpop.f32.mrb[0].mxu0
      %4351 = vmatprep.mubr.f32.mxu0 0.0
      %4352 = vmatmul.mubr.f32.gmra.mrb[0].mxu0 %v4141
      %v4353 = vpop.f32.mrb[0].mxu0
      %v4354 = vadd.f32 %v4030, %v4353
      %v4355 = vpop.f32.mrb[0].mxu0
      %4356 = vmatprep.mubr.f32.mxu0 0.0
      %4357 = vmatmul.mubr.f32.gmra.mrb[0].mxu0 %v4144
      %v4358 = vpop.f32.mrb[0].mxu0
      %v4359 = vadd.f32 %v4035, %v4358
      %v4360 = vpop.f32.mrb[0].mxu0
      %4361 = vmatprep.mubr.f32.mxu0 0.0
      %4362 = vmatmul.mubr.f32.gmra.mrb[0].mxu0 %v4147
      %v4363 = vpop.f32.mrb[0].mxu0
      %v4364 = vadd.f32 %v4040, %v4363
      %v4365 = vpop.f32.mrb[0].mxu0
      %4366 = vmatprep.mubr.f32.mxu0 0.0
      %4367 = vmatmul.mubr.f32.gmra.mrb[0].mxu0 %v4150
      %v4368 = vpop.f32.mrb[0].mxu0
      %v4369 = vadd.f32 %v4045, %v4368
      %v4370 = vpop.f32.mrb[0].mxu0
      %4371 = vmatprep.mubr.f32.mxu0 0.0
      %4372 = vmatmul.mubr.f32.gmra.mrb[0].mxu0 %v4153
      %v4373 = vpop.f32.mrb[0].mxu0
      %v4374 = vadd.f32 %v4050, %v4373
      %v4375 = vpop.f32.mrb[0].mxu0
      %4376 = vmatprep.mubr.f32.mxu0 0.0
      %4377 = vmatmul.mubr.f32.gmra.mrb[0].mxu0 %v4156
      %v4378 = vpop.f32.mrb[0].mxu0
      %v4379 = vadd.f32 %v4055, %v4378
      %v4380 = vpop.f32.mrb[0].mxu0
      %4381 = vmatprep.mubr.f32.mxu0 0.0
      %4382 = vmatmul.mubr.f32.gmra.mrb[0].mxu0 %v4159
      %v4383 = vpop.f32.mrb[0].mxu0
      %v4384 = vadd.f32 %v4060, %v4383
      %v4385 = vpop.f32.mrb[0].mxu0
      %4386 = vmatprep.mubr.f32.mxu0 0.0
      %4387 = vmatmul.mubr.f32.gmra.mrb[0].mxu0 %v4162
      %v4388 = vpop.f32.mrb[0].mxu0
      %v4389 = vadd.f32 %v4065, %v4388
      %v4390 = vpop.f32.mrb[0].mxu0
      %4391 = vdwg.mxu0
      %v4440 = vrot.slane %v2849, 2
      %v4441 = vrot.slane %v2850, 2
      %v4442 = vsel %vm1311, %v4440, %v4441
      %v4443 = vrot.slane %v2851, 2
      %v4444 = vsel %vm1311, %v4441, %v4443
      %v4445 = vrot.slane %v2852, 2
      %v4446 = vrot.slane %v2853, 2
      %v4447 = vsel %vm1311, %v4445, %v4446
      %v4448 = vrot.slane %v2854, 2
      %v4449 = vsel %vm1311, %v4446, %v4448
      %v4450 = vrot.slane %v2855, 2
      %v4451 = vrot.slane %v2856, 2
      %v4452 = vsel %vm1311, %v4450, %v4451
      %v4453 = vrot.slane %v2857, 2
      %v4454 = vsel %vm1311, %v4451, %v4453
      %v4455 = vrot.slane %v2858, 2
      %v4456 = vrot.slane %v2859, 2
      %v4457 = vsel %vm1311, %v4455, %v4456
      %v4458 = vrot.slane %v2860, 2
      %v4459 = vsel %vm1311, %v4456, %v4458
      %v4460 = vrot.slane %v2861, 2
      %v4461 = vrot.slane %v2862, 2
      %v4462 = vsel %vm1311, %v4460, %v4461
      %v4463 = vrot.slane %v2863, 2
      %v4464 = vsel %vm1311, %v4461, %v4463
      %v4465 = vrot.slane %v2864, 2
      %v4466 = vrot.slane %v2865, 2
      %v4467 = vsel %vm1311, %v4465, %v4466
      %v4468 = vrot.slane %v2866, 2
      %v4469 = vsel %vm1311, %v4466, %v4468
      %v4470 = vrot.slane %v2867, 2
      %v4471 = vrot.slane %v2868, 2
      %v4472 = vsel %vm1311, %v4470, %v4471
      %v4473 = vrot.slane %v2869, 2
      %v4474 = vsel %vm1311, %v4471, %v4473
      %v4475 = vrot.slane %v2870, 2
      %v4476 = vrot.slane %v2871, 2
      %v4477 = vsel %vm1311, %v4475, %v4476
      %v4478 = vrot.slane %v2872, 2
      %v4479 = vsel %vm1311, %v4476, %v4478
      %v4480 = vrot.slane %v2873, 2
      %v4481 = vrot.slane %v2874, 2
      %v4482 = vsel %vm1311, %v4480, %v4481
      %v4483 = vrot.slane %v2875, 2
      %v4484 = vsel %vm1311, %v4481, %v4483
      %v4485 = vrot.slane %v2876, 2
      %v4486 = vrot.slane %v2877, 2
      %v4487 = vsel %vm1311, %v4485, %v4486
      %v4488 = vrot.slane %v2878, 2
      %v4489 = vsel %vm1311, %v4486, %v4488
      %v4490 = vrot.slane %v2879, 2
      %v4491 = vrot.slane %v2880, 2
      %v4492 = vsel %vm1311, %v4490, %v4491
      %v4493 = vrot.slane %v2881, 2
      %v4494 = vsel %vm1311, %v4491, %v4493
      %v4495 = vrot.slane %v2882, 2
      %v4496 = vrot.slane %v2883, 2
      %v4497 = vsel %vm1311, %v4495, %v4496
      %v4498 = vrot.slane %v2884, 2
      %v4499 = vsel %vm1311, %v4496, %v4498
      %v4500 = vrot.slane %v2885, 2
      %v4501 = vrot.slane %v2886, 2
      %v4502 = vsel %vm1311, %v4500, %v4501
      %v4503 = vrot.slane %v2887, 2
      %v4504 = vsel %vm1311, %v4501, %v4503
      %v4505 = vrot.slane %v2888, 2
      %v4506 = vrot.slane %v2889, 2
      %v4507 = vsel %vm1311, %v4505, %v4506
      %v4508 = vrot.slane %v2890, 2
      %v4509 = vsel %vm1311, %v4506, %v4508
      %v4510 = vrot.slane %v2891, 2
      %v4511 = vrot.slane %v2892, 2
      %v4512 = vsel %vm1311, %v4510, %v4511
      %v4513 = vrot.slane %v2893, 2
      %v4514 = vsel %vm1311, %v4511, %v4513
      %v4515 = vrot.slane %v2894, 2
      %v4516 = vrot.slane %v2895, 2
      %v4517 = vsel %vm1311, %v4515, %v4516
      %v4518 = vrot.slane %v2896, 2
      %v4519 = vsel %vm1311, %v4516, %v4518
      %s4520 = scalar_lea.vmem %s1, 8
      %v4521 = vld [vmem:[%s4520] sm:$0xf]
      %v4522 = vsel %vm171, %v4442, 0
      %v4524 = vsel %vm171, %v4444, 0
      %v4526 = vsel %vm171, %v4447, 0
      %v4528 = vsel %vm171, %v4449, 0
      %v4530 = vsel %vm171, %v4452, 0
      %v4532 = vsel %vm171, %v4454, 0
      %v4534 = vsel %vm171, %v4457, 0
      %v4536 = vsel %vm171, %v4459, 0
      %v4538 = vsel %vm171, %v4462, 0
      %v4540 = vsel %vm171, %v4464, 0
      %v4542 = vsel %vm171, %v4467, 0
      %v4544 = vsel %vm171, %v4469, 0
      %v4546 = vsel %vm171, %v4472, 0
      %v4548 = vsel %vm171, %v4474, 0
      %v4550 = vsel %vm171, %v4477, 0
      %v4552 = vsel %vm171, %v4479, 0
      %v4554 = vsel %vm171, %v4482, 0
      %v4556 = vsel %vm171, %v4484, 0
      %v4558 = vsel %vm171, %v4487, 0
      %v4560 = vsel %vm171, %v4489, 0
      %v4562 = vsel %vm171, %v4492, 0
      %v4564 = vsel %vm171, %v4494, 0
      %v4566 = vsel %vm171, %v4497, 0
      %v4568 = vsel %vm171, %v4499, 0
      %v4570 = vsel %vm171, %v4502, 0
      %v4572 = vsel %vm171, %v4504, 0
      %v4574 = vsel %vm171, %v4507, 0
      %v4576 = vsel %vm171, %v4509, 0
      %v4578 = vsel %vm171, %v4512, 0
      %v4580 = vsel %vm171, %v4514, 0
      %v4582 = vsel %vm171, %v4517, 0
      %v4584 = vsel %vm171, %v4519, 0
      %v4587 = vsel %vm1624, %v4521, 0
      %4589 = vmatprep.subr.mxu0 0.0
      %4590 = vmatpush1.msra.mxu0 %v4587
      %4591 = vmatprep.subr.mxu0 0.0
      %4592 = vmatpush1.msra.mxu0 0.0
      %4593 = vmatprep.subr.mxu0 0.0
      %4594 = vmatpush1.msra.mxu0 0.0
      %4595 = vmatprep.subr.mxu0 0.0
      %4596 = vmatpush1.msra.mxu0 0.0
      %4597 = vmatprep.subr.mxu0 0.0
      %4598 = vmatpush1.msra.mxu0 0.0
      %4599 = vmatprep.subr.mxu0 0.0
      %4600 = vmatpush1.msra.mxu0 0.0
      %4601 = vmatprep.subr.mxu0 0.0
      %4602 = vmatpush1.msra.mxu0 0.0
      %4603 = vmatprep.subr.mxu0 0.0
      %4604 = vmatpush1.msra.mxu0 0.0
      %4605 = vmatprep.subr.mxu0 0.0
      %4606 = vmatpush1.msra.mxu0 0.0
      %4607 = vmatprep.subr.mxu0 0.0
      %4608 = vmatpush1.msra.mxu0 0.0
      %4609 = vmatprep.subr.mxu0 0.0
      %4610 = vmatpush1.msra.mxu0 0.0
      %4611 = vmatprep.subr.mxu0 0.0
      %4612 = vmatpush1.msra.mxu0 0.0
      %4613 = vmatprep.subr.mxu0 0.0
      %4614 = vmatpush1.msra.mxu0 0.0
      %4615 = vmatprep.subr.mxu0 0.0
      %4616 = vmatpush1.msra.mxu0 0.0
      %4617 = vmatprep.subr.mxu0 0.0
      %4618 = vmatpush1.msra.mxu0 0.0
      %4619 = vmatprep.subr.mxu0 0.0
      %4620 = vmatpush1.msra.mxu0 0.0
      %4621 = vmatprep.subr.mxu0 0.0
      %4622 = vmatpush1.msra.mxu0 0.0
      %4623 = vmatprep.subr.mxu0 0.0
      %4624 = vmatpush1.msra.mxu0 0.0
      %4625 = vmatprep.subr.mxu0 0.0
      %4626 = vmatpush1.msra.mxu0 0.0
      %4627 = vmatprep.subr.mxu0 0.0
      %4628 = vmatpush1.msra.mxu0 0.0
      %4629 = vmatprep.subr.mxu0 0.0
      %4630 = vmatpush1.msra.mxu0 0.0
      %4631 = vmatprep.subr.mxu0 0.0
      %4632 = vmatpush1.msra.mxu0 0.0
      %4633 = vmatprep.subr.mxu0 0.0
      %4634 = vmatpush1.msra.mxu0 0.0
      %4635 = vmatprep.subr.mxu0 0.0
      %4636 = vmatpush1.msra.mxu0 0.0
      %4637 = vmatprep.subr.mxu0 0.0
      %4638 = vmatpush1.msra.mxu0 0.0
      %4639 = vmatprep.subr.mxu0 0.0
      %4640 = vmatpush1.msra.mxu0 0.0
      %4641 = vmatprep.subr.mxu0 0.0
      %4642 = vmatpush1.msra.mxu0 0.0
      %4643 = vmatprep.subr.mxu0 0.0
      %4644 = vmatpush1.msra.mxu0 0.0
      %4645 = vmatprep.subr.mxu0 0.0
      %4646 = vmatpush1.msra.mxu0 0.0
      %4647 = vmatprep.subr.mxu0 0.0
      %4648 = vmatpush1.msra.mxu0 0.0
      %4649 = vmatprep.subr.mxu0 0.0
      %4650 = vmatpush1.msra.mxu0 0.0
      %4651 = vmatprep.subr.mxu0 0.0
      %4652 = vmatpush1.msra.mxu0 0.0
      %4653 = vmatprep.mubr.f32.mxu0 0.0
      %4654 = vmatmul.mubr.f32.gmra.mrb[0].mxu0 %v4522
      %v4655 = vpop.f32.mrb[0].mxu0
      %v4656 = vadd.f32 0.0, %v4655
      %v4657 = vpop.f32.mrb[0].mxu0
      %4658 = vmatprep.mubr.f32.mxu0 0.0
      %4659 = vmatmul.mubr.f32.gmra.mrb[0].mxu0 %v4524
      %v4660 = vpop.f32.mrb[0].mxu0
      %v4661 = vadd.f32 0.0, %v4660
      %v4662 = vpop.f32.mrb[0].mxu0
      %4663 = vmatprep.mubr.f32.mxu0 0.0
      %4664 = vmatmul.mubr.f32.gmra.mrb[0].mxu0 %v4526
      %v4665 = vpop.f32.mrb[0].mxu0
      %v4666 = vadd.f32 0.0, %v4665
      %v4667 = vpop.f32.mrb[0].mxu0
      %4668 = vmatprep.mubr.f32.mxu0 0.0
      %4669 = vmatmul.mubr.f32.gmra.mrb[0].mxu0 %v4528
      %v4670 = vpop.f32.mrb[0].mxu0
      %v4671 = vadd.f32 0.0, %v4670
      %v4672 = vpop.f32.mrb[0].mxu0
      %4673 = vmatprep.mubr.f32.mxu0 0.0
      %4674 = vmatmul.mubr.f32.gmra.mrb[0].mxu0 %v4530
      %v4675 = vpop.f32.mrb[0].mxu0
      %v4676 = vadd.f32 0.0, %v4675
      %v4677 = vpop.f32.mrb[0].mxu0
      %4678 = vmatprep.mubr.f32.mxu0 0.0
      %4679 = vmatmul.mubr.f32.gmra.mrb[0].mxu0 %v4532
      %v4680 = vpop.f32.mrb[0].mxu0
      %v4681 = vadd.f32 0.0, %v4680
      %v4682 = vpop.f32.mrb[0].mxu0
      %4683 = vmatprep.mubr.f32.mxu0 0.0
      %4684 = vmatmul.mubr.f32.gmra.mrb[0].mxu0 %v4534
      %v4685 = vpop.f32.mrb[0].mxu0
      %v4686 = vadd.f32 0.0, %v4685
      %v4687 = vpop.f32.mrb[0].mxu0
      %4688 = vmatprep.mubr.f32.mxu0 0.0
      %4689 = vmatmul.mubr.f32.gmra.mrb[0].mxu0 %v4536
      %v4690 = vpop.f32.mrb[0].mxu0
      %v4691 = vadd.f32 0.0, %v4690
      %v4692 = vpop.f32.mrb[0].mxu0
      %4693 = vmatprep.mubr.f32.mxu0 0.0
      %4694 = vmatmul.mubr.f32.gmra.mrb[0].mxu0 %v4538
      %v4695 = vpop.f32.mrb[0].mxu0
      %v4696 = vadd.f32 0.0, %v4695
      %v4697 = vpop.f32.mrb[0].mxu0
      %4698 = vmatprep.mubr.f32.mxu0 0.0
      %4699 = vmatmul.mubr.f32.gmra.mrb[0].mxu0 %v4540
      %v4700 = vpop.f32.mrb[0].mxu0
      %v4701 = vadd.f32 0.0, %v4700
      %v4702 = vpop.f32.mrb[0].mxu0
      %4703 = vmatprep.mubr.f32.mxu0 0.0
      %4704 = vmatmul.mubr.f32.gmra.mrb[0].mxu0 %v4542
      %v4705 = vpop.f32.mrb[0].mxu0
      %v4706 = vadd.f32 0.0, %v4705
      %v4707 = vpop.f32.mrb[0].mxu0
      %4708 = vmatprep.mubr.f32.mxu0 0.0
      %4709 = vmatmul.mubr.f32.gmra.mrb[0].mxu0 %v4544
      %v4710 = vpop.f32.mrb[0].mxu0
      %v4711 = vadd.f32 0.0, %v4710
      %v4712 = vpop.f32.mrb[0].mxu0
      %4713 = vmatprep.mubr.f32.mxu0 0.0
      %4714 = vmatmul.mubr.f32.gmra.mrb[0].mxu0 %v4546
      %v4715 = vpop.f32.mrb[0].mxu0
      %v4716 = vadd.f32 0.0, %v4715
      %v4717 = vpop.f32.mrb[0].mxu0
      %4718 = vmatprep.mubr.f32.mxu0 0.0
      %4719 = vmatmul.mubr.f32.gmra.mrb[0].mxu0 %v4548
      %v4720 = vpop.f32.mrb[0].mxu0
      %v4721 = vadd.f32 0.0, %v4720
      %v4722 = vpop.f32.mrb[0].mxu0
      %4723 = vmatprep.mubr.f32.mxu0 0.0
      %4724 = vmatmul.mubr.f32.gmra.mrb[0].mxu0 %v4550
      %v4725 = vpop.f32.mrb[0].mxu0
      %v4726 = vadd.f32 0.0, %v4725
      %v4727 = vpop.f32.mrb[0].mxu0
      %4728 = vmatprep.mubr.f32.mxu0 0.0
      %4729 = vmatmul.mubr.f32.gmra.mrb[0].mxu0 %v4552
      %v4730 = vpop.f32.mrb[0].mxu0
      %v4731 = vadd.f32 0.0, %v4730
      %v4732 = vpop.f32.mrb[0].mxu0
      %4733 = vmatprep.mubr.f32.mxu0 0.0
      %4734 = vmatmul.mubr.f32.gmra.mrb[0].mxu0 %v4554
      %v4735 = vpop.f32.mrb[0].mxu0
      %v4736 = vadd.f32 0.0, %v4735
      %v4737 = vpop.f32.mrb[0].mxu0
      %4738 = vmatprep.mubr.f32.mxu0 0.0
      %4739 = vmatmul.mubr.f32.gmra.mrb[0].mxu0 %v4556
      %v4740 = vpop.f32.mrb[0].mxu0
      %v4741 = vadd.f32 0.0, %v4740
      %v4742 = vpop.f32.mrb[0].mxu0
      %4743 = vmatprep.mubr.f32.mxu0 0.0
      %4744 = vmatmul.mubr.f32.gmra.mrb[0].mxu0 %v4558
      %v4745 = vpop.f32.mrb[0].mxu0
      %v4746 = vadd.f32 0.0, %v4745
      %v4747 = vpop.f32.mrb[0].mxu0
      %4748 = vmatprep.mubr.f32.mxu0 0.0
      %4749 = vmatmul.mubr.f32.gmra.mrb[0].mxu0 %v4560
      %v4750 = vpop.f32.mrb[0].mxu0
      %v4751 = vadd.f32 0.0, %v4750
      %v4752 = vpop.f32.mrb[0].mxu0
      %4753 = vmatprep.mubr.f32.mxu0 0.0
      %4754 = vmatmul.mubr.f32.gmra.mrb[0].mxu0 %v4562
      %v4755 = vpop.f32.mrb[0].mxu0
      %v4756 = vadd.f32 0.0, %v4755
      %v4757 = vpop.f32.mrb[0].mxu0
      %4758 = vmatprep.mubr.f32.mxu0 0.0
      %4759 = vmatmul.mubr.f32.gmra.mrb[0].mxu0 %v4564
      %v4760 = vpop.f32.mrb[0].mxu0
      %v4761 = vadd.f32 0.0, %v4760
      %v4762 = vpop.f32.mrb[0].mxu0
      %4763 = vmatprep.mubr.f32.mxu0 0.0
      %4764 = vmatmul.mubr.f32.gmra.mrb[0].mxu0 %v4566
      %v4765 = vpop.f32.mrb[0].mxu0
      %v4766 = vadd.f32 0.0, %v4765
      %v4767 = vpop.f32.mrb[0].mxu0
      %4768 = vmatprep.mubr.f32.mxu0 0.0
      %4769 = vmatmul.mubr.f32.gmra.mrb[0].mxu0 %v4568
      %v4770 = vpop.f32.mrb[0].mxu0
      %v4771 = vadd.f32 0.0, %v4770
      %v4772 = vpop.f32.mrb[0].mxu0
      %4773 = vmatprep.mubr.f32.mxu0 0.0
      %4774 = vmatmul.mubr.f32.gmra.mrb[0].mxu0 %v4570
      %v4775 = vpop.f32.mrb[0].mxu0
      %v4776 = vadd.f32 0.0, %v4775
      %v4777 = vpop.f32.mrb[0].mxu0
      %4778 = vmatprep.mubr.f32.mxu0 0.0
      %4779 = vmatmul.mubr.f32.gmra.mrb[0].mxu0 %v4572
      %v4780 = vpop.f32.mrb[0].mxu0
      %v4781 = vadd.f32 0.0, %v4780
      %v4782 = vpop.f32.mrb[0].mxu0
      %4783 = vmatprep.mubr.f32.mxu0 0.0
      %4784 = vmatmul.mubr.f32.gmra.mrb[0].mxu0 %v4574
      %v4785 = vpop.f32.mrb[0].mxu0
      %v4786 = vadd.f32 0.0, %v4785
      %v4787 = vpop.f32.mrb[0].mxu0
      %4788 = vmatprep.mubr.f32.mxu0 0.0
      %4789 = vmatmul.mubr.f32.gmra.mrb[0].mxu0 %v4576
      %v4790 = vpop.f32.mrb[0].mxu0
      %v4791 = vadd.f32 0.0, %v4790
      %v4792 = vpop.f32.mrb[0].mxu0
      %4793 = vmatprep.mubr.f32.mxu0 0.0
      %4794 = vmatmul.mubr.f32.gmra.mrb[0].mxu0 %v4578
      %v4795 = vpop.f32.mrb[0].mxu0
      %v4796 = vadd.f32 0.0, %v4795
      %v4797 = vpop.f32.mrb[0].mxu0
      %4798 = vmatprep.mubr.f32.mxu0 0.0
      %4799 = vmatmul.mubr.f32.gmra.mrb[0].mxu0 %v4580
      %v4800 = vpop.f32.mrb[0].mxu0
      %v4801 = vadd.f32 0.0, %v4800
      %v4802 = vpop.f32.mrb[0].mxu0
      %4803 = vmatprep.mubr.f32.mxu0 0.0
      %4804 = vmatmul.mubr.f32.gmra.mrb[0].mxu0 %v4582
      %v4805 = vpop.f32.mrb[0].mxu0
      %v4806 = vadd.f32 0.0, %v4805
      %v4807 = vpop.f32.mrb[0].mxu0
      %4808 = vmatprep.mubr.f32.mxu0 0.0
      %4809 = vmatmul.mubr.f32.gmra.mrb[0].mxu0 %v4584
      %v4810 = vpop.f32.mrb[0].mxu0
      %v4811 = vadd.f32 0.0, %v4810
      %v4812 = vpop.f32.mrb[0].mxu0
      %4813 = vdwg.mxu0
      %v4814 = vadd.f32 %v4234, %v4656
      %v4815 = vadd.f32 %v4239, %v4661
      %v4816 = vadd.f32 %v4244, %v4666
      %v4817 = vadd.f32 %v4249, %v4671
      %v4818 = vadd.f32 %v4254, %v4676
      %v4819 = vadd.f32 %v4259, %v4681
      %v4820 = vadd.f32 %v4264, %v4686
      %v4821 = vadd.f32 %v4269, %v4691
      %v4822 = vadd.f32 %v4274, %v4696
      %v4823 = vadd.f32 %v4279, %v4701
      %v4824 = vadd.f32 %v4284, %v4706
      %v4825 = vadd.f32 %v4289, %v4711
      %v4826 = vadd.f32 %v4294, %v4716
      %v4827 = vadd.f32 %v4299, %v4721
      %v4828 = vadd.f32 %v4304, %v4726
      %v4829 = vadd.f32 %v4309, %v4731
      %v4830 = vadd.f32 %v4314, %v4736
      %v4831 = vadd.f32 %v4319, %v4741
      %v4832 = vadd.f32 %v4324, %v4746
      %v4833 = vadd.f32 %v4329, %v4751
      %v4834 = vadd.f32 %v4334, %v4756
      %v4835 = vadd.f32 %v4339, %v4761
      %v4836 = vadd.f32 %v4344, %v4766
      %v4837 = vadd.f32 %v4349, %v4771
      %v4838 = vadd.f32 %v4354, %v4776
      %v4839 = vadd.f32 %v4359, %v4781
      %v4840 = vadd.f32 %v4364, %v4786
      %v4841 = vadd.f32 %v4369, %v4791
      %v4842 = vadd.f32 %v4374, %v4796
      %v4843 = vadd.f32 %v4379, %v4801
      %v4844 = vadd.f32 %v4384, %v4806
      %v4845 = vadd.f32 %v4389, %v4811
      %s4846 = scalar_lea.vmem %s1, 12
      %v4847 = vld [vmem:[%s4846] sm:$0xf]
      %v4849 = vsel %vm171, %v3581, 0
      %v4852 = vsel %vm171, %v3582, 0
      %v4855 = vsel %vm171, %v3583, 0
      %v4858 = vsel %vm171, %v3584, 0
      %v4861 = vsel %vm171, %v3585, 0
      %v4864 = vsel %vm171, %v3586, 0
      %v4867 = vsel %vm171, %v3587, 0
      %v4870 = vsel %vm171, %v3588, 0
      %v4873 = vsel %vm171, %v3589, 0
      %v4876 = vsel %vm171, %v3590, 0
      %v4879 = vsel %vm171, %v3591, 0
      %v4882 = vsel %vm171, %v3592, 0
      %v4885 = vsel %vm171, %v3593, 0
      %v4888 = vsel %vm171, %v3594, 0
      %v4891 = vsel %vm171, %v3595, 0
      %v4894 = vsel %vm171, %v3596, 0
      %v4897 = vsel %vm171, %v3597, 0
      %v4900 = vsel %vm171, %v3598, 0
      %v4903 = vsel %vm171, %v3599, 0
      %v4906 = vsel %vm171, %v3600, 0
      %v4909 = vsel %vm171, %v3601, 0
      %v4912 = vsel %vm171, %v3602, 0
      %v4915 = vsel %vm171, %v3603, 0
      %v4918 = vsel %vm171, %v3604, 0
      %v4921 = vsel %vm171, %v3605, 0
      %v4924 = vsel %vm171, %v3606, 0
      %v4927 = vsel %vm171, %v3607, 0
      %v4930 = vsel %vm171, %v3608, 0
      %v4933 = vsel %vm171, %v3609, 0
      %v4936 = vsel %vm171, %v3610, 0
      %v4939 = vsel %vm171, %v3611, 0
      %v4942 = vsel %vm171, %v3612, 0
      %v4945 = vsel %vm1624, %v4847, 0
      %4947 = vmatprep.subr.mxu0 0.0
      %4948 = vmatpush1.msra.mxu0 %v4945
      %4949 = vmatprep.subr.mxu0 0.0
      %4950 = vmatpush1.msra.mxu0 0.0
      %4951 = vmatprep.subr.mxu0 0.0
      %4952 = vmatpush1.msra.mxu0 0.0
      %4953 = vmatprep.subr.mxu0 0.0
      %4954 = vmatpush1.msra.mxu0 0.0
      %4955 = vmatprep.subr.mxu0 0.0
      %4956 = vmatpush1.msra.mxu0 0.0
      %4957 = vmatprep.subr.mxu0 0.0
      %4958 = vmatpush1.msra.mxu0 0.0
      %4959 = vmatprep.subr.mxu0 0.0
      %4960 = vmatpush1.msra.mxu0 0.0
      %4961 = vmatprep.subr.mxu0 0.0
      %4962 = vmatpush1.msra.mxu0 0.0
      %4963 = vmatprep.subr.mxu0 0.0
      %4964 = vmatpush1.msra.mxu0 0.0
      %4965 = vmatprep.subr.mxu0 0.0
      %4966 = vmatpush1.msra.mxu0 0.0
      %4967 = vmatprep.subr.mxu0 0.0
      %4968 = vmatpush1.msra.mxu0 0.0
      %4969 = vmatprep.subr.mxu0 0.0
      %4970 = vmatpush1.msra.mxu0 0.0
      %4971 = vmatprep.subr.mxu0 0.0
      %4972 = vmatpush1.msra.mxu0 0.0
      %4973 = vmatprep.subr.mxu0 0.0
      %4974 = vmatpush1.msra.mxu0 0.0
      %4975 = vmatprep.subr.mxu0 0.0
      %4976 = vmatpush1.msra.mxu0 0.0
      %4977 = vmatprep.subr.mxu0 0.0
      %4978 = vmatpush1.msra.mxu0 0.0
      %4979 = vmatprep.subr.mxu0 0.0
      %4980 = vmatpush1.msra.mxu0 0.0
      %4981 = vmatprep.subr.mxu0 0.0
      %4982 = vmatpush1.msra.mxu0 0.0
      %4983 = vmatprep.subr.mxu0 0.0
      %4984 = vmatpush1.msra.mxu0 0.0
      %4985 = vmatprep.subr.mxu0 0.0
      %4986 = vmatpush1.msra.mxu0 0.0
      %4987 = vmatprep.subr.mxu0 0.0
      %4988 = vmatpush1.msra.mxu0 0.0
      %4989 = vmatprep.subr.mxu0 0.0
      %4990 = vmatpush1.msra.mxu0 0.0
      %4991 = vmatprep.subr.mxu0 0.0
      %4992 = vmatpush1.msra.mxu0 0.0
      %4993 = vmatprep.subr.mxu0 0.0
      %4994 = vmatpush1.msra.mxu0 0.0
      %4995 = vmatprep.subr.mxu0 0.0
      %4996 = vmatpush1.msra.mxu0 0.0
      %4997 = vmatprep.subr.mxu0 0.0
      %4998 = vmatpush1.msra.mxu0 0.0
      %4999 = vmatprep.subr.mxu0 0.0
      %5000 = vmatpush1.msra.mxu0 0.0
      %5001 = vmatprep.subr.mxu0 0.0
      %5002 = vmatpush1.msra.mxu0 0.0
      %5003 = vmatprep.subr.mxu0 0.0
      %5004 = vmatpush1.msra.mxu0 0.0
      %5005 = vmatprep.subr.mxu0 0.0
      %5006 = vmatpush1.msra.mxu0 0.0
      %5007 = vmatprep.subr.mxu0 0.0
      %5008 = vmatpush1.msra.mxu0 0.0
      %5009 = vmatprep.subr.mxu0 0.0
      %5010 = vmatpush1.msra.mxu0 0.0
      %5011 = vmatprep.mubr.f32.mxu0 0.0
      %5012 = vmatmul.mubr.f32.gmra.mrb[0].mxu0 %v4849
      %v5013 = vpop.f32.mrb[0].mxu0
      %v5014 = vadd.f32 0.0, %v5013
      %v5015 = vpop.f32.mrb[0].mxu0
      %5016 = vmatprep.mubr.f32.mxu0 0.0
      %5017 = vmatmul.mubr.f32.gmra.mrb[0].mxu0 %v4852
      %v5018 = vpop.f32.mrb[0].mxu0
      %v5019 = vadd.f32 0.0, %v5018
      %v5020 = vpop.f32.mrb[0].mxu0
      %5021 = vmatprep.mubr.f32.mxu0 0.0
      %5022 = vmatmul.mubr.f32.gmra.mrb[0].mxu0 %v4855
      %v5023 = vpop.f32.mrb[0].mxu0
      %v5024 = vadd.f32 0.0, %v5023
      %v5025 = vpop.f32.mrb[0].mxu0
      %5026 = vmatprep.mubr.f32.mxu0 0.0
      %5027 = vmatmul.mubr.f32.gmra.mrb[0].mxu0 %v4858
      %v5028 = vpop.f32.mrb[0].mxu0
      %v5029 = vadd.f32 0.0, %v5028
      %v5030 = vpop.f32.mrb[0].mxu0
      %5031 = vmatprep.mubr.f32.mxu0 0.0
      %5032 = vmatmul.mubr.f32.gmra.mrb[0].mxu0 %v4861
      %v5033 = vpop.f32.mrb[0].mxu0
      %v5034 = vadd.f32 0.0, %v5033
      %v5035 = vpop.f32.mrb[0].mxu0
      %5036 = vmatprep.mubr.f32.mxu0 0.0
      %5037 = vmatmul.mubr.f32.gmra.mrb[0].mxu0 %v4864
      %v5038 = vpop.f32.mrb[0].mxu0
      %v5039 = vadd.f32 0.0, %v5038
      %v5040 = vpop.f32.mrb[0].mxu0
      %5041 = vmatprep.mubr.f32.mxu0 0.0
      %5042 = vmatmul.mubr.f32.gmra.mrb[0].mxu0 %v4867
      %v5043 = vpop.f32.mrb[0].mxu0
      %v5044 = vadd.f32 0.0, %v5043
      %v5045 = vpop.f32.mrb[0].mxu0
      %5046 = vmatprep.mubr.f32.mxu0 0.0
      %5047 = vmatmul.mubr.f32.gmra.mrb[0].mxu0 %v4870
      %v5048 = vpop.f32.mrb[0].mxu0
      %v5049 = vadd.f32 0.0, %v5048
      %v5050 = vpop.f32.mrb[0].mxu0
      %5051 = vmatprep.mubr.f32.mxu0 0.0
      %5052 = vmatmul.mubr.f32.gmra.mrb[0].mxu0 %v4873
      %v5053 = vpop.f32.mrb[0].mxu0
      %v5054 = vadd.f32 0.0, %v5053
      %v5055 = vpop.f32.mrb[0].mxu0
      %5056 = vmatprep.mubr.f32.mxu0 0.0
      %5057 = vmatmul.mubr.f32.gmra.mrb[0].mxu0 %v4876
      %v5058 = vpop.f32.mrb[0].mxu0
      %v5059 = vadd.f32 0.0, %v5058
      %v5060 = vpop.f32.mrb[0].mxu0
      %5061 = vmatprep.mubr.f32.mxu0 0.0
      %5062 = vmatmul.mubr.f32.gmra.mrb[0].mxu0 %v4879
      %v5063 = vpop.f32.mrb[0].mxu0
      %v5064 = vadd.f32 0.0, %v5063
      %v5065 = vpop.f32.mrb[0].mxu0
      %5066 = vmatprep.mubr.f32.mxu0 0.0
      %5067 = vmatmul.mubr.f32.gmra.mrb[0].mxu0 %v4882
      %v5068 = vpop.f32.mrb[0].mxu0
      %v5069 = vadd.f32 0.0, %v5068
      %v5070 = vpop.f32.mrb[0].mxu0
      %5071 = vmatprep.mubr.f32.mxu0 0.0
      %5072 = vmatmul.mubr.f32.gmra.mrb[0].mxu0 %v4885
      %v5073 = vpop.f32.mrb[0].mxu0
      %v5074 = vadd.f32 0.0, %v5073
      %v5075 = vpop.f32.mrb[0].mxu0
      %5076 = vmatprep.mubr.f32.mxu0 0.0
      %5077 = vmatmul.mubr.f32.gmra.mrb[0].mxu0 %v4888
      %v5078 = vpop.f32.mrb[0].mxu0
      %v5079 = vadd.f32 0.0, %v5078
      %v5080 = vpop.f32.mrb[0].mxu0
      %5081 = vmatprep.mubr.f32.mxu0 0.0
      %5082 = vmatmul.mubr.f32.gmra.mrb[0].mxu0 %v4891
      %v5083 = vpop.f32.mrb[0].mxu0
      %v5084 = vadd.f32 0.0, %v5083
      %v5085 = vpop.f32.mrb[0].mxu0
      %5086 = vmatprep.mubr.f32.mxu0 0.0
      %5087 = vmatmul.mubr.f32.gmra.mrb[0].mxu0 %v4894
      %v5088 = vpop.f32.mrb[0].mxu0
      %v5089 = vadd.f32 0.0, %v5088
      %v5090 = vpop.f32.mrb[0].mxu0
      %5091 = vmatprep.mubr.f32.mxu0 0.0
      %5092 = vmatmul.mubr.f32.gmra.mrb[0].mxu0 %v4897
      %v5093 = vpop.f32.mrb[0].mxu0
      %v5094 = vadd.f32 0.0, %v5093
      %v5095 = vpop.f32.mrb[0].mxu0
      %5096 = vmatprep.mubr.f32.mxu0 0.0
      %5097 = vmatmul.mubr.f32.gmra.mrb[0].mxu0 %v4900
      %v5098 = vpop.f32.mrb[0].mxu0
      %v5099 = vadd.f32 0.0, %v5098
      %v5100 = vpop.f32.mrb[0].mxu0
      %5101 = vmatprep.mubr.f32.mxu0 0.0
      %5102 = vmatmul.mubr.f32.gmra.mrb[0].mxu0 %v4903
      %v5103 = vpop.f32.mrb[0].mxu0
      %v5104 = vadd.f32 0.0, %v5103
      %v5105 = vpop.f32.mrb[0].mxu0
      %5106 = vmatprep.mubr.f32.mxu0 0.0
      %5107 = vmatmul.mubr.f32.gmra.mrb[0].mxu0 %v4906
      %v5108 = vpop.f32.mrb[0].mxu0
      %v5109 = vadd.f32 0.0, %v5108
      %v5110 = vpop.f32.mrb[0].mxu0
      %5111 = vmatprep.mubr.f32.mxu0 0.0
      %5112 = vmatmul.mubr.f32.gmra.mrb[0].mxu0 %v4909
      %v5113 = vpop.f32.mrb[0].mxu0
      %v5114 = vadd.f32 0.0, %v5113
      %v5115 = vpop.f32.mrb[0].mxu0
      %5116 = vmatprep.mubr.f32.mxu0 0.0
      %5117 = vmatmul.mubr.f32.gmra.mrb[0].mxu0 %v4912
      %v5118 = vpop.f32.mrb[0].mxu0
      %v5119 = vadd.f32 0.0, %v5118
      %v5120 = vpop.f32.mrb[0].mxu0
      %5121 = vmatprep.mubr.f32.mxu0 0.0
      %5122 = vmatmul.mubr.f32.gmra.mrb[0].mxu0 %v4915
      %v5123 = vpop.f32.mrb[0].mxu0
      %v5124 = vadd.f32 0.0, %v5123
      %v5125 = vpop.f32.mrb[0].mxu0
      %5126 = vmatprep.mubr.f32.mxu0 0.0
      %5127 = vmatmul.mubr.f32.gmra.mrb[0].mxu0 %v4918
      %v5128 = vpop.f32.mrb[0].mxu0
      %v5129 = vadd.f32 0.0, %v5128
      %v5130 = vpop.f32.mrb[0].mxu0
      %5131 = vmatprep.mubr.f32.mxu0 0.0
      %5132 = vmatmul.mubr.f32.gmra.mrb[0].mxu0 %v4921
      %v5133 = vpop.f32.mrb[0].mxu0
      %v5134 = vadd.f32 0.0, %v5133
      %v5135 = vpop.f32.mrb[0].mxu0
      %5136 = vmatprep.mubr.f32.mxu0 0.0
      %5137 = vmatmul.mubr.f32.gmra.mrb[0].mxu0 %v4924
      %v5138 = vpop.f32.mrb[0].mxu0
      %v5139 = vadd.f32 0.0, %v5138
      %v5140 = vpop.f32.mrb[0].mxu0
      %5141 = vmatprep.mubr.f32.mxu0 0.0
      %5142 = vmatmul.mubr.f32.gmra.mrb[0].mxu0 %v4927
      %v5143 = vpop.f32.mrb[0].mxu0
      %v5144 = vadd.f32 0.0, %v5143
      %v5145 = vpop.f32.mrb[0].mxu0
      %5146 = vmatprep.mubr.f32.mxu0 0.0
      %5147 = vmatmul.mubr.f32.gmra.mrb[0].mxu0 %v4930
      %v5148 = vpop.f32.mrb[0].mxu0
      %v5149 = vadd.f32 0.0, %v5148
      %v5150 = vpop.f32.mrb[0].mxu0
      %5151 = vmatprep.mubr.f32.mxu0 0.0
      %5152 = vmatmul.mubr.f32.gmra.mrb[0].mxu0 %v4933
      %v5153 = vpop.f32.mrb[0].mxu0
      %v5154 = vadd.f32 0.0, %v5153
      %v5155 = vpop.f32.mrb[0].mxu0
      %5156 = vmatprep.mubr.f32.mxu0 0.0
      %5157 = vmatmul.mubr.f32.gmra.mrb[0].mxu0 %v4936
      %v5158 = vpop.f32.mrb[0].mxu0
      %v5159 = vadd.f32 0.0, %v5158
      %v5160 = vpop.f32.mrb[0].mxu0
      %5161 = vmatprep.mubr.f32.mxu0 0.0
      %5162 = vmatmul.mubr.f32.gmra.mrb[0].mxu0 %v4939
      %v5163 = vpop.f32.mrb[0].mxu0
      %v5164 = vadd.f32 0.0, %v5163
      %v5165 = vpop.f32.mrb[0].mxu0
      %5166 = vmatprep.mubr.f32.mxu0 0.0
      %5167 = vmatmul.mubr.f32.gmra.mrb[0].mxu0 %v4942
      %v5168 = vpop.f32.mrb[0].mxu0
      %v5169 = vadd.f32 0.0, %v5168
      %v5170 = vpop.f32.mrb[0].mxu0
      %5171 = vdwg.mxu0
      %v5172 = vadd.f32 %v4814, %v5014
      %v5173 = vadd.f32 %v4815, %v5019
      %v5174 = vadd.f32 %v4816, %v5024
      %v5175 = vadd.f32 %v4817, %v5029
      %v5176 = vadd.f32 %v4818, %v5034
      %v5177 = vadd.f32 %v4819, %v5039
      %v5178 = vadd.f32 %v4820, %v5044
      %v5179 = vadd.f32 %v4821, %v5049
      %v5180 = vadd.f32 %v4822, %v5054
      %v5181 = vadd.f32 %v4823, %v5059
      %v5182 = vadd.f32 %v4824, %v5064
      %v5183 = vadd.f32 %v4825, %v5069
      %v5184 = vadd.f32 %v4826, %v5074
      %v5185 = vadd.f32 %v4827, %v5079
      %v5186 = vadd.f32 %v4828, %v5084
      %v5187 = vadd.f32 %v4829, %v5089
      %v5188 = vadd.f32 %v4830, %v5094
      %v5189 = vadd.f32 %v4831, %v5099
      %v5190 = vadd.f32 %v4832, %v5104
      %v5191 = vadd.f32 %v4833, %v5109
      %v5192 = vadd.f32 %v4834, %v5114
      %v5193 = vadd.f32 %v4835, %v5119
      %v5194 = vadd.f32 %v4836, %v5124
      %v5195 = vadd.f32 %v4837, %v5129
      %v5196 = vadd.f32 %v4838, %v5134
      %v5197 = vadd.f32 %v4839, %v5139
      %v5198 = vadd.f32 %v4840, %v5144
      %v5199 = vadd.f32 %v4841, %v5149
      %v5200 = vadd.f32 %v4842, %v5154
      %v5201 = vadd.f32 %v4843, %v5159
      %v5202 = vadd.f32 %v4844, %v5164
      %v5203 = vadd.f32 %v4845, %v5169
      %v5204 = vld [vmem:[%s2] sm:$0x1]
      %v5206 = vlaneseq
      %v5207 = vshrl.u32 %v5206, 7
      %v5208 = vsub.s32 0, %v5207
      %v5209 = vrot.slane %v5204, %v5208
      %v5211 = vadd.f32 %v5172, %v5209
      %v5212 = vadd.f32 %v5173, %v5209
      %v5213 = vadd.f32 %v5174, %v5209
      %v5214 = vadd.f32 %v5175, %v5209
      %v5215 = vadd.f32 %v5176, %v5209
      %v5216 = vadd.f32 %v5177, %v5209
      %v5217 = vadd.f32 %v5178, %v5209
      %v5218 = vadd.f32 %v5179, %v5209
      %v5219 = vadd.f32 %v5180, %v5209
      %v5220 = vadd.f32 %v5181, %v5209
      %v5221 = vadd.f32 %v5182, %v5209
      %v5222 = vadd.f32 %v5183, %v5209
      %v5223 = vadd.f32 %v5184, %v5209
      %v5224 = vadd.f32 %v5185, %v5209
      %v5225 = vadd.f32 %v5186, %v5209
      %v5226 = vadd.f32 %v5187, %v5209
      %v5227 = vadd.f32 %v5188, %v5209
      %v5228 = vadd.f32 %v5189, %v5209
      %v5229 = vadd.f32 %v5190, %v5209
      %v5230 = vadd.f32 %v5191, %v5209
      %v5231 = vadd.f32 %v5192, %v5209
      %v5232 = vadd.f32 %v5193, %v5209
      %v5233 = vadd.f32 %v5194, %v5209
      %v5234 = vadd.f32 %v5195, %v5209
      %v5235 = vadd.f32 %v5196, %v5209
      %v5236 = vadd.f32 %v5197, %v5209
      %v5237 = vadd.f32 %v5198, %v5209
      %v5238 = vadd.f32 %v5199, %v5209
      %v5239 = vadd.f32 %v5200, %v5209
      %v5240 = vadd.f32 %v5201, %v5209
      %v5241 = vadd.f32 %v5202, %v5209
      %v5242 = vadd.f32 %v5203, %v5209
      %vm5243 = vcmp.gt.f32.partialorder %v5211, 0.0
      %vm5244 = vcmp.gt.f32.partialorder %v5212, 0.0
      %vm5245 = vcmp.gt.f32.partialorder %v5213, 0.0
      %vm5246 = vcmp.gt.f32.partialorder %v5214, 0.0
      %vm5247 = vcmp.gt.f32.partialorder %v5215, 0.0
      %vm5248 = vcmp.gt.f32.partialorder %v5216, 0.0
      %vm5249 = vcmp.gt.f32.partialorder %v5217, 0.0
      %vm5250 = vcmp.gt.f32.partialorder %v5218, 0.0
      %vm5251 = vcmp.gt.f32.partialorder %v5219, 0.0
      %vm5252 = vcmp.gt.f32.partialorder %v5220, 0.0
      %vm5253 = vcmp.gt.f32.partialorder %v5221, 0.0
      %vm5254 = vcmp.gt.f32.partialorder %v5222, 0.0
      %vm5255 = vcmp.gt.f32.partialorder %v5223, 0.0
      %vm5256 = vcmp.gt.f32.partialorder %v5224, 0.0
      %vm5257 = vcmp.gt.f32.partialorder %v5225, 0.0
      %vm5258 = vcmp.gt.f32.partialorder %v5226, 0.0
      %vm5259 = vcmp.gt.f32.partialorder %v5227, 0.0
      %vm5260 = vcmp.gt.f32.partialorder %v5228, 0.0
      %vm5261 = vcmp.gt.f32.partialorder %v5229, 0.0
      %vm5262 = vcmp.gt.f32.partialorder %v5230, 0.0
      %vm5263 = vcmp.gt.f32.partialorder %v5231, 0.0
      %vm5264 = vcmp.gt.f32.partialorder %v5232, 0.0
      %vm5265 = vcmp.gt.f32.partialorder %v5233, 0.0
      %vm5266 = vcmp.gt.f32.partialorder %v5234, 0.0
      %vm5267 = vcmp.gt.f32.partialorder %v5235, 0.0
      %vm5268 = vcmp.gt.f32.partialorder %v5236, 0.0
      %vm5269 = vcmp.gt.f32.partialorder %v5237, 0.0
      %vm5270 = vcmp.gt.f32.partialorder %v5238, 0.0
      %vm5271 = vcmp.gt.f32.partialorder %v5239, 0.0
      %vm5272 = vcmp.gt.f32.partialorder %v5240, 0.0
      %vm5273 = vcmp.gt.f32.partialorder %v5241, 0.0
      %vm5274 = vcmp.gt.f32.partialorder %v5242, 0.0
      %v5275 = vmul.f32 %v5211, 0.2
      %v5276 = vmul.f32 %v5212, 0.2
      %v5277 = vmul.f32 %v5213, 0.2
      %v5278 = vmul.f32 %v5214, 0.2
      %v5279 = vmul.f32 %v5215, 0.2
      %v5280 = vmul.f32 %v5216, 0.2
      %v5281 = vmul.f32 %v5217, 0.2
      %v5282 = vmul.f32 %v5218, 0.2
      %v5283 = vmul.f32 %v5219, 0.2
      %v5284 = vmul.f32 %v5220, 0.2
      %v5285 = vmul.f32 %v5221, 0.2
      %v5286 = vmul.f32 %v5222, 0.2
      %v5287 = vmul.f32 %v5223, 0.2
      %v5288 = vmul.f32 %v5224, 0.2
      %v5289 = vmul.f32 %v5225, 0.2
      %v5290 = vmul.f32 %v5226, 0.2
      %v5291 = vmul.f32 %v5227, 0.2
      %v5292 = vmul.f32 %v5228, 0.2
      %v5293 = vmul.f32 %v5229, 0.2
      %v5294 = vmul.f32 %v5230, 0.2
      %v5295 = vmul.f32 %v5231, 0.2
      %v5296 = vmul.f32 %v5232, 0.2
      %v5297 = vmul.f32 %v5233, 0.2
      %v5298 = vmul.f32 %v5234, 0.2
      %v5299 = vmul.f32 %v5235, 0.2
      %v5300 = vmul.f32 %v5236, 0.2
      %v5301 = vmul.f32 %v5237, 0.2
      %v5302 = vmul.f32 %v5238, 0.2
      %v5303 = vmul.f32 %v5239, 0.2
      %v5304 = vmul.f32 %v5240, 0.2
      %v5305 = vmul.f32 %v5241, 0.2
      %v5306 = vmul.f32 %v5242, 0.2
      %v5307 = vsel %vm5243, %v5211, %v5275
      %v5308 = vsel %vm5244, %v5212, %v5276
      %v5309 = vsel %vm5245, %v5213, %v5277
      %v5310 = vsel %vm5246, %v5214, %v5278
      %v5311 = vsel %vm5247, %v5215, %v5279
      %v5312 = vsel %vm5248, %v5216, %v5280
      %v5313 = vsel %vm5249, %v5217, %v5281
      %v5314 = vsel %vm5250, %v5218, %v5282
      %v5315 = vsel %vm5251, %v5219, %v5283
      %v5316 = vsel %vm5252, %v5220, %v5284
      %v5317 = vsel %vm5253, %v5221, %v5285
      %v5318 = vsel %vm5254, %v5222, %v5286
      %v5319 = vsel %vm5255, %v5223, %v5287
      %v5320 = vsel %vm5256, %v5224, %v5288
      %v5321 = vsel %vm5257, %v5225, %v5289
      %v5322 = vsel %vm5258, %v5226, %v5290
      %v5323 = vsel %vm5259, %v5227, %v5291
      %v5324 = vsel %vm5260, %v5228, %v5292
      %v5325 = vsel %vm5261, %v5229, %v5293
      %v5326 = vsel %vm5262, %v5230, %v5294
      %v5327 = vsel %vm5263, %v5231, %v5295
      %v5328 = vsel %vm5264, %v5232, %v5296
      %v5329 = vsel %vm5265, %v5233, %v5297
      %v5330 = vsel %vm5266, %v5234, %v5298
      %v5331 = vsel %vm5267, %v5235, %v5299
      %v5332 = vsel %vm5268, %v5236, %v5300
      %v5333 = vsel %vm5269, %v5237, %v5301
      %v5334 = vsel %vm5270, %v5238, %v5302
      %v5335 = vsel %vm5271, %v5239, %v5303
      %v5336 = vsel %vm5272, %v5240, %v5304
      %v5337 = vsel %vm5273, %v5241, %v5305
      %v5338 = vsel %vm5274, %v5242, %v5306
      %5339 = vst.msk [vmem:[%s170] sm:$0xff] %vm171, %v5307
      %5340 = vst.msk [vmem:[%s170 + $0x8] sm:$0xff] %vm171, %v5308
      %5341 = vst.msk [vmem:[%s170 + $0x10] sm:$0xff] %vm171, %v5309
      %5342 = vst.msk [vmem:[%s170 + $0x18] sm:$0xff] %vm171, %v5310
      %5343 = vst.msk [vmem:[%s170 + $0x20] sm:$0xff] %vm171, %v5311
      %5344 = vst.msk [vmem:[%s170 + $0x28] sm:$0xff] %vm171, %v5312
      %5345 = vst.msk [vmem:[%s170 + $0x30] sm:$0xff] %vm171, %v5313
      %5346 = vst.msk [vmem:[%s170 + $0x38] sm:$0xff] %vm171, %v5314
      %5347 = vst.msk [vmem:[%s170 + $0x40] sm:$0xff] %vm171, %v5315
      %5348 = vst.msk [vmem:[%s170 + $0x48] sm:$0xff] %vm171, %v5316
      %5349 = vst.msk [vmem:[%s170 + $0x50] sm:$0xff] %vm171, %v5317
      %5350 = vst.msk [vmem:[%s170 + $0x58] sm:$0xff] %vm171, %v5318
      %5351 = vst.msk [vmem:[%s170 + $0x60] sm:$0xff] %vm171, %v5319
      %5352 = vst.msk [vmem:[%s170 + $0x68] sm:$0xff] %vm171, %v5320
      %5353 = vst.msk [vmem:[%s170 + $0x70] sm:$0xff] %vm171, %v5321
      %5354 = vst.msk [vmem:[%s170 + $0x78] sm:$0xff] %vm171, %v5322
      %5355 = vst.msk [vmem:[%s170 + $0x80] sm:$0xff] %vm171, %v5323
      %5356 = vst.msk [vmem:[%s170 + $0x88] sm:$0xff] %vm171, %v5324
      %5357 = vst.msk [vmem:[%s170 + $0x90] sm:$0xff] %vm171, %v5325
      %5358 = vst.msk [vmem:[%s170 + $0x98] sm:$0xff] %vm171, %v5326
      %5359 = vst.msk [vmem:[%s170 + $0xa0] sm:$0xff] %vm171, %v5327
      %5360 = vst.msk [vmem:[%s170 + $0xa8] sm:$0xff] %vm171, %v5328
      %5361 = vst.msk [vmem:[%s170 + $0xb0] sm:$0xff] %vm171, %v5329
      %5362 = vst.msk [vmem:[%s170 + $0xb8] sm:$0xff] %vm171, %v5330
      %5363 = vst.msk [vmem:[%s170 + $0xc0] sm:$0xff] %vm171, %v5331
      %5364 = vst.msk [vmem:[%s170 + $0xc8] sm:$0xff] %vm171, %v5332
      %5365 = vst.msk [vmem:[%s170 + $0xd0] sm:$0xff] %vm171, %v5333
      %5366 = vst.msk [vmem:[%s170 + $0xd8] sm:$0xff] %vm171, %v5334
      %5367 = vst.msk [vmem:[%s170 + $0xe0] sm:$0xff] %vm171, %v5335
      %5368 = vst.msk [vmem:[%s170 + $0xe8] sm:$0xff] %vm171, %v5336
      %5369 = vst.msk [vmem:[%s170 + $0xf0] sm:$0xff] %vm171, %v5337
      %5370 = vst.msk [vmem:[%s170 + $0xf8] sm:$0xff] %vm171, %v5338
      %p5371 = scmp.lt.s32.totalorder %s14, 1
      %s5372 = scalar_select %p5371, %s14, 1
      %s5373 = smul.addr %s5372, 32
      %s5374 = smul.addr %s5373, 8
      %s5375 = scalar_lea.vmem %s3, %s5374
      // Predicated region
      $region33: #{tpu_custom_call.1} parent=31 // pred_check
        %p5376 = pneg %p100
      $region34: #{tpu_custom_call.1} parent=31 // pred_check_branch
        %5378 = sbr.rel (%p5376) target = $region36
      $region35: #{tpu_custom_call.1} parent=31 // pred_region
        _
      $region36: #{tpu_custom_call.1} parent=31 // pred_fallthru
        _
    $region32: #{tpu_custom_call.1} parent=5 // pred_fallthru
      _
    %p5379 = scmp.le.s32.totalorder 2, %s9
    // Predicated region
    $region37: #{tpu_custom_call.1} parent=5 // pred_check
      %p5380 = pneg %p5379
    $region38: #{tpu_custom_call.1} parent=5 // pred_check_branch
      %5382 = sbr.rel (%p5380) target = $region40
    $region39: #{tpu_custom_call.1} parent=5 // pred_region
      %s5383 = ssub.s32 %s9, 2
      // Predicated region
      $region41: #{tpu_custom_call.1} parent=39 // pred_check
        %p5384 = pneg %p106
      $region42: #{tpu_custom_call.1} parent=39 // pred_check_branch
        %5386 = sbr.rel (%p5384) target = $region44
      $region43: #{tpu_custom_call.1} parent=39 // pred_region
        %p5387 = scmp.lt.s32.totalorder %s15, 1
        %s5388 = scalar_select %p5387, %s15, 1
        %s5389 = smul.addr %s5388, 32
        %s5390 = smul.addr %s5389, 8
        %s5391 = scalar_lea.vmem %s3, %s5390
      $region44: #{tpu_custom_call.1} parent=39 // pred_fallthru
        _
    $region40: #{tpu_custom_call.1} parent=5 // pred_fallthru
      _
  $region6: #{tpu_custom_call.1} parent=0 // loop_footer
    %s13 = sadd.s32 1, %s9
  $region7: #{tpu_custom_call.1} parent=0 // loop_footer_branch
    %8 = sbr.rel target = $region3
  $region8: #{tpu_custom_call.1} parent=0 // loop_exit
    _

</llo_original>
